<compile_context>
chip_gen: v7x
topology: tpu7x:2x2x1
jax: 0.10.0
libtpu: 0.0.40
codegen_flags: <defaults>
</compile_context>

<pallas_src>
import functools
import numpy as np
import jax
import jax.numpy as jnp
from jax import lax
from jax.experimental import pallas as pl
from jax.experimental.pallas import tpu as pltpu


def _mxu(a, b):
    """Single native bf16 MXU pass with f32 accumulation."""
    return jnp.dot(a, b, preferred_element_type=jnp.float32,
                   precision=lax.Precision.DEFAULT)


# ------------------------------------------------------------------- kernel --

def _cgb_fused_kernel(p_ref, x_ref,
                      paw_ref, g1w_ref, g2w_ref, g3w_ref,
                      f1ws_ref, f1wf_ref, f1w2_ref, f1w3_ref,
                      f2ws_ref, f2wf_ref, f2w2_ref, f2w3_ref,
                      bias_ref,
                      po_ref, xo_ref,
                      *, bblk, num_point, num_pred, scale, boffs):
    f32, bf16 = jnp.float32, jnp.bfloat16
    N = num_point
    C = x_ref.shape[-1]
    n_out = 2 * N + num_pred
    hid = f1ws_ref.shape[-1]
    hid2 = f1w2_ref.shape[-1]
    c1 = g1w_ref.shape[-1]
    c2 = g2w_ref.shape[-1]

    # static, 128-lane-aligned slices of the packed (1, L) parameter row
    def brow(idx, n):
        off = boffs[idx]
        return bias_ref[:, off:off + n]                       # (1, n) f32

    pa_scale, pa_shift = brow(0, C), brow(1, C)
    g1b, g2b, g3b = brow(2, c1), brow(3, c2), brow(4, num_pred)
    f1b1, f1b2, f1b3 = brow(5, hid), brow(6, hid2), brow(7, 3)
    f2b1, f2b2, f2b3 = brow(8, hid), brow(9, hid2), brow(10, 3)

    x_all = x_ref[...]                                        # (bblk*N, C) f32
    p_all = p_ref[...]                                        # (bblk*N, 3) f32
    x_bf = x_all.astype(bf16)

    # --- PointAggregation (stride=1): relu(bn(linear(x))), BN folded,
    #     all bblk batch elements stacked into one MXU matmul ------------------
    x2_all = jnp.maximum(_mxu(x_bf, paw_ref[...]) * pa_scale + pa_shift, 0.0)

    # --- per-batch global max + channels-last diff, stacked over the batch ----
    gmax, diff_cl = [], []
    for bi in range(bblk):
        sl = slice(bi * N, (bi + 1) * N)                      # static offsets
        g = jnp.max(x2_all[sl, :], axis=0, keepdims=True)     # (1, C)
        gmax.append(g)
        diff_cl.append((g - x_all[sl, :]).T)                  # (C, N)
    diff_all = diff_cl[0] if bblk == 1 else jnp.concatenate(diff_cl, axis=0)

    # --- generate_feature: 3x 1x1 Conv1d, channels-last, batch-stacked --------
    leak = lambda h: jnp.maximum(h, 0.2 * h)                  # LeakyReLU(0.2)
    h = leak(_mxu(diff_all.astype(bf16), g1w_ref[...]) + g1b)       # (bblk*C, 256)
    h = leak(_mxu(h.astype(bf16), g2w_ref[...]) + g2b)              # (bblk*C, 64)
    x3_cl = _mxu(h.astype(bf16), g3w_ref[...]) + g3b                # (bblk*C, num_pred)

    dn_nt = (((1,), (1,)), ((), ()))       # A @ B.T: contract channel axis of both

    # SubFold (generate_centroids), channels-last:
    # W1 @ cat([seed, feats]) == seed_cl @ Ws + (gmax @ Wf) broadcast over rows
    def fold(seed, gmax_bf, ws_ref, wf_ref, b1, w2_ref, b2, w3_ref, b3):
        gfeat = _mxu(gmax_bf, wf_ref[...])                          # (1, hid)
        h1 = jnp.maximum(_mxu(seed.astype(bf16), ws_ref[...]) + gfeat + b1, 0.0)
        h2 = jnp.maximum(_mxu(h1.astype(bf16), w2_ref[...]) + b2, 0.0)
        return _mxu(h2.astype(bf16), w3_ref[...]) + b3              # (num_pred, 3)

    # --- per-batch tail: CrossFusion attention + 2x SubFold + output stores ---
    for bi in range(bblk):
        sl = slice(bi * N, (bi + 1) * N)
        x3_bi = x3_cl[bi * C:(bi + 1) * C, :].T                     # (num_pred, C)
        q = (x3_bi * scale).astype(bf16)       # pre-scaled q; x3 stays unscaled
        s = lax.dot_general(q, x_bf[sl, :], dn_nt,
                            preferred_element_type=f32,
                            precision=lax.Precision.DEFAULT)        # (num_pred, N)
        s = s - jnp.max(s, axis=-1, keepdims=True)
        e = jnp.exp(s)
        attn = e * pl.reciprocal(jnp.sum(e, axis=-1, keepdims=True), approx=True)
        p_bi = p_all[sl, :]
        p3 = _mxu(attn.astype(bf16), p_bi.astype(bf16))             # (num_pred, 3)

        gmax_bf = gmax[bi].astype(bf16)
        fd1 = fold(p3, gmax_bf, f1ws_ref, f1wf_ref, f1b1,
                   f1w2_ref, f1b2, f1w3_ref, f1b3)
        p3f = fold(fd1, gmax_bf, f2ws_ref, f2wf_ref, f2b1,
                   f2w2_ref, f2b2, f2w3_ref, f2b3)

        # outputs written straight at static row offsets (no host-side concat);
        # the duplicated p rows go out as one coalesced store.
        ro = bi * n_out
        xo_ref[ro:ro + N, :] = x_all[sl, :]
        xo_ref[ro + N:ro + 2 * N, :] = x2_all[sl, :]
        xo_ref[ro + 2 * N:ro + n_out, :] = x3_bi
        po_ref[ro:ro + 2 * N, :] = jnp.concatenate([p_bi, p_bi], axis=0)
        po_ref[ro + 2 * N:ro + n_out, :] = p3f


# ------------------------------------------------------------------- params --

def _bn_random(key, c):
    k1, k2, k3, k4 = jax.random.split(key, 4)
    gamma = jax.random.uniform(k1, (c,), jnp.float32, 0.5, 1.5)
    beta = jax.random.uniform(k2, (c,), jnp.float32, -0.5, 0.5)
    mean = jax.random.uniform(k3, (c,), jnp.float32, -0.5, 0.5)
    var = jax.random.uniform(k4, (c,), jnp.float32, 0.5, 1.5)
    return gamma, beta, mean, var


def _fold_bn(w, bias, gamma, beta, mean, var, eps=1e-5):
    s = gamma / jnp.sqrt(var + eps)
    return w * s[:, None], (bias - mean) * s + beta


def make_params(key, cin, cout, num_point, num_pred):
    assert cin == cout, "CGB 'generate_centroids' path requires in_plane == out_plane"
    hid = cout // 2
    ks = jax.random.split(key, 10)

    def lin(k, shape, fan_in):
        bound = 1.0 / np.sqrt(fan_in)
        return jax.random.uniform(k, shape, jnp.float32, -bound, bound)

    P = {}
    P['pa_w'] = lin(ks[0], (cout, cin), cin)                  # Linear, bias=False
    P['pa_bn'] = _bn_random(ks[1], cout)
    P['gf'] = [
        (lin(ks[2], (256, num_point), num_point), lin(ks[3], (256,), num_point)),
        (lin(ks[4], (64, 256), 256), lin(ks[5], (64,), 256)),
        (lin(ks[6], (num_pred, 64), 64), lin(ks[7], (num_pred,), 64)),
    ]

    def fold_params(kf):
        k = jax.random.split(kf, 8)
        return [
            (lin(k[0], (hid, cout + 3), cout + 3), lin(k[1], (hid,), cout + 3)),
            _bn_random(k[2], hid),
            (lin(k[3], (hid // 2, hid), hid), lin(k[4], (hid // 2,), hid)),
            _bn_random(k[5], hid // 2),
            (lin(k[6], (3, hid // 2), hid // 2), lin(k[7], (3,), hid // 2)),
        ]

    P['fold1'] = fold_params(ks[8])
    P['fold2'] = fold_params(ks[9])
    return P


# ------------------------------------------------------------------ wrapper --

def _pack_bias_rows(rows):
    """Pack 1-D f32 rows into one lane-dense (1, L) array at 128-aligned offsets."""
    offs, segs, cur = [], [], 0
    for r in rows:
        r = jnp.asarray(r, jnp.float32).reshape(-1)
        offs.append(cur)
        padded = ((r.shape[0] + 127) // 128) * 128
        segs.append(jnp.pad(r, (0, padded - r.shape[0])))
        cur += padded
    return jnp.concatenate(segs)[None, :], tuple(offs)


def _pick_bblk(b, num_point, cout):
    """Batch elements per grid step: fill MXU rows, keep >= 2 grid steps (so the
    'parallel' grid axis can feed both v7x TensorCores), require b % bblk == 0,
    and keep the per-step VMEM block small."""
    target = max(1, 256 // max(8, min(num_point, cout)))
    best = 1
    for d in range(1, b + 1):
        if b % d or d > target:
            continue
        if b >= 2 and b // d < 2:
            continue
        best = d
    return best


def cgb_generate_centroids(p, x, o, P, *, num_point, num_pred,
                           weight_buffer_count=1):
    b = int(o.shape[0])
    cin = x.shape[1]
    cout = P['pa_w'].shape[0]
    assert cin == cout, "reshape(-1, cout) requires in_plane == out_plane"
    n_out = 2 * num_point + num_pred
    bblk = _pick_bblk(b, num_point, cout)
    bf16 = jnp.bfloat16

    # --- fold BatchNorm (eval mode) + lay weights out for right-multiplies ----
    g, bt, mu, var = P['pa_bn']
    s = g / jnp.sqrt(var + 1e-5)
    paw = P['pa_w'].T.astype(bf16)

    (w1, b1), (w2, b2), (w3, b3) = P['gf']
    g1w, g2w, g3w = w1.T.astype(bf16), w2.T.astype(bf16), w3.T.astype(bf16)

    def fold_args(fp):
        (fw1, fb1), bn1, (fw2, fb2), bn2, (fw3, fb3) = fp
        fw1e, fb1e = _fold_bn(fw1, fb1, *bn1)
        fw2e, fb2e = _fold_bn(fw2, fb2, *bn2)
        ws = (fw1e[:, :3].T.astype(bf16), fw1e[:, 3:].T.astype(bf16),
              fw2e.T.astype(bf16), fw3.T.astype(bf16))
        return ws, (fb1e, fb2e, fb3)

    f1w, f1b = fold_args(P['fold1'])
    f2w, f2b = fold_args(P['fold2'])

    # --- every 1-row parameter packed into a single lane-aligned (1, L) input --
    bias_pack, boffs = _pack_bias_rows([s, bt - mu * s, b1, b2, b3, *f1b, *f2b])

    weights = (paw, g1w, g2w, g3w, *f1w, *f2w, bias_pack)
    pipe = ({'pipeline_mode': pl.Buffered(weight_buffer_count)}
            if weight_buffer_count is not None else {})
    w_specs = [pl.BlockSpec(w.shape, lambda i: (0, 0), **pipe) for w in weights]

    kernel = functools.partial(_cgb_fused_kernel, bblk=bblk,
                               num_point=num_point, num_pred=num_pred,
                               scale=float(cout) ** -0.5, boffs=boffs)

    p_out, x_out = pl.pallas_call(
        kernel,
        out_shape=(jax.ShapeDtypeStruct((b * n_out, 3), jnp.float32),
                   jax.ShapeDtypeStruct((b * n_out, cout), jnp.float32)),
        grid=(b // bblk,),
        in_specs=[pl.BlockSpec((bblk * num_point, 3), lambda i: (i, 0)),
                  pl.BlockSpec((bblk * num_point, cin), lambda i: (i, 0))]
                 + w_specs,
        out_specs=(pl.BlockSpec((bblk * n_out, 3), lambda i: (i, 0)),
                   pl.BlockSpec((bblk * n_out, cout), lambda i: (i, 0))),
        compiler_params=pltpu.CompilerParams(dimension_semantics=("parallel",)),
    )(p, x, *weights)

    o_out = o + (num_point + num_pred) * jnp.arange(1, b + 1, dtype=o.dtype)
    return p_out, x_out, o_out


# -------------------------------------------------------- pure-JAX reference --

def reference_forward(p, x, o, P, *, num_point, num_pred):
    b = o.shape[0]
    cin = x.shape[1]
    cout = P['pa_w'].shape[0]
    g, bt, mu, var = P['pa_bn']
    y = x @ P['pa_w'].T
    y = (y - mu) / jnp.sqrt(var + 1e-5) * g + bt
    x2_flat = jnp.maximum(y, 0.0)
    p_b = p.reshape(b, num_point, 3)
    x_b = x.reshape(b, num_point, cin)
    x2_b = x2_flat.reshape(b, num_point, cout)
    global_x = jnp.max(x2_b, axis=1)
    diff_x = global_x[:, None, :] - x_b

    def conv1(t, w, bias):
        return jnp.einsum('oc,bcl->bol', w, t) + bias[None, :, None]

    leaky = lambda h: jnp.maximum(h, 0.2 * h)
    (w1, b1), (w2, b2), (w3, b3) = P['gf']
    h = leaky(conv1(diff_x, w1, b1))
    h = leaky(conv1(h, w2, b2))
    x3 = conv1(h, w3, b3)
    s = jnp.einsum('bqc,bkc->bqk', x3, x_b) * (cout ** -0.5)
    a = jax.nn.softmax(s, axis=-1)
    p3 = jnp.einsum('bqk,bkd->bqd', a, p_b)
    feats = jnp.broadcast_to(global_x[:, :, None], (b, cout, num_pred))
    seed = jnp.transpose(p3, (0, 2, 1))

    def bn_eval(t, gamma, beta, mean, var_):
        return ((t - mean[None, :, None]) / jnp.sqrt(var_[None, :, None] + 1e-5)
                * gamma[None, :, None] + beta[None, :, None])

    def run_fold(inp, fp):
        (fw1, fb1), bn1, (fw2, fb2), bn2, (fw3, fb3) = fp
        h1 = jnp.maximum(bn_eval(conv1(inp, fw1, fb1), *bn1), 0.0)
        h2 = jnp.maximum(bn_eval(conv1(h1, fw2, fb2), *bn2), 0.0)
        return conv1(h2, fw3, fb3)

    fd1 = run_fold(jnp.concatenate([seed, feats], axis=1), P['fold1'])
    fd2 = run_fold(jnp.concatenate([fd1, feats], axis=1), P['fold2'])
    p3f = jnp.transpose(fd2, (0, 2, 1))
    x_out = jnp.concatenate([x_b, x2_b, x3], axis=1).reshape(-1, cout)
    p_out = jnp.concatenate([p_b, p_b, p3f], axis=1).reshape(-1, 3)
    o_out = o + (num_point + num_pred) * jnp.arange(1, b + 1, dtype=o.dtype)
    return p_out, x_out, o_out


# --------------------------------------------------------------------- main --

if __name__ == "__main__":
    # 'highest' pins the pure-XLA *reference* to full-f32 matmuls.  The Pallas
    # kernel is unaffected: its dots take explicit bf16 operands with DEFAULT
    # precision and f32 accumulation (one native MXU pass each).
    jax.config.update("jax_default_matmul_precision", "highest")

    B, NUM_POINT, IN_PLANE, OUT_PLANE, NUM_PRED = 2, 64, 32, 32, 16
    key = jax.random.PRNGKey(0)
    kp, kx, kpar = jax.random.split(key, 3)
    N_total = B * NUM_POINT
    p = jax.random.normal(kp, (N_total, 3), jnp.float32)
    x = jax.random.normal(kx, (N_total, IN_PLANE), jnp.float32)
    o = jnp.arange(1, B + 1, dtype=jnp.int32) * NUM_POINT
    P = make_params(kpar, IN_PLANE, OUT_PLANE, NUM_POINT, NUM_PRED)

    p_gold, x_gold, o_gold = reference_forward(
        p, x, o, P, num_point=NUM_POINT, num_pred=NUM_PRED)

    def run_and_check(buffer_count):
        fwd = jax.jit(functools.partial(
            cgb_generate_centroids, num_point=NUM_POINT, num_pred=NUM_PRED,
            weight_buffer_count=buffer_count))
        p_out, x_out, o_out = fwd(p, x, o, P)
        jax.block_until_ready((p_out, x_out, o_out))
        # tolerance sized for native-bf16 MXU operands (f32 accumulation) in
        # the kernel vs. the full-f32 XLA reference.
        np.testing.assert_allclose(np.asarray(p_out), np.asarray(p_gold),
                                   rtol=2e-2, atol=1e-2)
        np.testing.assert_allclose(np.asarray(x_out), np.asarray(x_gold),
                                   rtol=2e-2, atol=1e-2)
        assert np.array_equal(np.asarray(o_out), np.asarray(o_gold))
        return p_out, x_out, o_out

    try:
        # grid-invariant weights: request single buffering (saves VMEM when
        # num_point is large); fall back to default double-buffering if this
        # jax/libtpu rejects pipeline_mode=pl.Buffered(1).
        p_out, x_out, o_out = run_and_check(1)
    except Exception:
        p_out, x_out, o_out = run_and_check(None)

    assert p_out.shape == ((2 * NUM_POINT + NUM_PRED) * B, 3)
    assert x_out.shape == ((2 * NUM_POINT + NUM_PRED) * B, OUT_PLANE)
    print("KERNEL_OK")
</pallas_src>

<mosaic_0001>
module attributes {stable_mosaic.version = 11 : i64} {
  func.func @_cgb_fused_kernel(%arg0: i32, %arg1: memref<64x3xf32, #tpu.memory_space<vmem>>, %arg2: memref<64x32xf32, #tpu.memory_space<vmem>>, %arg3: memref<32x32xbf16, #tpu.memory_space<vmem>>, %arg4: memref<64x256xbf16, #tpu.memory_space<vmem>>, %arg5: memref<256x64xbf16, #tpu.memory_space<vmem>>, %arg6: memref<64x16xbf16, #tpu.memory_space<vmem>>, %arg7: memref<3x16xbf16, #tpu.memory_space<vmem>>, %arg8: memref<32x16xbf16, #tpu.memory_space<vmem>>, %arg9: memref<16x8xbf16, #tpu.memory_space<vmem>>, %arg10: memref<8x3xbf16, #tpu.memory_space<vmem>>, %arg11: memref<3x16xbf16, #tpu.memory_space<vmem>>, %arg12: memref<32x16xbf16, #tpu.memory_space<vmem>>, %arg13: memref<16x8xbf16, #tpu.memory_space<vmem>>, %arg14: memref<8x3xbf16, #tpu.memory_space<vmem>>, %arg15: memref<1x1536xf32, #tpu.memory_space<vmem>>, %arg16: memref<144x3xf32, #tpu.memory_space<vmem>>, %arg17: memref<144x32xf32, #tpu.memory_space<vmem>>) attributes {dimension_semantics = [#tpu.dimension_semantics<parallel>], iteration_bounds = array<i64: 2>, scalar_prefetch = 0 : i64, scratch_operands = 0 : i64, tpu.core_type = #tpu.core_type<tc>, window_params = [{transform_indices = @transform_0, window_bounds = array<i64: 64, 3>}, {transform_indices = @transform_1, window_bounds = array<i64: 64, 32>}, {pipeline_mode = #tpu.pipeline_mode<synchronous>, transform_indices = @transform_2, window_bounds = array<i64: 32, 32>}, {pipeline_mode = #tpu.pipeline_mode<synchronous>, transform_indices = @transform_3, window_bounds = array<i64: 64, 256>}, {pipeline_mode = #tpu.pipeline_mode<synchronous>, transform_indices = @transform_4, window_bounds = array<i64: 256, 64>}, {pipeline_mode = #tpu.pipeline_mode<synchronous>, transform_indices = @transform_5, window_bounds = array<i64: 64, 16>}, {pipeline_mode = #tpu.pipeline_mode<synchronous>, transform_indices = @transform_6, window_bounds = array<i64: 3, 16>}, {pipeline_mode = #tpu.pipeline_mode<synchronous>, transform_indices = @transform_7, window_bounds = array<i64: 32, 16>}, {pipeline_mode = #tpu.pipeline_mode<synchronous>, transform_indices = @transform_8, window_bounds = array<i64: 16, 8>}, {pipeline_mode = #tpu.pipeline_mode<synchronous>, transform_indices = @transform_9, window_bounds = array<i64: 8, 3>}, {pipeline_mode = #tpu.pipeline_mode<synchronous>, transform_indices = @transform_10, window_bounds = array<i64: 3, 16>}, {pipeline_mode = #tpu.pipeline_mode<synchronous>, transform_indices = @transform_11, window_bounds = array<i64: 32, 16>}, {pipeline_mode = #tpu.pipeline_mode<synchronous>, transform_indices = @transform_12, window_bounds = array<i64: 16, 8>}, {pipeline_mode = #tpu.pipeline_mode<synchronous>, transform_indices = @transform_13, window_bounds = array<i64: 8, 3>}, {pipeline_mode = #tpu.pipeline_mode<synchronous>, transform_indices = @transform_14, window_bounds = array<i64: 1, 1536>}, {transform_indices = @transform_15, window_bounds = array<i64: 144, 3>}, {transform_indices = @transform_16, window_bounds = array<i64: 144, 32>}]} {
    %c0 = arith.constant 0 : index
    %c0_0 = arith.constant 0 : index
    %0 = vector.load %arg15[%c0, %c0_0] : memref<1x1536xf32, #tpu.memory_space<vmem>>, vector<1x32xf32>
    %c0_1 = arith.constant 0 : index
    %c128 = arith.constant 128 : index
    %1 = vector.load %arg15[%c0_1, %c128] : memref<1x1536xf32, #tpu.memory_space<vmem>>, vector<1x32xf32>
    %c0_2 = arith.constant 0 : index
    %c256 = arith.constant 256 : index
    %2 = vector.load %arg15[%c0_2, %c256] : memref<1x1536xf32, #tpu.memory_space<vmem>>, vector<1x256xf32>
    %c0_3 = arith.constant 0 : index
    %c512 = arith.constant 512 : index
    %3 = vector.load %arg15[%c0_3, %c512] : memref<1x1536xf32, #tpu.memory_space<vmem>>, vector<1x64xf32>
    %c0_4 = arith.constant 0 : index
    %c640 = arith.constant 640 : index
    %4 = vector.load %arg15[%c0_4, %c640] : memref<1x1536xf32, #tpu.memory_space<vmem>>, vector<1x16xf32>
    %c0_5 = arith.constant 0 : index
    %c768 = arith.constant 768 : index
    %5 = vector.load %arg15[%c0_5, %c768] : memref<1x1536xf32, #tpu.memory_space<vmem>>, vector<1x16xf32>
    %c0_6 = arith.constant 0 : index
    %c896 = arith.constant 896 : index
    %6 = vector.load %arg15[%c0_6, %c896] : memref<1x1536xf32, #tpu.memory_space<vmem>>, vector<1x8xf32>
    %c0_7 = arith.constant 0 : index
    %c1024 = arith.constant 1024 : index
    %7 = vector.load %arg15[%c0_7, %c1024] : memref<1x1536xf32, #tpu.memory_space<vmem>>, vector<1x3xf32>
    %c0_8 = arith.constant 0 : index
    %c1152 = arith.constant 1152 : index
    %8 = vector.load %arg15[%c0_8, %c1152] : memref<1x1536xf32, #tpu.memory_space<vmem>>, vector<1x16xf32>
    %c0_9 = arith.constant 0 : index
    %c1280 = arith.constant 1280 : index
    %9 = vector.load %arg15[%c0_9, %c1280] : memref<1x1536xf32, #tpu.memory_space<vmem>>, vector<1x8xf32>
    %c0_10 = arith.constant 0 : index
    %c1408 = arith.constant 1408 : index
    %10 = vector.load %arg15[%c0_10, %c1408] : memref<1x1536xf32, #tpu.memory_space<vmem>>, vector<1x3xf32>
    %c0_11 = arith.constant 0 : index
    %c0_12 = arith.constant 0 : index
    %11 = vector.load %arg2[%c0_11, %c0_12] : memref<64x32xf32, #tpu.memory_space<vmem>>, vector<64x32xf32>
    %c0_13 = arith.constant 0 : index
    %c0_14 = arith.constant 0 : index
    %12 = vector.load %arg1[%c0_13, %c0_14] : memref<64x3xf32, #tpu.memory_space<vmem>>, vector<64x3xf32>
    %13 = arith.truncf %11 : vector<64x32xf32> to vector<64x32xbf16>
    %c0_15 = arith.constant 0 : index
    %c0_16 = arith.constant 0 : index
    %14 = vector.load %arg3[%c0_15, %c0_16] : memref<32x32xbf16, #tpu.memory_space<vmem>>, vector<32x32xbf16>
    %cst = arith.constant dense<0.000000e+00> : vector<64x32xf32>
    %15 = tpu.matmul %13, %14, %cst {dimension_numbers = #tpu.dot_dimension_numbers<[1], [0], [0], [1], [0, 0, 1, 1], [], []>} : vector<64x32xbf16>, vector<32x32xbf16>, vector<64x32xf32> -> vector<64x32xf32>
    %16 = vector.broadcast %0 : vector<1x32xf32> to vector<64x32xf32>
    %17 = arith.mulf %15, %16 : vector<64x32xf32>
    %18 = vector.broadcast %1 : vector<1x32xf32> to vector<64x32xf32>
    %19 = arith.addf %17, %18 : vector<64x32xf32>
    %cst_17 = arith.constant 0.000000e+00 : f32
    %20 = vector.broadcast %cst_17 : f32 to vector<64x32xf32>
    %21 = arith.maximumf %19, %20 : vector<64x32xf32>
    %cst_18 = arith.constant dense<0xFF800000> : vector<32xf32>
    %22 = vector.multi_reduction <maximumf>, %21, %cst_18 [0] : vector<64x32xf32> to vector<32xf32>
    %23 = vector.shape_cast %22 : vector<32xf32> to vector<1x32xf32>
    %24 = vector.broadcast %23 : vector<1x32xf32> to vector<64x32xf32>
    %25 = arith.subf %24, %11 : vector<64x32xf32>
    %26 = tpu.transpose %25, [1, 0] : vector<64x32xf32> -> vector<32x64xf32>
    %27 = arith.truncf %26 : vector<32x64xf32> to vector<32x64xbf16>
    %c0_19 = arith.constant 0 : index
    %c0_20 = arith.constant 0 : index
    %28 = vector.load %arg4[%c0_19, %c0_20] : memref<64x256xbf16, #tpu.memory_space<vmem>>, vector<64x256xbf16>
    %cst_21 = arith.constant dense<0.000000e+00> : vector<32x256xf32>
    %29 = tpu.matmul %27, %28, %cst_21 {dimension_numbers = #tpu.dot_dimension_numbers<[1], [0], [0], [1], [0, 0, 1, 1], [], []>} : vector<32x64xbf16>, vector<64x256xbf16>, vector<32x256xf32> -> vector<32x256xf32>
    %30 = vector.broadcast %2 : vector<1x256xf32> to vector<32x256xf32>
    %31 = arith.addf %29, %30 : vector<32x256xf32>
    %cst_22 = arith.constant 2.000000e-01 : f32
    %32 = vector.broadcast %cst_22 : f32 to vector<32x256xf32>
    %33 = arith.mulf %32, %31 : vector<32x256xf32>
    %34 = arith.maximumf %31, %33 : vector<32x256xf32>
    %35 = arith.truncf %34 : vector<32x256xf32> to vector<32x256xbf16>
    %c0_23 = arith.constant 0 : index
    %c0_24 = arith.constant 0 : index
    %36 = vector.load %arg5[%c0_23, %c0_24] : memref<256x64xbf16, #tpu.memory_space<vmem>>, vector<256x64xbf16>
    %cst_25 = arith.constant dense<0.000000e+00> : vector<32x64xf32>
    %37 = tpu.matmul %35, %36, %cst_25 {dimension_numbers = #tpu.dot_dimension_numbers<[1], [0], [0], [1], [0, 0, 1, 1], [], []>} : vector<32x256xbf16>, vector<256x64xbf16>, vector<32x64xf32> -> vector<32x64xf32>
    %38 = vector.broadcast %3 : vector<1x64xf32> to vector<32x64xf32>
    %39 = arith.addf %37, %38 : vector<32x64xf32>
    %cst_26 = arith.constant 2.000000e-01 : f32
    %40 = vector.broadcast %cst_26 : f32 to vector<32x64xf32>
    %41 = arith.mulf %40, %39 : vector<32x64xf32>
    %42 = arith.maximumf %39, %41 : vector<32x64xf32>
    %43 = arith.truncf %42 : vector<32x64xf32> to vector<32x64xbf16>
    %c0_27 = arith.constant 0 : index
    %c0_28 = arith.constant 0 : index
    %44 = vector.load %arg6[%c0_27, %c0_28] : memref<64x16xbf16, #tpu.memory_space<vmem>>, vector<64x16xbf16>
    %cst_29 = arith.constant dense<0.000000e+00> : vector<32x16xf32>
    %45 = tpu.matmul %43, %44, %cst_29 {dimension_numbers = #tpu.dot_dimension_numbers<[1], [0], [0], [1], [0, 0, 1, 1], [], []>} : vector<32x64xbf16>, vector<64x16xbf16>, vector<32x16xf32> -> vector<32x16xf32>
    %46 = vector.broadcast %4 : vector<1x16xf32> to vector<32x16xf32>
    %47 = arith.addf %45, %46 : vector<32x16xf32>
    %48 = tpu.transpose %47, [1, 0] : vector<32x16xf32> -> vector<16x32xf32>
    %cst_30 = arith.constant 0.176776692 : f32
    %49 = vector.broadcast %cst_30 : f32 to vector<16x32xf32>
    %50 = arith.mulf %48, %49 : vector<16x32xf32>
    %51 = arith.truncf %50 : vector<16x32xf32> to vector<16x32xbf16>
    %cst_31 = arith.constant dense<0.000000e+00> : vector<16x64xf32>
    %52 = tpu.matmul %51, %13, %cst_31 {dimension_numbers = #tpu.dot_dimension_numbers<[1], [1], [0], [0], [0, 0, 1, 0], [], []>} : vector<16x32xbf16>, vector<64x32xbf16>, vector<16x64xf32> -> vector<16x64xf32>
    %cst_32 = arith.constant dense<0xFF800000> : vector<16xf32>
    %53 = vector.multi_reduction <maximumf>, %52, %cst_32 [1] : vector<16x64xf32> to vector<16xf32>
    %54 = vector.shape_cast %53 : vector<16xf32> to vector<16x1xf32>
    %55 = vector.broadcast %54 : vector<16x1xf32> to vector<16x64xf32>
    %56 = arith.subf %52, %55 : vector<16x64xf32>
    %57 = math.exp %56 : vector<16x64xf32>
    %cst_33 = arith.constant dense<0.000000e+00> : vector<16xf32>
    %58 = vector.multi_reduction <add>, %57, %cst_33 [1] : vector<16x64xf32> to vector<16xf32>
    %59 = vector.shape_cast %58 : vector<16xf32> to vector<16x1xf32>
    %60 = tpu.reciprocal %59 {approx = true} : vector<16x1xf32> -> vector<16x1xf32>
    %61 = vector.broadcast %60 : vector<16x1xf32> to vector<16x64xf32>
    %62 = arith.mulf %57, %61 : vector<16x64xf32>
    %63 = arith.truncf %62 : vector<16x64xf32> to vector<16x64xbf16>
    %64 = arith.truncf %12 : vector<64x3xf32> to vector<64x3xbf16>
    %cst_34 = arith.constant dense<0.000000e+00> : vector<16x3xf32>
    %65 = tpu.matmul %63, %64, %cst_34 {dimension_numbers = #tpu.dot_dimension_numbers<[1], [0], [0], [1], [0, 0, 1, 1], [], []>} : vector<16x64xbf16>, vector<64x3xbf16>, vector<16x3xf32> -> vector<16x3xf32>
    %66 = arith.truncf %23 : vector<1x32xf32> to vector<1x32xbf16>
    %c0_35 = arith.constant 0 : index
    %c0_36 = arith.constant 0 : index
    %67 = vector.load %arg8[%c0_35, %c0_36] : memref<32x16xbf16, #tpu.memory_space<vmem>>, vector<32x16xbf16>
    %cst_37 = arith.constant dense<0.000000e+00> : vector<1x16xf32>
    %68 = tpu.matmul %66, %67, %cst_37 {dimension_numbers = #tpu.dot_dimension_numbers<[1], [0], [0], [1], [0, 0, 1, 1], [], []>} : vector<1x32xbf16>, vector<32x16xbf16>, vector<1x16xf32> -> vector<1x16xf32>
    %69 = arith.truncf %65 : vector<16x3xf32> to vector<16x3xbf16>
    %c0_38 = arith.constant 0 : index
    %c0_39 = arith.constant 0 : index
    %70 = vector.load %arg7[%c0_38, %c0_39] : memref<3x16xbf16, #tpu.memory_space<vmem>>, vector<3x16xbf16>
    %cst_40 = arith.constant dense<0.000000e+00> : vector<16x16xf32>
    %71 = tpu.matmul %69, %70, %cst_40 {dimension_numbers = #tpu.dot_dimension_numbers<[1], [0], [0], [1], [0, 0, 1, 1], [], []>} : vector<16x3xbf16>, vector<3x16xbf16>, vector<16x16xf32> -> vector<16x16xf32>
    %72 = vector.broadcast %68 : vector<1x16xf32> to vector<16x16xf32>
    %73 = arith.addf %71, %72 : vector<16x16xf32>
    %74 = vector.broadcast %5 : vector<1x16xf32> to vector<16x16xf32>
    %75 = arith.addf %73, %74 : vector<16x16xf32>
    %cst_41 = arith.constant 0.000000e+00 : f32
    %76 = vector.broadcast %cst_41 : f32 to vector<16x16xf32>
    %77 = arith.maximumf %75, %76 : vector<16x16xf32>
    %78 = arith.truncf %77 : vector<16x16xf32> to vector<16x16xbf16>
    %c0_42 = arith.constant 0 : index
    %c0_43 = arith.constant 0 : index
    %79 = vector.load %arg9[%c0_42, %c0_43] : memref<16x8xbf16, #tpu.memory_space<vmem>>, vector<16x8xbf16>
    %cst_44 = arith.constant dense<0.000000e+00> : vector<16x8xf32>
    %80 = tpu.matmul %78, %79, %cst_44 {dimension_numbers = #tpu.dot_dimension_numbers<[1], [0], [0], [1], [0, 0, 1, 1], [], []>} : vector<16x16xbf16>, vector<16x8xbf16>, vector<16x8xf32> -> vector<16x8xf32>
    %81 = vector.broadcast %6 : vector<1x8xf32> to vector<16x8xf32>
    %82 = arith.addf %80, %81 : vector<16x8xf32>
    %cst_45 = arith.constant 0.000000e+00 : f32
    %83 = vector.broadcast %cst_45 : f32 to vector<16x8xf32>
    %84 = arith.maximumf %82, %83 : vector<16x8xf32>
    %85 = arith.truncf %84 : vector<16x8xf32> to vector<16x8xbf16>
    %c0_46 = arith.constant 0 : index
    %c0_47 = arith.constant 0 : index
    %86 = vector.load %arg10[%c0_46, %c0_47] : memref<8x3xbf16, #tpu.memory_space<vmem>>, vector<8x3xbf16>
    %cst_48 = arith.constant dense<0.000000e+00> : vector<16x3xf32>
    %87 = tpu.matmul %85, %86, %cst_48 {dimension_numbers = #tpu.dot_dimension_numbers<[1], [0], [0], [1], [0, 0, 1, 1], [], []>} : vector<16x8xbf16>, vector<8x3xbf16>, vector<16x3xf32> -> vector<16x3xf32>
    %88 = vector.broadcast %7 : vector<1x3xf32> to vector<16x3xf32>
    %89 = arith.addf %87, %88 : vector<16x3xf32>
    %c0_49 = arith.constant 0 : index
    %c0_50 = arith.constant 0 : index
    %90 = vector.load %arg12[%c0_49, %c0_50] : memref<32x16xbf16, #tpu.memory_space<vmem>>, vector<32x16xbf16>
    %cst_51 = arith.constant dense<0.000000e+00> : vector<1x16xf32>
    %91 = tpu.matmul %66, %90, %cst_51 {dimension_numbers = #tpu.dot_dimension_numbers<[1], [0], [0], [1], [0, 0, 1, 1], [], []>} : vector<1x32xbf16>, vector<32x16xbf16>, vector<1x16xf32> -> vector<1x16xf32>
    %92 = arith.truncf %89 : vector<16x3xf32> to vector<16x3xbf16>
    %c0_52 = arith.constant 0 : index
    %c0_53 = arith.constant 0 : index
    %93 = vector.load %arg11[%c0_52, %c0_53] : memref<3x16xbf16, #tpu.memory_space<vmem>>, vector<3x16xbf16>
    %cst_54 = arith.constant dense<0.000000e+00> : vector<16x16xf32>
    %94 = tpu.matmul %92, %93, %cst_54 {dimension_numbers = #tpu.dot_dimension_numbers<[1], [0], [0], [1], [0, 0, 1, 1], [], []>} : vector<16x3xbf16>, vector<3x16xbf16>, vector<16x16xf32> -> vector<16x16xf32>
    %95 = vector.broadcast %91 : vector<1x16xf32> to vector<16x16xf32>
    %96 = arith.addf %94, %95 : vector<16x16xf32>
    %97 = vector.broadcast %8 : vector<1x16xf32> to vector<16x16xf32>
    %98 = arith.addf %96, %97 : vector<16x16xf32>
    %cst_55 = arith.constant 0.000000e+00 : f32
    %99 = vector.broadcast %cst_55 : f32 to vector<16x16xf32>
    %100 = arith.maximumf %98, %99 : vector<16x16xf32>
    %101 = arith.truncf %100 : vector<16x16xf32> to vector<16x16xbf16>
    %c0_56 = arith.constant 0 : index
    %c0_57 = arith.constant 0 : index
    %102 = vector.load %arg13[%c0_56, %c0_57] : memref<16x8xbf16, #tpu.memory_space<vmem>>, vector<16x8xbf16>
    %cst_58 = arith.constant dense<0.000000e+00> : vector<16x8xf32>
    %103 = tpu.matmul %101, %102, %cst_58 {dimension_numbers = #tpu.dot_dimension_numbers<[1], [0], [0], [1], [0, 0, 1, 1], [], []>} : vector<16x16xbf16>, vector<16x8xbf16>, vector<16x8xf32> -> vector<16x8xf32>
    %104 = vector.broadcast %9 : vector<1x8xf32> to vector<16x8xf32>
    %105 = arith.addf %103, %104 : vector<16x8xf32>
    %cst_59 = arith.constant 0.000000e+00 : f32
    %106 = vector.broadcast %cst_59 : f32 to vector<16x8xf32>
    %107 = arith.maximumf %105, %106 : vector<16x8xf32>
    %108 = arith.truncf %107 : vector<16x8xf32> to vector<16x8xbf16>
    %c0_60 = arith.constant 0 : index
    %c0_61 = arith.constant 0 : index
    %109 = vector.load %arg14[%c0_60, %c0_61] : memref<8x3xbf16, #tpu.memory_space<vmem>>, vector<8x3xbf16>
    %cst_62 = arith.constant dense<0.000000e+00> : vector<16x3xf32>
    %110 = tpu.matmul %108, %109, %cst_62 {dimension_numbers = #tpu.dot_dimension_numbers<[1], [0], [0], [1], [0, 0, 1, 1], [], []>} : vector<16x8xbf16>, vector<8x3xbf16>, vector<16x3xf32> -> vector<16x3xf32>
    %111 = vector.broadcast %10 : vector<1x3xf32> to vector<16x3xf32>
    %112 = arith.addf %110, %111 : vector<16x3xf32>
    %c0_63 = arith.constant 0 : index
    %c0_64 = arith.constant 0 : index
    %113 = vector.load %arg17[%c0_63, %c0_64] : memref<144x32xf32, #tpu.memory_space<vmem>>, vector<64x32xf32>
    tpu.vector_store %arg17[%c0_63, %c0_64], %11 {strides = array<i32>} : memref<144x32xf32, #tpu.memory_space<vmem>>, vector<64x32xf32>,
    %c64 = arith.constant 64 : index
    %c0_65 = arith.constant 0 : index
    %114 = vector.load %arg17[%c64, %c0_65] : memref<144x32xf32, #tpu.memory_space<vmem>>, vector<64x32xf32>
    tpu.vector_store %arg17[%c64, %c0_65], %21 {strides = array<i32>} : memref<144x32xf32, #tpu.memory_space<vmem>>, vector<64x32xf32>,
    %c128_66 = arith.constant 128 : index
    %c0_67 = arith.constant 0 : index
    %115 = vector.load %arg17[%c128_66, %c0_67] : memref<144x32xf32, #tpu.memory_space<vmem>>, vector<16x32xf32>
    tpu.vector_store %arg17[%c128_66, %c0_67], %48 {strides = array<i32>} : memref<144x32xf32, #tpu.memory_space<vmem>>, vector<16x32xf32>,
    %116 = tpu.concatenate %12, %12 in 0 : vector<64x3xf32>, vector<64x3xf32> -> vector<128x3xf32>
    %c0_68 = arith.constant 0 : index
    %c0_69 = arith.constant 0 : index
    %117 = vector.load %arg16[%c0_68, %c0_69] : memref<144x3xf32, #tpu.memory_space<vmem>>, vector<128x3xf32>
    tpu.vector_store %arg16[%c0_68, %c0_69], %116 {strides = array<i32>} : memref<144x3xf32, #tpu.memory_space<vmem>>, vector<128x3xf32>,
    %c128_70 = arith.constant 128 : index
    %c0_71 = arith.constant 0 : index
    %118 = vector.load %arg16[%c128_70, %c0_71] : memref<144x3xf32, #tpu.memory_space<vmem>>, vector<16x3xf32>
    tpu.vector_store %arg16[%c128_70, %c0_71], %112 {strides = array<i32>} : memref<144x3xf32, #tpu.memory_space<vmem>>, vector<16x3xf32>,
    return
  }
  func.func @transform_0(%arg0: i32) -> (i32, i32) {
    %c0_i32 = arith.constant 0 : i32
    %c0_i32_0 = arith.constant 0 : i32
    return %arg0, %c0_i32 : i32, i32
  }
  func.func @transform_1(%arg0: i32) -> (i32, i32) {
    %c0_i32 = arith.constant 0 : i32
    %c0_i32_0 = arith.constant 0 : i32
    return %arg0, %c0_i32 : i32, i32
  }
  func.func @transform_2(%arg0: i32) -> (i32, i32) {
    %c0_i32 = arith.constant 0 : i32
    %c0_i32_0 = arith.constant 0 : i32
    %c0_i32_1 = arith.constant 0 : i32
    return %c0_i32, %c0_i32_0 : i32, i32
  }
  func.func @transform_3(%arg0: i32) -> (i32, i32) {
    %c0_i32 = arith.constant 0 : i32
    %c0_i32_0 = arith.constant 0 : i32
    %c0_i32_1 = arith.constant 0 : i32
    return %c0_i32, %c0_i32_0 : i32, i32
  }
  func.func @transform_4(%arg0: i32) -> (i32, i32) {
    %c0_i32 = arith.constant 0 : i32
    %c0_i32_0 = arith.constant 0 : i32
    %c0_i32_1 = arith.constant 0 : i32
    return %c0_i32, %c0_i32_0 : i32, i32
  }
  func.func @transform_5(%arg0: i32) -> (i32, i32) {
    %c0_i32 = arith.constant 0 : i32
    %c0_i32_0 = arith.constant 0 : i32
    %c0_i32_1 = arith.constant 0 : i32
    return %c0_i32, %c0_i32_0 : i32, i32
  }
  func.func @transform_6(%arg0: i32) -> (i32, i32) {
    %c0_i32 = arith.constant 0 : i32
    %c0_i32_0 = arith.constant 0 : i32
    %c0_i32_1 = arith.constant 0 : i32
    return %c0_i32, %c0_i32_0 : i32, i32
  }
  func.func @transform_7(%arg0: i32) -> (i32, i32) {
    %c0_i32 = arith.constant 0 : i32
    %c0_i32_0 = arith.constant 0 : i32
    %c0_i32_1 = arith.constant 0 : i32
    return %c0_i32, %c0_i32_0 : i32, i32
  }
  func.func @transform_8(%arg0: i32) -> (i32, i32) {
    %c0_i32 = arith.constant 0 : i32
    %c0_i32_0 = arith.constant 0 : i32
    %c0_i32_1 = arith.constant 0 : i32
    return %c0_i32, %c0_i32_0 : i32, i32
  }
  func.func @transform_9(%arg0: i32) -> (i32, i32) {
    %c0_i32 = arith.constant 0 : i32
    %c0_i32_0 = arith.constant 0 : i32
    %c0_i32_1 = arith.constant 0 : i32
    return %c0_i32, %c0_i32_0 : i32, i32
  }
  func.func @transform_10(%arg0: i32) -> (i32, i32) {
    %c0_i32 = arith.constant 0 : i32
    %c0_i32_0 = arith.constant 0 : i32
    %c0_i32_1 = arith.constant 0 : i32
    return %c0_i32, %c0_i32_0 : i32, i32
  }
  func.func @transform_11(%arg0: i32) -> (i32, i32) {
    %c0_i32 = arith.constant 0 : i32
    %c0_i32_0 = arith.constant 0 : i32
    %c0_i32_1 = arith.constant 0 : i32
    return %c0_i32, %c0_i32_0 : i32, i32
  }
  func.func @transform_12(%arg0: i32) -> (i32, i32) {
    %c0_i32 = arith.constant 0 : i32
    %c0_i32_0 = arith.constant 0 : i32
    %c0_i32_1 = arith.constant 0 : i32
    return %c0_i32, %c0_i32_0 : i32, i32
  }
  func.func @transform_13(%arg0: i32) -> (i32, i32) {
    %c0_i32 = arith.constant 0 : i32
    %c0_i32_0 = arith.constant 0 : i32
    %c0_i32_1 = arith.constant 0 : i32
    return %c0_i32, %c0_i32_0 : i32, i32
  }
  func.func @transform_14(%arg0: i32) -> (i32, i32) {
    %c0_i32 = arith.constant 0 : i32
    %c0_i32_0 = arith.constant 0 : i32
    %c0_i32_1 = arith.constant 0 : i32
    return %c0_i32, %c0_i32_0 : i32, i32
  }
  func.func @transform_15(%arg0: i32) -> (i32, i32) {
    %c0_i32 = arith.constant 0 : i32
    %c0_i32_0 = arith.constant 0 : i32
    return %arg0, %c0_i32 : i32, i32
  }
  func.func @transform_16(%arg0: i32) -> (i32, i32) {
    %c0_i32 = arith.constant 0 : i32
    %c0_i32_0 = arith.constant 0 : i32
    return %arg0, %c0_i32 : i32, i32
  }
}

module attributes {stable_mosaic.version = 11 : i64} {
  func.func @_cgb_fused_kernel(%arg0: i32, %arg1: memref<64x3xf32, #tpu.memory_space<vmem>>, %arg2: memref<64x32xf32, #tpu.memory_space<vmem>>, %arg3: memref<32x32xbf16, #tpu.memory_space<vmem>>, %arg4: memref<64x256xbf16, #tpu.memory_space<vmem>>, %arg5: memref<256x64xbf16, #tpu.memory_space<vmem>>, %arg6: memref<64x16xbf16, #tpu.memory_space<vmem>>, %arg7: memref<3x16xbf16, #tpu.memory_space<vmem>>, %arg8: memref<32x16xbf16, #tpu.memory_space<vmem>>, %arg9: memref<16x8xbf16, #tpu.memory_space<vmem>>, %arg10: memref<8x3xbf16, #tpu.memory_space<vmem>>, %arg11: memref<3x16xbf16, #tpu.memory_space<vmem>>, %arg12: memref<32x16xbf16, #tpu.memory_space<vmem>>, %arg13: memref<16x8xbf16, #tpu.memory_space<vmem>>, %arg14: memref<8x3xbf16, #tpu.memory_space<vmem>>, %arg15: memref<1x1536xf32, #tpu.memory_space<vmem>>, %arg16: memref<144x3xf32, #tpu.memory_space<vmem>>, %arg17: memref<144x32xf32, #tpu.memory_space<vmem>>) attributes {dimension_semantics = [#tpu.dimension_semantics<parallel>], iteration_bounds = array<i64: 2>, scalar_prefetch = 0 : i64, scratch_operands = 0 : i64, tpu.core_type = #tpu.core_type<tc>, window_params = [{transform_indices = @transform_0, window_bounds = array<i64: 64, 3>}, {transform_indices = @transform_1, window_bounds = array<i64: 64, 32>}, {pipeline_mode = #tpu.pipeline_mode<synchronous>, transform_indices = @transform_2, window_bounds = array<i64: 32, 32>}, {pipeline_mode = #tpu.pipeline_mode<synchronous>, transform_indices = @transform_3, window_bounds = array<i64: 64, 256>}, {pipeline_mode = #tpu.pipeline_mode<synchronous>, transform_indices = @transform_4, window_bounds = array<i64: 256, 64>}, {pipeline_mode = #tpu.pipeline_mode<synchronous>, transform_indices = @transform_5, window_bounds = array<i64: 64, 16>}, {pipeline_mode = #tpu.pipeline_mode<synchronous>, transform_indices = @transform_6, window_bounds = array<i64: 3, 16>}, {pipeline_mode = #tpu.pipeline_mode<synchronous>, transform_indices = @transform_7, window_bounds = array<i64: 32, 16>}, {pipeline_mode = #tpu.pipeline_mode<synchronous>, transform_indices = @transform_8, window_bounds = array<i64: 16, 8>}, {pipeline_mode = #tpu.pipeline_mode<synchronous>, transform_indices = @transform_9, window_bounds = array<i64: 8, 3>}, {pipeline_mode = #tpu.pipeline_mode<synchronous>, transform_indices = @transform_10, window_bounds = array<i64: 3, 16>}, {pipeline_mode = #tpu.pipeline_mode<synchronous>, transform_indices = @transform_11, window_bounds = array<i64: 32, 16>}, {pipeline_mode = #tpu.pipeline_mode<synchronous>, transform_indices = @transform_12, window_bounds = array<i64: 16, 8>}, {pipeline_mode = #tpu.pipeline_mode<synchronous>, transform_indices = @transform_13, window_bounds = array<i64: 8, 3>}, {pipeline_mode = #tpu.pipeline_mode<synchronous>, transform_indices = @transform_14, window_bounds = array<i64: 1, 1536>}, {transform_indices = @transform_15, window_bounds = array<i64: 144, 3>}, {transform_indices = @transform_16, window_bounds = array<i64: 144, 32>}]} {
    %c0 = arith.constant 0 : index
    %c0_0 = arith.constant 0 : index
    %0 = vector.load %arg15[%c0, %c0_0] : memref<1x1536xf32, #tpu.memory_space<vmem>>, vector<1x32xf32>
    %c0_1 = arith.constant 0 : index
    %c128 = arith.constant 128 : index
    %1 = vector.load %arg15[%c0_1, %c128] : memref<1x1536xf32, #tpu.memory_space<vmem>>, vector<1x32xf32>
    %c0_2 = arith.constant 0 : index
    %c256 = arith.constant 256 : index
    %2 = vector.load %arg15[%c0_2, %c256] : memref<1x1536xf32, #tpu.memory_space<vmem>>, vector<1x256xf32>
    %c0_3 = arith.constant 0 : index
    %c512 = arith.constant 512 : index
    %3 = vector.load %arg15[%c0_3, %c512] : memref<1x1536xf32, #tpu.memory_space<vmem>>, vector<1x64xf32>
    %c0_4 = arith.constant 0 : index
    %c640 = arith.constant 640 : index
    %4 = vector.load %arg15[%c0_4, %c640] : memref<1x1536xf32, #tpu.memory_space<vmem>>, vector<1x16xf32>
    %c0_5 = arith.constant 0 : index
    %c768 = arith.constant 768 : index
    %5 = vector.load %arg15[%c0_5, %c768] : memref<1x1536xf32, #tpu.memory_space<vmem>>, vector<1x16xf32>
    %c0_6 = arith.constant 0 : index
    %c896 = arith.constant 896 : index
    %6 = vector.load %arg15[%c0_6, %c896] : memref<1x1536xf32, #tpu.memory_space<vmem>>, vector<1x8xf32>
    %c0_7 = arith.constant 0 : index
    %c1024 = arith.constant 1024 : index
    %7 = vector.load %arg15[%c0_7, %c1024] : memref<1x1536xf32, #tpu.memory_space<vmem>>, vector<1x3xf32>
    %c0_8 = arith.constant 0 : index
    %c1152 = arith.constant 1152 : index
    %8 = vector.load %arg15[%c0_8, %c1152] : memref<1x1536xf32, #tpu.memory_space<vmem>>, vector<1x16xf32>
    %c0_9 = arith.constant 0 : index
    %c1280 = arith.constant 1280 : index
    %9 = vector.load %arg15[%c0_9, %c1280] : memref<1x1536xf32, #tpu.memory_space<vmem>>, vector<1x8xf32>
    %c0_10 = arith.constant 0 : index
    %c1408 = arith.constant 1408 : index
    %10 = vector.load %arg15[%c0_10, %c1408] : memref<1x1536xf32, #tpu.memory_space<vmem>>, vector<1x3xf32>
    %c0_11 = arith.constant 0 : index
    %c0_12 = arith.constant 0 : index
    %11 = vector.load %arg2[%c0_11, %c0_12] : memref<64x32xf32, #tpu.memory_space<vmem>>, vector<64x32xf32>
    %c0_13 = arith.constant 0 : index
    %c0_14 = arith.constant 0 : index
    %12 = vector.load %arg1[%c0_13, %c0_14] : memref<64x3xf32, #tpu.memory_space<vmem>>, vector<64x3xf32>
    %13 = arith.truncf %11 : vector<64x32xf32> to vector<64x32xbf16>
    %c0_15 = arith.constant 0 : index
    %c0_16 = arith.constant 0 : index
    %14 = vector.load %arg3[%c0_15, %c0_16] : memref<32x32xbf16, #tpu.memory_space<vmem>>, vector<32x32xbf16>
    %cst = arith.constant dense<0.000000e+00> : vector<64x32xf32>
    %15 = tpu.matmul %13, %14, %cst {dimension_numbers = #tpu.dot_dimension_numbers<[1], [0], [0], [1], [0, 0, 1, 1], [], []>} : vector<64x32xbf16>, vector<32x32xbf16>, vector<64x32xf32> -> vector<64x32xf32>
    %16 = vector.broadcast %0 : vector<1x32xf32> to vector<64x32xf32>
    %17 = arith.mulf %15, %16 : vector<64x32xf32>
    %18 = vector.broadcast %1 : vector<1x32xf32> to vector<64x32xf32>
    %19 = arith.addf %17, %18 : vector<64x32xf32>
    %cst_17 = arith.constant 0.000000e+00 : f32
    %20 = vector.broadcast %cst_17 : f32 to vector<64x32xf32>
    %21 = arith.maximumf %19, %20 : vector<64x32xf32>
    %cst_18 = arith.constant dense<0xFF800000> : vector<32xf32>
    %22 = vector.multi_reduction <maximumf>, %21, %cst_18 [0] : vector<64x32xf32> to vector<32xf32>
    %23 = vector.shape_cast %22 : vector<32xf32> to vector<1x32xf32>
    %24 = vector.broadcast %23 : vector<1x32xf32> to vector<64x32xf32>
    %25 = arith.subf %24, %11 : vector<64x32xf32>
    %26 = tpu.transpose %25, [1, 0] : vector<64x32xf32> -> vector<32x64xf32>
    %27 = arith.truncf %26 : vector<32x64xf32> to vector<32x64xbf16>
    %c0_19 = arith.constant 0 : index
    %c0_20 = arith.constant 0 : index
    %28 = vector.load %arg4[%c0_19, %c0_20] : memref<64x256xbf16, #tpu.memory_space<vmem>>, vector<64x256xbf16>
    %cst_21 = arith.constant dense<0.000000e+00> : vector<32x256xf32>
    %29 = tpu.matmul %27, %28, %cst_21 {dimension_numbers = #tpu.dot_dimension_numbers<[1], [0], [0], [1], [0, 0, 1, 1], [], []>} : vector<32x64xbf16>, vector<64x256xbf16>, vector<32x256xf32> -> vector<32x256xf32>
    %30 = vector.broadcast %2 : vector<1x256xf32> to vector<32x256xf32>
    %31 = arith.addf %29, %30 : vector<32x256xf32>
    %cst_22 = arith.constant 2.000000e-01 : f32
    %32 = vector.broadcast %cst_22 : f32 to vector<32x256xf32>
    %33 = arith.mulf %32, %31 : vector<32x256xf32>
    %34 = arith.maximumf %31, %33 : vector<32x256xf32>
    %35 = arith.truncf %34 : vector<32x256xf32> to vector<32x256xbf16>
    %c0_23 = arith.constant 0 : index
    %c0_24 = arith.constant 0 : index
    %36 = vector.load %arg5[%c0_23, %c0_24] : memref<256x64xbf16, #tpu.memory_space<vmem>>, vector<256x64xbf16>
    %cst_25 = arith.constant dense<0.000000e+00> : vector<32x64xf32>
    %37 = tpu.matmul %35, %36, %cst_25 {dimension_numbers = #tpu.dot_dimension_numbers<[1], [0], [0], [1], [0, 0, 1, 1], [], []>} : vector<32x256xbf16>, vector<256x64xbf16>, vector<32x64xf32> -> vector<32x64xf32>
    %38 = vector.broadcast %3 : vector<1x64xf32> to vector<32x64xf32>
    %39 = arith.addf %37, %38 : vector<32x64xf32>
    %cst_26 = arith.constant 2.000000e-01 : f32
    %40 = vector.broadcast %cst_26 : f32 to vector<32x64xf32>
    %41 = arith.mulf %40, %39 : vector<32x64xf32>
    %42 = arith.maximumf %39, %41 : vector<32x64xf32>
    %43 = arith.truncf %42 : vector<32x64xf32> to vector<32x64xbf16>
    %c0_27 = arith.constant 0 : index
    %c0_28 = arith.constant 0 : index
    %44 = vector.load %arg6[%c0_27, %c0_28] : memref<64x16xbf16, #tpu.memory_space<vmem>>, vector<64x16xbf16>
    %cst_29 = arith.constant dense<0.000000e+00> : vector<32x16xf32>
    %45 = tpu.matmul %43, %44, %cst_29 {dimension_numbers = #tpu.dot_dimension_numbers<[1], [0], [0], [1], [0, 0, 1, 1], [], []>} : vector<32x64xbf16>, vector<64x16xbf16>, vector<32x16xf32> -> vector<32x16xf32>
    %46 = vector.broadcast %4 : vector<1x16xf32> to vector<32x16xf32>
    %47 = arith.addf %45, %46 : vector<32x16xf32>
    %48 = tpu.transpose %47, [1, 0] : vector<32x16xf32> -> vector<16x32xf32>
    %cst_30 = arith.constant 0.176776692 : f32
    %49 = vector.broadcast %cst_30 : f32 to vector<16x32xf32>
    %50 = arith.mulf %48, %49 : vector<16x32xf32>
    %51 = arith.truncf %50 : vector<16x32xf32> to vector<16x32xbf16>
    %cst_31 = arith.constant dense<0.000000e+00> : vector<16x64xf32>
    %52 = tpu.matmul %51, %13, %cst_31 {dimension_numbers = #tpu.dot_dimension_numbers<[1], [1], [0], [0], [0, 0, 1, 0], [], []>} : vector<16x32xbf16>, vector<64x32xbf16>, vector<16x64xf32> -> vector<16x64xf32>
    %cst_32 = arith.constant dense<0xFF800000> : vector<16xf32>
    %53 = vector.multi_reduction <maximumf>, %52, %cst_32 [1] : vector<16x64xf32> to vector<16xf32>
    %54 = vector.shape_cast %53 : vector<16xf32> to vector<16x1xf32>
    %55 = vector.broadcast %54 : vector<16x1xf32> to vector<16x64xf32>
    %56 = arith.subf %52, %55 : vector<16x64xf32>
    %57 = math.exp %56 : vector<16x64xf32>
    %cst_33 = arith.constant dense<0.000000e+00> : vector<16xf32>
    %58 = vector.multi_reduction <add>, %57, %cst_33 [1] : vector<16x64xf32> to vector<16xf32>
    %59 = vector.shape_cast %58 : vector<16xf32> to vector<16x1xf32>
    %60 = tpu.reciprocal %59 {approx = true} : vector<16x1xf32> -> vector<16x1xf32>
    %61 = vector.broadcast %60 : vector<16x1xf32> to vector<16x64xf32>
    %62 = arith.mulf %57, %61 : vector<16x64xf32>
    %63 = arith.truncf %62 : vector<16x64xf32> to vector<16x64xbf16>
    %64 = arith.truncf %12 : vector<64x3xf32> to vector<64x3xbf16>
    %cst_34 = arith.constant dense<0.000000e+00> : vector<16x3xf32>
    %65 = tpu.matmul %63, %64, %cst_34 {dimension_numbers = #tpu.dot_dimension_numbers<[1], [0], [0], [1], [0, 0, 1, 1], [], []>} : vector<16x64xbf16>, vector<64x3xbf16>, vector<16x3xf32> -> vector<16x3xf32>
    %66 = arith.truncf %23 : vector<1x32xf32> to vector<1x32xbf16>
    %c0_35 = arith.constant 0 : index
    %c0_36 = arith.constant 0 : index
    %67 = vector.load %arg8[%c0_35, %c0_36] : memref<32x16xbf16, #tpu.memory_space<vmem>>, vector<32x16xbf16>
    %cst_37 = arith.constant dense<0.000000e+00> : vector<1x16xf32>
    %68 = tpu.matmul %66, %67, %cst_37 {dimension_numbers = #tpu.dot_dimension_numbers<[1], [0], [0], [1], [0, 0, 1, 1], [], []>} : vector<1x32xbf16>, vector<32x16xbf16>, vector<1x16xf32> -> vector<1x16xf32>
    %69 = arith.truncf %65 : vector<16x3xf32> to vector<16x3xbf16>
    %c0_38 = arith.constant 0 : index
    %c0_39 = arith.constant 0 : index
    %70 = vector.load %arg7[%c0_38, %c0_39] : memref<3x16xbf16, #tpu.memory_space<vmem>>, vector<3x16xbf16>
    %cst_40 = arith.constant dense<0.000000e+00> : vector<16x16xf32>
    %71 = tpu.matmul %69, %70, %cst_40 {dimension_numbers = #tpu.dot_dimension_numbers<[1], [0], [0], [1], [0, 0, 1, 1], [], []>} : vector<16x3xbf16>, vector<3x16xbf16>, vector<16x16xf32> -> vector<16x16xf32>
    %72 = vector.broadcast %68 : vector<1x16xf32> to vector<16x16xf32>
    %73 = arith.addf %71, %72 : vector<16x16xf32>
    %74 = vector.broadcast %5 : vector<1x16xf32> to vector<16x16xf32>
    %75 = arith.addf %73, %74 : vector<16x16xf32>
    %cst_41 = arith.constant 0.000000e+00 : f32
    %76 = vector.broadcast %cst_41 : f32 to vector<16x16xf32>
    %77 = arith.maximumf %75, %76 : vector<16x16xf32>
    %78 = arith.truncf %77 : vector<16x16xf32> to vector<16x16xbf16>
    %c0_42 = arith.constant 0 : index
    %c0_43 = arith.constant 0 : index
    %79 = vector.load %arg9[%c0_42, %c0_43] : memref<16x8xbf16, #tpu.memory_space<vmem>>, vector<16x8xbf16>
    %cst_44 = arith.constant dense<0.000000e+00> : vector<16x8xf32>
    %80 = tpu.matmul %78, %79, %cst_44 {dimension_numbers = #tpu.dot_dimension_numbers<[1], [0], [0], [1], [0, 0, 1, 1], [], []>} : vector<16x16xbf16>, vector<16x8xbf16>, vector<16x8xf32> -> vector<16x8xf32>
    %81 = vector.broadcast %6 : vector<1x8xf32> to vector<16x8xf32>
    %82 = arith.addf %80, %81 : vector<16x8xf32>
    %cst_45 = arith.constant 0.000000e+00 : f32
    %83 = vector.broadcast %cst_45 : f32 to vector<16x8xf32>
    %84 = arith.maximumf %82, %83 : vector<16x8xf32>
    %85 = arith.truncf %84 : vector<16x8xf32> to vector<16x8xbf16>
    %c0_46 = arith.constant 0 : index
    %c0_47 = arith.constant 0 : index
    %86 = vector.load %arg10[%c0_46, %c0_47] : memref<8x3xbf16, #tpu.memory_space<vmem>>, vector<8x3xbf16>
    %cst_48 = arith.constant dense<0.000000e+00> : vector<16x3xf32>
    %87 = tpu.matmul %85, %86, %cst_48 {dimension_numbers = #tpu.dot_dimension_numbers<[1], [0], [0], [1], [0, 0, 1, 1], [], []>} : vector<16x8xbf16>, vector<8x3xbf16>, vector<16x3xf32> -> vector<16x3xf32>
    %88 = vector.broadcast %7 : vector<1x3xf32> to vector<16x3xf32>
    %89 = arith.addf %87, %88 : vector<16x3xf32>
    %c0_49 = arith.constant 0 : index
    %c0_50 = arith.constant 0 : index
    %90 = vector.load %arg12[%c0_49, %c0_50] : memref<32x16xbf16, #tpu.memory_space<vmem>>, vector<32x16xbf16>
    %cst_51 = arith.constant dense<0.000000e+00> : vector<1x16xf32>
    %91 = tpu.matmul %66, %90, %cst_51 {dimension_numbers = #tpu.dot_dimension_numbers<[1], [0], [0], [1], [0, 0, 1, 1], [], []>} : vector<1x32xbf16>, vector<32x16xbf16>, vector<1x16xf32> -> vector<1x16xf32>
    %92 = arith.truncf %89 : vector<16x3xf32> to vector<16x3xbf16>
    %c0_52 = arith.constant 0 : index
    %c0_53 = arith.constant 0 : index
    %93 = vector.load %arg11[%c0_52, %c0_53] : memref<3x16xbf16, #tpu.memory_space<vmem>>, vector<3x16xbf16>
    %cst_54 = arith.constant dense<0.000000e+00> : vector<16x16xf32>
    %94 = tpu.matmul %92, %93, %cst_54 {dimension_numbers = #tpu.dot_dimension_numbers<[1], [0], [0], [1], [0, 0, 1, 1], [], []>} : vector<16x3xbf16>, vector<3x16xbf16>, vector<16x16xf32> -> vector<16x16xf32>
    %95 = vector.broadcast %91 : vector<1x16xf32> to vector<16x16xf32>
    %96 = arith.addf %94, %95 : vector<16x16xf32>
    %97 = vector.broadcast %8 : vector<1x16xf32> to vector<16x16xf32>
    %98 = arith.addf %96, %97 : vector<16x16xf32>
    %cst_55 = arith.constant 0.000000e+00 : f32
    %99 = vector.broadcast %cst_55 : f32 to vector<16x16xf32>
    %100 = arith.maximumf %98, %99 : vector<16x16xf32>
    %101 = arith.truncf %100 : vector<16x16xf32> to vector<16x16xbf16>
    %c0_56 = arith.constant 0 : index
    %c0_57 = arith.constant 0 : index
    %102 = vector.load %arg13[%c0_56, %c0_57] : memref<16x8xbf16, #tpu.memory_space<vmem>>, vector<16x8xbf16>
    %cst_58 = arith.constant dense<0.000000e+00> : vector<16x8xf32>
    %103 = tpu.matmul %101, %102, %cst_58 {dimension_numbers = #tpu.dot_dimension_numbers<[1], [0], [0], [1], [0, 0, 1, 1], [], []>} : vector<16x16xbf16>, vector<16x8xbf16>, vector<16x8xf32> -> vector<16x8xf32>
    %104 = vector.broadcast %9 : vector<1x8xf32> to vector<16x8xf32>
    %105 = arith.addf %103, %104 : vector<16x8xf32>
    %cst_59 = arith.constant 0.000000e+00 : f32
    %106 = vector.broadcast %cst_59 : f32 to vector<16x8xf32>
    %107 = arith.maximumf %105, %106 : vector<16x8xf32>
    %108 = arith.truncf %107 : vector<16x8xf32> to vector<16x8xbf16>
    %c0_60 = arith.constant 0 : index
    %c0_61 = arith.constant 0 : index
    %109 = vector.load %arg14[%c0_60, %c0_61] : memref<8x3xbf16, #tpu.memory_space<vmem>>, vector<8x3xbf16>
    %cst_62 = arith.constant dense<0.000000e+00> : vector<16x3xf32>
    %110 = tpu.matmul %108, %109, %cst_62 {dimension_numbers = #tpu.dot_dimension_numbers<[1], [0], [0], [1], [0, 0, 1, 1], [], []>} : vector<16x8xbf16>, vector<8x3xbf16>, vector<16x3xf32> -> vector<16x3xf32>
    %111 = vector.broadcast %10 : vector<1x3xf32> to vector<16x3xf32>
    %112 = arith.addf %110, %111 : vector<16x3xf32>
    %c0_63 = arith.constant 0 : index
    %c0_64 = arith.constant 0 : index
    %113 = vector.load %arg17[%c0_63, %c0_64] : memref<144x32xf32, #tpu.memory_space<vmem>>, vector<64x32xf32>
    tpu.vector_store %arg17[%c0_63, %c0_64], %11 {strides = array<i32>} : memref<144x32xf32, #tpu.memory_space<vmem>>, vector<64x32xf32>,
    %c64 = arith.constant 64 : index
    %c0_65 = arith.constant 0 : index
    %114 = vector.load %arg17[%c64, %c0_65] : memref<144x32xf32, #tpu.memory_space<vmem>>, vector<64x32xf32>
    tpu.vector_store %arg17[%c64, %c0_65], %21 {strides = array<i32>} : memref<144x32xf32, #tpu.memory_space<vmem>>, vector<64x32xf32>,
    %c128_66 = arith.constant 128 : index
    %c0_67 = arith.constant 0 : index
    %115 = vector.load %arg17[%c128_66, %c0_67] : memref<144x32xf32, #tpu.memory_space<vmem>>, vector<16x32xf32>
    tpu.vector_store %arg17[%c128_66, %c0_67], %48 {strides = array<i32>} : memref<144x32xf32, #tpu.memory_space<vmem>>, vector<16x32xf32>,
    %116 = tpu.concatenate %12, %12 in 0 : vector<64x3xf32>, vector<64x3xf32> -> vector<128x3xf32>
    %c0_68 = arith.constant 0 : index
    %c0_69 = arith.constant 0 : index
    %117 = vector.load %arg16[%c0_68, %c0_69] : memref<144x3xf32, #tpu.memory_space<vmem>>, vector<128x3xf32>
    tpu.vector_store %arg16[%c0_68, %c0_69], %116 {strides = array<i32>} : memref<144x3xf32, #tpu.memory_space<vmem>>, vector<128x3xf32>,
    %c128_70 = arith.constant 128 : index
    %c0_71 = arith.constant 0 : index
    %118 = vector.load %arg16[%c128_70, %c0_71] : memref<144x3xf32, #tpu.memory_space<vmem>>, vector<16x3xf32>
    tpu.vector_store %arg16[%c128_70, %c0_71], %112 {strides = array<i32>} : memref<144x3xf32, #tpu.memory_space<vmem>>, vector<16x3xf32>,
    return
  }
  func.func @transform_0(%arg0: i32) -> (i32, i32) {
    %c0_i32 = arith.constant 0 : i32
    %c0_i32_0 = arith.constant 0 : i32
    return %arg0, %c0_i32 : i32, i32
  }
  func.func @transform_1(%arg0: i32) -> (i32, i32) {
    %c0_i32 = arith.constant 0 : i32
    %c0_i32_0 = arith.constant 0 : i32
    return %arg0, %c0_i32 : i32, i32
  }
  func.func @transform_2(%arg0: i32) -> (i32, i32) {
    %c0_i32 = arith.constant 0 : i32
    %c0_i32_0 = arith.constant 0 : i32
    %c0_i32_1 = arith.constant 0 : i32
    return %c0_i32, %c0_i32_0 : i32, i32
  }
  func.func @transform_3(%arg0: i32) -> (i32, i32) {
    %c0_i32 = arith.constant 0 : i32
    %c0_i32_0 = arith.constant 0 : i32
    %c0_i32_1 = arith.constant 0 : i32
    return %c0_i32, %c0_i32_0 : i32, i32
  }
  func.func @transform_4(%arg0: i32) -> (i32, i32) {
    %c0_i32 = arith.constant 0 : i32
    %c0_i32_0 = arith.constant 0 : i32
    %c0_i32_1 = arith.constant 0 : i32
    return %c0_i32, %c0_i32_0 : i32, i32
  }
  func.func @transform_5(%arg0: i32) -> (i32, i32) {
    %c0_i32 = arith.constant 0 : i32
    %c0_i32_0 = arith.constant 0 : i32
    %c0_i32_1 = arith.constant 0 : i32
    return %c0_i32, %c0_i32_0 : i32, i32
  }
  func.func @transform_6(%arg0: i32) -> (i32, i32) {
    %c0_i32 = arith.constant 0 : i32
    %c0_i32_0 = arith.constant 0 : i32
    %c0_i32_1 = arith.constant 0 : i32
    return %c0_i32, %c0_i32_0 : i32, i32
  }
  func.func @transform_7(%arg0: i32) -> (i32, i32) {
    %c0_i32 = arith.constant 0 : i32
    %c0_i32_0 = arith.constant 0 : i32
    %c0_i32_1 = arith.constant 0 : i32
    return %c0_i32, %c0_i32_0 : i32, i32
  }
  func.func @transform_8(%arg0: i32) -> (i32, i32) {
    %c0_i32 = arith.constant 0 : i32
    %c0_i32_0 = arith.constant 0 : i32
    %c0_i32_1 = arith.constant 0 : i32
    return %c0_i32, %c0_i32_0 : i32, i32
  }
  func.func @transform_9(%arg0: i32) -> (i32, i32) {
    %c0_i32 = arith.constant 0 : i32
    %c0_i32_0 = arith.constant 0 : i32
    %c0_i32_1 = arith.constant 0 : i32
    return %c0_i32, %c0_i32_0 : i32, i32
  }
  func.func @transform_10(%arg0: i32) -> (i32, i32) {
    %c0_i32 = arith.constant 0 : i32
    %c0_i32_0 = arith.constant 0 : i32
    %c0_i32_1 = arith.constant 0 : i32
    return %c0_i32, %c0_i32_0 : i32, i32
  }
  func.func @transform_11(%arg0: i32) -> (i32, i32) {
    %c0_i32 = arith.constant 0 : i32
    %c0_i32_0 = arith.constant 0 : i32
    %c0_i32_1 = arith.constant 0 : i32
    return %c0_i32, %c0_i32_0 : i32, i32
  }
  func.func @transform_12(%arg0: i32) -> (i32, i32) {
    %c0_i32 = arith.constant 0 : i32
    %c0_i32_0 = arith.constant 0 : i32
    %c0_i32_1 = arith.constant 0 : i32
    return %c0_i32, %c0_i32_0 : i32, i32
  }
  func.func @transform_13(%arg0: i32) -> (i32, i32) {
    %c0_i32 = arith.constant 0 : i32
    %c0_i32_0 = arith.constant 0 : i32
    %c0_i32_1 = arith.constant 0 : i32
    return %c0_i32, %c0_i32_0 : i32, i32
  }
  func.func @transform_14(%arg0: i32) -> (i32, i32) {
    %c0_i32 = arith.constant 0 : i32
    %c0_i32_0 = arith.constant 0 : i32
    %c0_i32_1 = arith.constant 0 : i32
    return %c0_i32, %c0_i32_0 : i32, i32
  }
  func.func @transform_15(%arg0: i32) -> (i32, i32) {
    %c0_i32 = arith.constant 0 : i32
    %c0_i32_0 = arith.constant 0 : i32
    return %arg0, %c0_i32 : i32, i32
  }
  func.func @transform_16(%arg0: i32) -> (i32, i32) {
    %c0_i32 = arith.constant 0 : i32
    %c0_i32_0 = arith.constant 0 : i32
    return %arg0, %c0_i32 : i32, i32
  }
}

</mosaic_0001>

<llo_original>
// kernel: custom-call
$region0: #{custom-call}
  %s0 = inlined_call_operand.vmem [shape: f32[1536], index: 0, kind: output, shape index: {}]

// kernel: cgb_generate_centroids.1
$region0: #{cgb_generate_centroids.1}
  #allocation0 [shape = 'u32[]', space=smem, size = 0x4, offset = 0x4, fixed_abs, tag = 'smem constant byte address 0x4 - core index']
  #allocation1 [shape = 'u32[144,128]{1,0:T(1,128)}', space=vmem, size = 0x12000, scoped, tag = 'internal scratch']
  %s0 = inlined_call_operand.vmem [shape: f32[128,3], index: 0, kind: input, shape index: {}]
  %s1 = inlined_call_operand.vmem [shape: f32[128,32], index: 1, kind: input, shape index: {}]
  %s2 = inlined_call_operand.vmem [shape: bf16[32,32], index: 2, kind: input, shape index: {}]
  %s3 = inlined_call_operand.vmem [shape: bf16[64,256], index: 3, kind: input, shape index: {}]
  %s4 = inlined_call_operand.vmem [shape: bf16[256,64], index: 4, kind: input, shape index: {}]
  %s5 = inlined_call_operand.vmem [shape: bf16[64,16], index: 5, kind: input, shape index: {}]
  %s6 = inlined_call_operand.vmem [shape: bf16[3,16], index: 6, kind: input, shape index: {}]
  %s7 = inlined_call_operand.vmem [shape: bf16[32,16], index: 7, kind: input, shape index: {}]
  %s8 = inlined_call_operand.vmem [shape: bf16[16,8], index: 8, kind: input, shape index: {}]
  %s9 = inlined_call_operand.vmem [shape: bf16[8,3], index: 9, kind: input, shape index: {}]
  %s10 = inlined_call_operand.vmem [shape: bf16[3,16], index: 10, kind: input, shape index: {}]
  %s11 = inlined_call_operand.vmem [shape: bf16[32,16], index: 11, kind: input, shape index: {}]
  %s12 = inlined_call_operand.vmem [shape: bf16[16,8], index: 12, kind: input, shape index: {}]
  %s13 = inlined_call_operand.vmem [shape: bf16[8,3], index: 13, kind: input, shape index: {}]
  %s14 = inlined_call_operand.vmem [shape: f32[1,1536], index: 14, kind: input, shape index: {}]
  %s15 = inlined_call_operand.vmem [shape: f32[288,3], index: 15, kind: output, shape index: {0}]
  %s16 = inlined_call_operand.vmem [shape: f32[288,32], index: 16, kind: output, shape index: {1}]
  %17 = xla_tuple %s15, %s16
  %s18 = sld [smem:[#allocation0]]
  $region101: #{cgb_generate_centroids.1} parent=0
    _
  %s20 = ssub.s32 1, %s18
  %s21 = scalar_select 0, %s20, %s18
  loop: start=0, step=1, limit=4
  $region2: #{cgb_generate_centroids.1} parent=0 // loop_pre_header
    _
  $region3: #{cgb_generate_centroids.1} parent=0 // loop_header
    %s23 = sphi 0, %s27
    %p24 = scmp.ge.s32.totalorder %s23, 4
    %s33 = sphi 0, %s35
    %s36 = sphi 0, %s33
    %s37 = sphi 0, %s36
    %s53 = sphi 0, %s37
    %s59 = sphi 0, %s61
    %s62 = sphi 0, %s59
    %s63 = sphi 0, %s62
    %s79 = sphi 0, %s63
    %s83 = sphi 0, %s83
    %s85 = sphi 0, %s83
    %s86 = sphi 0, %s85
    %s100 = sphi 0, %s86
    %s104 = sphi 0, %s104
    %s106 = sphi 0, %s104
    %s107 = sphi 0, %s106
    %s121 = sphi 0, %s107
    %s125 = sphi 0, %s125
    %s127 = sphi 0, %s125
    %s128 = sphi 0, %s127
    %s142 = sphi 0, %s128
    %s146 = sphi 0, %s146
    %s148 = sphi 0, %s146
    %s149 = sphi 0, %s148
    %s163 = sphi 0, %s149
    %s167 = sphi 0, %s167
    %s169 = sphi 0, %s167
    %s170 = sphi 0, %s169
    %s184 = sphi 0, %s170
    %s188 = sphi 0, %s188
    %s190 = sphi 0, %s188
    %s191 = sphi 0, %s190
    %s205 = sphi 0, %s191
    %s209 = sphi 0, %s209
    %s211 = sphi 0, %s209
    %s212 = sphi 0, %s211
    %s226 = sphi 0, %s212
    %s230 = sphi 0, %s230
    %s232 = sphi 0, %s230
    %s233 = sphi 0, %s232
    %s247 = sphi 0, %s233
    %s251 = sphi 0, %s251
    %s253 = sphi 0, %s251
    %s254 = sphi 0, %s253
    %s268 = sphi 0, %s254
    %s272 = sphi 0, %s272
    %s274 = sphi 0, %s272
    %s275 = sphi 0, %s274
    %s289 = sphi 0, %s275
    %s293 = sphi 0, %s293
    %s295 = sphi 0, %s293
    %s296 = sphi 0, %s295
    %s310 = sphi 0, %s296
    %s314 = sphi 0, %s314
    %s316 = sphi 0, %s314
    %s317 = sphi 0, %s316
    %s331 = sphi 0, %s317
    %s335 = sphi 0, %s335
    %s337 = sphi 0, %s335
    %s338 = sphi 0, %s337
    %s352 = sphi 0, %s338
    %s358 = sphi 0, %s360
    %s361 = sphi 0, %s358
    %s362 = sphi 0, %s361
    %s378 = sphi 0, %s362
    %s384 = sphi 0, %s386
    %s387 = sphi 0, %s384
    %s388 = sphi 0, %s387
    %s404 = sphi 0, %s388
  $region4: #{cgb_generate_centroids.1} parent=0 // loop_header_branch
    %26 = sbr.rel (%p24) target = $region8
  $region5: #{cgb_generate_centroids.1} parent=0 // loop_body
    %s28 = ssub.s32 %s23, 1
    %s29 = ssub.s32 %s23, 2
    %s30 = sadd.s32 %s23, 1
    %s31 = ssub.s32 %s23, %s30
    %p32 = scmp.eq.s32.totalorder %s31, 0
    %s34 = sadd.s32 %s33, 1
    %s35 = scalar_select %p32, %s33, %s34
    %p38 = pneg %p32
    %p39 = scmp.eq.s32.totalorder %s23, 1
    %p40 = por %p38, %p39
    %p41 = scmp.ne.s32.totalorder %s33, %s36
    %p42 = scmp.eq.s32.totalorder %s23, 0
    %p43 = por %p41, %p42
    %p44 = scmp.ne.s32.totalorder %s33, %s36
    %p45 = scmp.eq.s32.totalorder %s28, 1
    %p46 = por %p44, %p45
    %p47 = scmp.ne.s32.totalorder %s36, %s37
    %p48 = scmp.eq.s32.totalorder %s28, 0
    %p49 = por %p47, %p48
    %p50 = scmp.ne.s32.totalorder %s36, %s37
    %p51 = scmp.eq.s32.totalorder %s29, 1
    %p52 = por %p50, %p51
    %p54 = scmp.ne.s32.totalorder %s37, %s53
    %p55 = scmp.eq.s32.totalorder %s29, 0
    %p56 = por %p54, %p55
    %s57 = ssub.s32 %s23, %s30
    %p58 = scmp.eq.s32.totalorder %s57, 0
    %s60 = sadd.s32 %s59, 1
    %s61 = scalar_select %p58, %s59, %s60
    %p64 = pneg %p58
    %p65 = scmp.eq.s32.totalorder %s23, 1
    %p66 = por %p64, %p65
    %p67 = scmp.ne.s32.totalorder %s59, %s62
    %p68 = scmp.eq.s32.totalorder %s23, 0
    %p69 = por %p67, %p68
    %p70 = scmp.ne.s32.totalorder %s59, %s62
    %p71 = scmp.eq.s32.totalorder %s28, 1
    %p72 = por %p70, %p71
    %p73 = scmp.ne.s32.totalorder %s62, %s63
    %p74 = scmp.eq.s32.totalorder %s28, 0
    %p75 = por %p73, %p74
    %p76 = scmp.ne.s32.totalorder %s62, %s63
    %p77 = scmp.eq.s32.totalorder %s29, 1
    %p78 = por %p76, %p77
    %p80 = scmp.ne.s32.totalorder %s63, %s79
    %p81 = scmp.eq.s32.totalorder %s29, 0
    %p82 = por %p80, %p81
    %s84 = sadd.s32 %s83, 1
    %p87 = scmp.eq.s32.totalorder %s23, 1
    %p88 = scmp.ne.s32.totalorder %s83, %s85
    %p89 = scmp.eq.s32.totalorder %s23, 0
    %p90 = por %p88, %p89
    %p91 = scmp.ne.s32.totalorder %s83, %s85
    %p92 = scmp.eq.s32.totalorder %s28, 1
    %p93 = por %p91, %p92
    %p94 = scmp.ne.s32.totalorder %s85, %s86
    %p95 = scmp.eq.s32.totalorder %s28, 0
    %p96 = por %p94, %p95
    %p97 = scmp.ne.s32.totalorder %s85, %s86
    %p98 = scmp.eq.s32.totalorder %s29, 1
    %p99 = por %p97, %p98
    %p101 = scmp.ne.s32.totalorder %s86, %s100
    %p102 = scmp.eq.s32.totalorder %s29, 0
    %p103 = por %p101, %p102
    %s105 = sadd.s32 %s104, 1
    %p108 = scmp.eq.s32.totalorder %s23, 1
    %p109 = scmp.ne.s32.totalorder %s104, %s106
    %p110 = scmp.eq.s32.totalorder %s23, 0
    %p111 = por %p109, %p110
    %p112 = scmp.ne.s32.totalorder %s104, %s106
    %p113 = scmp.eq.s32.totalorder %s28, 1
    %p114 = por %p112, %p113
    %p115 = scmp.ne.s32.totalorder %s106, %s107
    %p116 = scmp.eq.s32.totalorder %s28, 0
    %p117 = por %p115, %p116
    %p118 = scmp.ne.s32.totalorder %s106, %s107
    %p119 = scmp.eq.s32.totalorder %s29, 1
    %p120 = por %p118, %p119
    %p122 = scmp.ne.s32.totalorder %s107, %s121
    %p123 = scmp.eq.s32.totalorder %s29, 0
    %p124 = por %p122, %p123
    %s126 = sadd.s32 %s125, 1
    %p129 = scmp.eq.s32.totalorder %s23, 1
    %p130 = scmp.ne.s32.totalorder %s125, %s127
    %p131 = scmp.eq.s32.totalorder %s23, 0
    %p132 = por %p130, %p131
    %p133 = scmp.ne.s32.totalorder %s125, %s127
    %p134 = scmp.eq.s32.totalorder %s28, 1
    %p135 = por %p133, %p134
    %p136 = scmp.ne.s32.totalorder %s127, %s128
    %p137 = scmp.eq.s32.totalorder %s28, 0
    %p138 = por %p136, %p137
    %p139 = scmp.ne.s32.totalorder %s127, %s128
    %p140 = scmp.eq.s32.totalorder %s29, 1
    %p141 = por %p139, %p140
    %p143 = scmp.ne.s32.totalorder %s128, %s142
    %p144 = scmp.eq.s32.totalorder %s29, 0
    %p145 = por %p143, %p144
    %s147 = sadd.s32 %s146, 1
    %p150 = scmp.eq.s32.totalorder %s23, 1
    %p151 = scmp.ne.s32.totalorder %s146, %s148
    %p152 = scmp.eq.s32.totalorder %s23, 0
    %p153 = por %p151, %p152
    %p154 = scmp.ne.s32.totalorder %s146, %s148
    %p155 = scmp.eq.s32.totalorder %s28, 1
    %p156 = por %p154, %p155
    %p157 = scmp.ne.s32.totalorder %s148, %s149
    %p158 = scmp.eq.s32.totalorder %s28, 0
    %p159 = por %p157, %p158
    %p160 = scmp.ne.s32.totalorder %s148, %s149
    %p161 = scmp.eq.s32.totalorder %s29, 1
    %p162 = por %p160, %p161
    %p164 = scmp.ne.s32.totalorder %s149, %s163
    %p165 = scmp.eq.s32.totalorder %s29, 0
    %p166 = por %p164, %p165
    %s168 = sadd.s32 %s167, 1
    %p171 = scmp.eq.s32.totalorder %s23, 1
    %p172 = scmp.ne.s32.totalorder %s167, %s169
    %p173 = scmp.eq.s32.totalorder %s23, 0
    %p174 = por %p172, %p173
    %p175 = scmp.ne.s32.totalorder %s167, %s169
    %p176 = scmp.eq.s32.totalorder %s28, 1
    %p177 = por %p175, %p176
    %p178 = scmp.ne.s32.totalorder %s169, %s170
    %p179 = scmp.eq.s32.totalorder %s28, 0
    %p180 = por %p178, %p179
    %p181 = scmp.ne.s32.totalorder %s169, %s170
    %p182 = scmp.eq.s32.totalorder %s29, 1
    %p183 = por %p181, %p182
    %p185 = scmp.ne.s32.totalorder %s170, %s184
    %p186 = scmp.eq.s32.totalorder %s29, 0
    %p187 = por %p185, %p186
    %s189 = sadd.s32 %s188, 1
    %p192 = scmp.eq.s32.totalorder %s23, 1
    %p193 = scmp.ne.s32.totalorder %s188, %s190
    %p194 = scmp.eq.s32.totalorder %s23, 0
    %p195 = por %p193, %p194
    %p196 = scmp.ne.s32.totalorder %s188, %s190
    %p197 = scmp.eq.s32.totalorder %s28, 1
    %p198 = por %p196, %p197
    %p199 = scmp.ne.s32.totalorder %s190, %s191
    %p200 = scmp.eq.s32.totalorder %s28, 0
    %p201 = por %p199, %p200
    %p202 = scmp.ne.s32.totalorder %s190, %s191
    %p203 = scmp.eq.s32.totalorder %s29, 1
    %p204 = por %p202, %p203
    %p206 = scmp.ne.s32.totalorder %s191, %s205
    %p207 = scmp.eq.s32.totalorder %s29, 0
    %p208 = por %p206, %p207
    %s210 = sadd.s32 %s209, 1
    %p213 = scmp.eq.s32.totalorder %s23, 1
    %p214 = scmp.ne.s32.totalorder %s209, %s211
    %p215 = scmp.eq.s32.totalorder %s23, 0
    %p216 = por %p214, %p215
    %p217 = scmp.ne.s32.totalorder %s209, %s211
    %p218 = scmp.eq.s32.totalorder %s28, 1
    %p219 = por %p217, %p218
    %p220 = scmp.ne.s32.totalorder %s211, %s212
    %p221 = scmp.eq.s32.totalorder %s28, 0
    %p222 = por %p220, %p221
    %p223 = scmp.ne.s32.totalorder %s211, %s212
    %p224 = scmp.eq.s32.totalorder %s29, 1
    %p225 = por %p223, %p224
    %p227 = scmp.ne.s32.totalorder %s212, %s226
    %p228 = scmp.eq.s32.totalorder %s29, 0
    %p229 = por %p227, %p228
    %s231 = sadd.s32 %s230, 1
    %p234 = scmp.eq.s32.totalorder %s23, 1
    %p235 = scmp.ne.s32.totalorder %s230, %s232
    %p236 = scmp.eq.s32.totalorder %s23, 0
    %p237 = por %p235, %p236
    %p238 = scmp.ne.s32.totalorder %s230, %s232
    %p239 = scmp.eq.s32.totalorder %s28, 1
    %p240 = por %p238, %p239
    %p241 = scmp.ne.s32.totalorder %s232, %s233
    %p242 = scmp.eq.s32.totalorder %s28, 0
    %p243 = por %p241, %p242
    %p244 = scmp.ne.s32.totalorder %s232, %s233
    %p245 = scmp.eq.s32.totalorder %s29, 1
    %p246 = por %p244, %p245
    %p248 = scmp.ne.s32.totalorder %s233, %s247
    %p249 = scmp.eq.s32.totalorder %s29, 0
    %p250 = por %p248, %p249
    %s252 = sadd.s32 %s251, 1
    %p255 = scmp.eq.s32.totalorder %s23, 1
    %p256 = scmp.ne.s32.totalorder %s251, %s253
    %p257 = scmp.eq.s32.totalorder %s23, 0
    %p258 = por %p256, %p257
    %p259 = scmp.ne.s32.totalorder %s251, %s253
    %p260 = scmp.eq.s32.totalorder %s28, 1
    %p261 = por %p259, %p260
    %p262 = scmp.ne.s32.totalorder %s253, %s254
    %p263 = scmp.eq.s32.totalorder %s28, 0
    %p264 = por %p262, %p263
    %p265 = scmp.ne.s32.totalorder %s253, %s254
    %p266 = scmp.eq.s32.totalorder %s29, 1
    %p267 = por %p265, %p266
    %p269 = scmp.ne.s32.totalorder %s254, %s268
    %p270 = scmp.eq.s32.totalorder %s29, 0
    %p271 = por %p269, %p270
    %s273 = sadd.s32 %s272, 1
    %p276 = scmp.eq.s32.totalorder %s23, 1
    %p277 = scmp.ne.s32.totalorder %s272, %s274
    %p278 = scmp.eq.s32.totalorder %s23, 0
    %p279 = por %p277, %p278
    %p280 = scmp.ne.s32.totalorder %s272, %s274
    %p281 = scmp.eq.s32.totalorder %s28, 1
    %p282 = por %p280, %p281
    %p283 = scmp.ne.s32.totalorder %s274, %s275
    %p284 = scmp.eq.s32.totalorder %s28, 0
    %p285 = por %p283, %p284
    %p286 = scmp.ne.s32.totalorder %s274, %s275
    %p287 = scmp.eq.s32.totalorder %s29, 1
    %p288 = por %p286, %p287
    %p290 = scmp.ne.s32.totalorder %s275, %s289
    %p291 = scmp.eq.s32.totalorder %s29, 0
    %p292 = por %p290, %p291
    %s294 = sadd.s32 %s293, 1
    %p297 = scmp.eq.s32.totalorder %s23, 1
    %p298 = scmp.ne.s32.totalorder %s293, %s295
    %p299 = scmp.eq.s32.totalorder %s23, 0
    %p300 = por %p298, %p299
    %p301 = scmp.ne.s32.totalorder %s293, %s295
    %p302 = scmp.eq.s32.totalorder %s28, 1
    %p303 = por %p301, %p302
    %p304 = scmp.ne.s32.totalorder %s295, %s296
    %p305 = scmp.eq.s32.totalorder %s28, 0
    %p306 = por %p304, %p305
    %p307 = scmp.ne.s32.totalorder %s295, %s296
    %p308 = scmp.eq.s32.totalorder %s29, 1
    %p309 = por %p307, %p308
    %p311 = scmp.ne.s32.totalorder %s296, %s310
    %p312 = scmp.eq.s32.totalorder %s29, 0
    %p313 = por %p311, %p312
    %s315 = sadd.s32 %s314, 1
    %p318 = scmp.eq.s32.totalorder %s23, 1
    %p319 = scmp.ne.s32.totalorder %s314, %s316
    %p320 = scmp.eq.s32.totalorder %s23, 0
    %p321 = por %p319, %p320
    %p322 = scmp.ne.s32.totalorder %s314, %s316
    %p323 = scmp.eq.s32.totalorder %s28, 1
    %p324 = por %p322, %p323
    %p325 = scmp.ne.s32.totalorder %s316, %s317
    %p326 = scmp.eq.s32.totalorder %s28, 0
    %p327 = por %p325, %p326
    %p328 = scmp.ne.s32.totalorder %s316, %s317
    %p329 = scmp.eq.s32.totalorder %s29, 1
    %p330 = por %p328, %p329
    %p332 = scmp.ne.s32.totalorder %s317, %s331
    %p333 = scmp.eq.s32.totalorder %s29, 0
    %p334 = por %p332, %p333
    %s336 = sadd.s32 %s335, 1
    %p339 = scmp.eq.s32.totalorder %s23, 1
    %p340 = scmp.ne.s32.totalorder %s335, %s337
    %p341 = scmp.eq.s32.totalorder %s23, 0
    %p342 = por %p340, %p341
    %p343 = scmp.ne.s32.totalorder %s335, %s337
    %p344 = scmp.eq.s32.totalorder %s28, 1
    %p345 = por %p343, %p344
    %p346 = scmp.ne.s32.totalorder %s337, %s338
    %p347 = scmp.eq.s32.totalorder %s28, 0
    %p348 = por %p346, %p347
    %p349 = scmp.ne.s32.totalorder %s337, %s338
    %p350 = scmp.eq.s32.totalorder %s29, 1
    %p351 = por %p349, %p350
    %p353 = scmp.ne.s32.totalorder %s338, %s352
    %p354 = scmp.eq.s32.totalorder %s29, 0
    %p355 = por %p353, %p354
    %s356 = ssub.s32 %s23, %s30
    %p357 = scmp.eq.s32.totalorder %s356, 0
    %s359 = sadd.s32 %s358, 1
    %s360 = scalar_select %p357, %s358, %s359
    %p363 = pneg %p357
    %p364 = scmp.eq.s32.totalorder %s23, 1
    %p365 = por %p363, %p364
    %p366 = scmp.ne.s32.totalorder %s358, %s361
    %p367 = scmp.eq.s32.totalorder %s23, 0
    %p368 = por %p366, %p367
    %p369 = scmp.ne.s32.totalorder %s358, %s361
    %p370 = scmp.eq.s32.totalorder %s28, 1
    %p371 = por %p369, %p370
    %p372 = scmp.ne.s32.totalorder %s361, %s362
    %p373 = scmp.eq.s32.totalorder %s28, 0
    %p374 = por %p372, %p373
    %p375 = scmp.ne.s32.totalorder %s361, %s362
    %p376 = scmp.eq.s32.totalorder %s29, 1
    %p377 = por %p375, %p376
    %p379 = scmp.ne.s32.totalorder %s362, %s378
    %p380 = scmp.eq.s32.totalorder %s29, 0
    %p381 = por %p379, %p380
    %s382 = ssub.s32 %s23, %s30
    %p383 = scmp.eq.s32.totalorder %s382, 0
    %s385 = sadd.s32 %s384, 1
    %s386 = scalar_select %p383, %s384, %s385
    %p389 = pneg %p383
    %p390 = scmp.eq.s32.totalorder %s23, 1
    %p391 = por %p389, %p390
    %p392 = scmp.ne.s32.totalorder %s384, %s387
    %p393 = scmp.eq.s32.totalorder %s23, 0
    %p394 = por %p392, %p393
    %p395 = scmp.ne.s32.totalorder %s384, %s387
    %p396 = scmp.eq.s32.totalorder %s28, 1
    %p397 = por %p395, %p396
    %p398 = scmp.ne.s32.totalorder %s387, %s388
    %p399 = scmp.eq.s32.totalorder %s28, 0
    %p400 = por %p398, %p399
    %p401 = scmp.ne.s32.totalorder %s387, %s388
    %p402 = scmp.eq.s32.totalorder %s29, 1
    %p403 = por %p401, %p402
    %p405 = scmp.ne.s32.totalorder %s388, %s404
    %p406 = scmp.eq.s32.totalorder %s29, 0
    %p407 = por %p405, %p406
    %p408 = scmp.le.s32.totalorder 1, %s23
    %p409 = scmp.lt.s32.totalorder %s23, 3
    %p410 = pnand %p408, %p409
    %p411 = pneg %p410
    // Predicated region
    $region9: #{cgb_generate_centroids.1} parent=5 // pred_check
      _
    $region10: #{cgb_generate_centroids.1} parent=5 // pred_check_branch
      %413 = sbr.rel (%p410) target = $region12
    $region11: #{cgb_generate_centroids.1} parent=5 // pred_region
      %s414 = ssub.s32 %s23, 1
      // Predicated region
      $region13: #{cgb_generate_centroids.1} parent=11 // pred_check
        %p415 = pneg %p96
      $region14: #{cgb_generate_centroids.1} parent=11 // pred_check_branch
        %417 = sbr.rel (%p415) target = $region16
      $region15: #{cgb_generate_centroids.1} parent=11 // pred_region
        _
      $region16: #{cgb_generate_centroids.1} parent=11 // pred_fallthru
        _
      // Predicated region
      $region17: #{cgb_generate_centroids.1} parent=11 // pred_check
        %p418 = pneg %p117
      $region18: #{cgb_generate_centroids.1} parent=11 // pred_check_branch
        %420 = sbr.rel (%p418) target = $region20
      $region19: #{cgb_generate_centroids.1} parent=11 // pred_region
        _
      $region20: #{cgb_generate_centroids.1} parent=11 // pred_fallthru
        _
      // Predicated region
      $region21: #{cgb_generate_centroids.1} parent=11 // pred_check
        %p421 = pneg %p138
      $region22: #{cgb_generate_centroids.1} parent=11 // pred_check_branch
        %423 = sbr.rel (%p421) target = $region24
      $region23: #{cgb_generate_centroids.1} parent=11 // pred_region
        _
      $region24: #{cgb_generate_centroids.1} parent=11 // pred_fallthru
        _
      // Predicated region
      $region25: #{cgb_generate_centroids.1} parent=11 // pred_check
        %p424 = pneg %p159
      $region26: #{cgb_generate_centroids.1} parent=11 // pred_check_branch
        %426 = sbr.rel (%p424) target = $region28
      $region27: #{cgb_generate_centroids.1} parent=11 // pred_region
        _
      $region28: #{cgb_generate_centroids.1} parent=11 // pred_fallthru
        _
      // Predicated region
      $region29: #{cgb_generate_centroids.1} parent=11 // pred_check
        %p427 = pneg %p180
      $region30: #{cgb_generate_centroids.1} parent=11 // pred_check_branch
        %429 = sbr.rel (%p427) target = $region32
      $region31: #{cgb_generate_centroids.1} parent=11 // pred_region
        _
      $region32: #{cgb_generate_centroids.1} parent=11 // pred_fallthru
        _
      // Predicated region
      $region33: #{cgb_generate_centroids.1} parent=11 // pred_check
        %p430 = pneg %p201
      $region34: #{cgb_generate_centroids.1} parent=11 // pred_check_branch
        %432 = sbr.rel (%p430) target = $region36
      $region35: #{cgb_generate_centroids.1} parent=11 // pred_region
        _
      $region36: #{cgb_generate_centroids.1} parent=11 // pred_fallthru
        _
      // Predicated region
      $region37: #{cgb_generate_centroids.1} parent=11 // pred_check
        %p433 = pneg %p222
      $region38: #{cgb_generate_centroids.1} parent=11 // pred_check_branch
        %435 = sbr.rel (%p433) target = $region40
      $region39: #{cgb_generate_centroids.1} parent=11 // pred_region
        _
      $region40: #{cgb_generate_centroids.1} parent=11 // pred_fallthru
        _
      // Predicated region
      $region41: #{cgb_generate_centroids.1} parent=11 // pred_check
        %p436 = pneg %p243
      $region42: #{cgb_generate_centroids.1} parent=11 // pred_check_branch
        %438 = sbr.rel (%p436) target = $region44
      $region43: #{cgb_generate_centroids.1} parent=11 // pred_region
        _
      $region44: #{cgb_generate_centroids.1} parent=11 // pred_fallthru
        _
      // Predicated region
      $region45: #{cgb_generate_centroids.1} parent=11 // pred_check
        %p439 = pneg %p264
      $region46: #{cgb_generate_centroids.1} parent=11 // pred_check_branch
        %441 = sbr.rel (%p439) target = $region48
      $region47: #{cgb_generate_centroids.1} parent=11 // pred_region
        _
      $region48: #{cgb_generate_centroids.1} parent=11 // pred_fallthru
        _
      // Predicated region
      $region49: #{cgb_generate_centroids.1} parent=11 // pred_check
        %p442 = pneg %p285
      $region50: #{cgb_generate_centroids.1} parent=11 // pred_check_branch
        %444 = sbr.rel (%p442) target = $region52
      $region51: #{cgb_generate_centroids.1} parent=11 // pred_region
        _
      $region52: #{cgb_generate_centroids.1} parent=11 // pred_fallthru
        _
      // Predicated region
      $region53: #{cgb_generate_centroids.1} parent=11 // pred_check
        %p445 = pneg %p306
      $region54: #{cgb_generate_centroids.1} parent=11 // pred_check_branch
        %447 = sbr.rel (%p445) target = $region56
      $region55: #{cgb_generate_centroids.1} parent=11 // pred_region
        _
      $region56: #{cgb_generate_centroids.1} parent=11 // pred_fallthru
        _
      // Predicated region
      $region57: #{cgb_generate_centroids.1} parent=11 // pred_check
        %p448 = pneg %p327
      $region58: #{cgb_generate_centroids.1} parent=11 // pred_check_branch
        %450 = sbr.rel (%p448) target = $region60
      $region59: #{cgb_generate_centroids.1} parent=11 // pred_region
        _
      $region60: #{cgb_generate_centroids.1} parent=11 // pred_fallthru
        _
      // Predicated region
      $region61: #{cgb_generate_centroids.1} parent=11 // pred_check
        %p451 = pneg %p348
      $region62: #{cgb_generate_centroids.1} parent=11 // pred_check_branch
        %453 = sbr.rel (%p451) target = $region64
      $region63: #{cgb_generate_centroids.1} parent=11 // pred_region
        _
      $region64: #{cgb_generate_centroids.1} parent=11 // pred_fallthru
        _
    $region12: #{cgb_generate_centroids.1} parent=5 // pred_fallthru
      _
    %p454 = scmp.lt.s32.totalorder %s23, 2
    // Predicated region
    $region65: #{cgb_generate_centroids.1} parent=5 // pred_check
      %p455 = pneg %p454
    $region66: #{cgb_generate_centroids.1} parent=5 // pred_check_branch
      %457 = sbr.rel (%p455) target = $region68
    $region67: #{cgb_generate_centroids.1} parent=5 // pred_region
      // Predicated region
      $region69: #{cgb_generate_centroids.1} parent=67 // pred_check
        %p458 = pneg %p43
      $region70: #{cgb_generate_centroids.1} parent=67 // pred_check_branch
        %460 = sbr.rel (%p458) target = $region72
      $region71: #{cgb_generate_centroids.1} parent=67 // pred_region
        %s461 = smul.u32 8, %s23
        %p462 = scmp.lt.s32.totalorder %s461, 15
        %s463 = scalar_select %p462, %s461, 15
        %s464 = smul.addr %s463, 8
        %s465 = scalar_lea.vmem %s0, %s464
        %s466 = smul.u32 8, %s23
      $region72: #{cgb_generate_centroids.1} parent=67 // pred_fallthru
        _
      // Predicated region
      $region73: #{cgb_generate_centroids.1} parent=67 // pred_check
        %p467 = pneg %p69
      $region74: #{cgb_generate_centroids.1} parent=67 // pred_check_branch
        %469 = sbr.rel (%p467) target = $region76
      $region75: #{cgb_generate_centroids.1} parent=67 // pred_region
        %s470 = smul.u32 8, %s23
        %p471 = scmp.lt.s32.totalorder %s470, 15
        %s472 = scalar_select %p471, %s470, 15
        %s473 = smul.addr %s472, 8
        %s474 = scalar_lea.vmem %s1, %s473
        %s475 = smul.u32 8, %s23
      $region76: #{cgb_generate_centroids.1} parent=67 // pred_fallthru
        _
    $region68: #{cgb_generate_centroids.1} parent=5 // pred_fallthru
      _
    %p476 = scmp.le.s32.totalorder 1, %s23
    %p477 = scmp.lt.s32.totalorder %s23, 3
    %p478 = pnand %p476, %p477
    %p479 = pneg %p478
    // Predicated region
    $region77: #{cgb_generate_centroids.1} parent=5 // pred_check
      _
    $region78: #{cgb_generate_centroids.1} parent=5 // pred_check_branch
      %481 = sbr.rel (%p478) target = $region80
    $region79: #{cgb_generate_centroids.1} parent=5 // pred_region
      %s482 = ssub.s32 %s23, 1
      %s483 = smul.u32 8, %s28
      %p484 = scmp.lt.s32.totalorder %s483, 15
      %s485 = scalar_select %p484, %s483, 15
      %s486 = smul.addr %s485, 8
      %s487 = scalar_lea.vmem %s0, %s486
      %p488 = pneg %p49
      %p489 = pneg %p46
      %s490 = smul.u32 8, %s28
      %p491 = scmp.lt.s32.totalorder %s490, 15
      %s492 = scalar_select %p491, %s490, 15
      %s493 = smul.addr %s492, 8
      %s494 = scalar_lea.vmem %s1, %s493
      %p495 = pneg %p75
      %p496 = pneg %p72
      %p497 = pneg %p96
      %p498 = pneg %p93
      %p499 = pneg %p117
      %p500 = pneg %p114
      %p501 = pneg %p138
      %p502 = pneg %p135
      %p503 = pneg %p159
      %p504 = pneg %p156
      %p505 = pneg %p180
      %p506 = pneg %p177
      %p507 = pneg %p201
      %p508 = pneg %p198
      %p509 = pneg %p222
      %p510 = pneg %p219
      %p511 = pneg %p243
      %p512 = pneg %p240
      %p513 = pneg %p264
      %p514 = pneg %p261
      %p515 = pneg %p285
      %p516 = pneg %p282
      %p517 = pneg %p306
      %p518 = pneg %p303
      %p519 = pneg %p327
      %p520 = pneg %p324
      %p521 = pneg %p348
      %p522 = pneg %p345
      %p523 = pneg %p374
      %p524 = pneg %p371
      %s525 = smul.u32 18, %s28
      %p526 = scmp.lt.s32.totalorder %s525, 35
      %s527 = scalar_select %p526, %s525, 35
      %s528 = smul.addr %s527, 8
      %s529 = scalar_lea.vmem %s15, %s528
      %p530 = pneg %p400
      %p531 = pneg %p397
      %s532 = smul.u32 18, %s28
      %p533 = scmp.lt.s32.totalorder %s532, 35
      %s534 = scalar_select %p533, %s532, 35
      %s535 = smul.addr %s534, 8
      %s536 = scalar_lea.vmem %s16, %s535
      %s537 = smul.u32 8, %s28
      %p538 = scmp.lt.s32.totalorder %s537, 15
      %s539 = scalar_select %p538, %s537, 15
      %s540 = smul.addr %s539, 8
      %s541 = scalar_lea.vmem %s0, %s540
      %s542 = smul.u32 8, %s28
      %s543 = smul.u32 8, %s28
      %p544 = scmp.lt.s32.totalorder %s543, 15
      %s545 = scalar_select %p544, %s543, 15
      %s546 = smul.addr %s545, 8
      %s547 = scalar_lea.vmem %s1, %s546
      %s548 = smul.u32 8, %s28
      %s549 = smul.u32 18, %s28
      %p550 = scmp.lt.s32.totalorder %s549, 35
      %s551 = scalar_select %p550, %s549, 35
      %s552 = smul.addr %s551, 8
      %s553 = scalar_lea.vmem %s15, %s552
      %s554 = smul.u32 18, %s28
      %s555 = smul.u32 18, %s28
      %p556 = scmp.lt.s32.totalorder %s555, 35
      %s557 = scalar_select %p556, %s555, 35
      %s558 = smul.addr %s557, 8
      %s559 = scalar_lea.vmem %s16, %s558
      %s560 = smul.u32 18, %s28
      %v562 = vld [vmem:[%s14] sm:$0x1]
      %v563 = vld [vmem:[%s14 + $0x1] sm:$0x1]
      %v564 = vld [vmem:[%s14 + $0x2] sm:$0x3]
      %v565 = vld [vmem:[%s14 + $0x4] sm:$0x1]
      %v566 = vld [vmem:[%s14 + $0x5] sm:$0x1]
      %v567 = vld [vmem:[%s14 + $0x6] sm:$0x1]
      %v568 = vld [vmem:[%s14 + $0x7] sm:$0x1]
      %v569 = vld [vmem:[%s14 + $0x8] sm:$0x1]
      %v570 = vld [vmem:[%s14 + $0x9] sm:$0x1]
      %v571 = vld [vmem:[%s14 + $0xa] sm:$0x1]
      %v572 = vld [vmem:[%s14 + $0xb] sm:$0x1]
      %v573 = vld [vmem:[%s547] sm:$0xff]
      %v574 = vld [vmem:[%s547 + $0x8] sm:$0xff]
      %v575 = vld [vmem:[%s547 + $0x10] sm:$0xff]
      %v576 = vld [vmem:[%s547 + $0x18] sm:$0xff]
      %v577 = vld [vmem:[%s547 + $0x20] sm:$0xff]
      %v578 = vld [vmem:[%s547 + $0x28] sm:$0xff]
      %v579 = vld [vmem:[%s547 + $0x30] sm:$0xff]
      %v580 = vld [vmem:[%s547 + $0x38] sm:$0xff]
      %v581 = vld [vmem:[%s541] sm:$0xff]
      %v582 = vld [vmem:[%s541 + $0x8] sm:$0xff]
      %v583 = vld [vmem:[%s541 + $0x10] sm:$0xff]
      %v584 = vld [vmem:[%s541 + $0x18] sm:$0xff]
      %v585 = vld [vmem:[%s541 + $0x20] sm:$0xff]
      %v586 = vld [vmem:[%s541 + $0x28] sm:$0xff]
      %v587 = vld [vmem:[%s541 + $0x30] sm:$0xff]
      %v588 = vld [vmem:[%s541 + $0x38] sm:$0xff]
      %v589 = vpack.c.bf16 %v574, %v573
      %v590 = vpack.c.bf16 %v576, %v575
      %v591 = vpack.c.bf16 %v578, %v577
      %v592 = vpack.c.bf16 %v580, %v579
      %v593 = vld [vmem:[%s2] sm:$0xf]
      %v594 = vld [vmem:[%s2 + $0x4] sm:$0xf]
      %v595 = vld [vmem:[%s2 + $0x8] sm:$0xf]
      %v596 = vld [vmem:[%s2 + $0xc] sm:$0xf]
      %v601 = vunpack.c.l.b16 %v593
      %v602 = vunpack.c.l.b16 %v594
      %v603 = vunpack.c.l.b16 %v595
      %v604 = vunpack.c.l.b16 %v596
      %v605 = vpack.c.b16 %v602, %v601
      %v606 = vpack.c.b16 %v604, %v603
      %vm609 = vcmask 261120
      %v611 = vsel %vm609, %v589, 0
      %v614 = vsel %vm609, %v590, 0
      %v617 = vsel %vm609, %v591, 0
      %v620 = vsel %vm609, %v592, 0
      %622 = vmatprep.subr.bf16.mxu0 0
      %623 = vmatpush1.bf16.msra.mxu0 %v605
      %624 = vmatprep.subr.bf16.mxu0 0
      %625 = vmatpush1.bf16.msra.mxu0 %v606
      %626 = vmatprep.subr.bf16.mxu0 0
      %627 = vmatpush1.bf16.msra.mxu0 0
      %628 = vmatprep.subr.bf16.mxu0 0
      %629 = vmatpush1.bf16.msra.mxu0 0
      %630 = vmatprep.subr.bf16.mxu0 0
      %631 = vmatpush1.bf16.msra.mxu0 0
      %632 = vmatprep.subr.bf16.mxu0 0
      %633 = vmatpush1.bf16.msra.mxu0 0
      %634 = vmatprep.subr.bf16.mxu0 0
      %635 = vmatpush1.bf16.msra.mxu0 0
      %636 = vmatprep.subr.bf16.mxu0 0
      %637 = vmatpush1.bf16.msra.mxu0 0
      %638 = vmatprep.subr.bf16.mxu0 0
      %639 = vmatpush1.bf16.msra.mxu0 0
      %640 = vmatprep.subr.bf16.mxu0 0
      %641 = vmatpush1.bf16.msra.mxu0 0
      %642 = vmatprep.subr.bf16.mxu0 0
      %643 = vmatpush1.bf16.msra.mxu0 0
      %644 = vmatprep.subr.bf16.mxu0 0
      %645 = vmatpush1.bf16.msra.mxu0 0
      %646 = vmatprep.subr.bf16.mxu0 0
      %647 = vmatpush1.bf16.msra.mxu0 0
      %648 = vmatprep.subr.bf16.mxu0 0
      %649 = vmatpush1.bf16.msra.mxu0 0
      %650 = vmatprep.subr.bf16.mxu0 0
      %651 = vmatpush1.bf16.msra.mxu0 0
      %652 = vmatprep.subr.bf16.mxu0 0
      %653 = vmatpush1.bf16.msra.mxu0 0
      %654 = vmatprep.mubr.bf16.mxu0 0
      %655 = vmatmul.mubr.bf16.gmra.mrb[0].mxu0 %v611
      %v656 = vpop.f32.mrb[0].mxu0
      %v657 = vadd.f32 0.0, %v656
      %v658 = vpop.f32.mrb[0].mxu0
      %v659 = vpop.f32.mrb[0].mxu0
      %v660 = vadd.f32 0.0, %v659
      %v661 = vpop.f32.mrb[0].mxu0
      %662 = vmatprep.mubr.bf16.mxu0 0
      %663 = vmatmul.mubr.bf16.gmra.mrb[0].mxu0 %v614
      %v664 = vpop.f32.mrb[0].mxu0
      %v665 = vadd.f32 0.0, %v664
      %v666 = vpop.f32.mrb[0].mxu0
      %v667 = vpop.f32.mrb[0].mxu0
      %v668 = vadd.f32 0.0, %v667
      %v669 = vpop.f32.mrb[0].mxu0
      %670 = vmatprep.mubr.bf16.mxu0 0
      %671 = vmatmul.mubr.bf16.gmra.mrb[0].mxu0 %v617
      %v672 = vpop.f32.mrb[0].mxu0
      %v673 = vadd.f32 0.0, %v672
      %v674 = vpop.f32.mrb[0].mxu0
      %v675 = vpop.f32.mrb[0].mxu0
      %v676 = vadd.f32 0.0, %v675
      %v677 = vpop.f32.mrb[0].mxu0
      %678 = vmatprep.mubr.bf16.mxu0 0
      %679 = vmatmul.mubr.bf16.gmra.mrb[0].mxu0 %v620
      %v680 = vpop.f32.mrb[0].mxu0
      %v681 = vadd.f32 0.0, %v680
      %v682 = vpop.f32.mrb[0].mxu0
      %v683 = vpop.f32.mrb[0].mxu0
      %v684 = vadd.f32 0.0, %v683
      %v685 = vpop.f32.mrb[0].mxu0
      %686 = vdwg.mxu0
      %v688 = vlaneseq
      %v689 = vshrl.u32 %v688, 7
      %v690 = vsub.s32 0, %v689
      %v691 = vrot.slane %v562, %v690
      %v693 = vmul.f32 %v657, %v691
      %v694 = vmul.f32 %v660, %v691
      %v695 = vmul.f32 %v665, %v691
      %v696 = vmul.f32 %v668, %v691
      %v697 = vmul.f32 %v673, %v691
      %v698 = vmul.f32 %v676, %v691
      %v699 = vmul.f32 %v681, %v691
      %v700 = vmul.f32 %v684, %v691
      %v702 = vlaneseq
      %v703 = vshrl.u32 %v702, 7
      %v704 = vsub.s32 0, %v703
      %v705 = vrot.slane %v563, %v704
      %v707 = vadd.f32 %v693, %v705
      %v708 = vadd.f32 %v694, %v705
      %v709 = vadd.f32 %v695, %v705
      %v710 = vadd.f32 %v696, %v705
      %v711 = vadd.f32 %v697, %v705
      %v712 = vadd.f32 %v698, %v705
      %v713 = vadd.f32 %v699, %v705
      %v714 = vadd.f32 %v700, %v705
      %v715 = vmax.f32 %v707, 0.0
      %v716 = vmax.f32 %v708, 0.0
      %v717 = vmax.f32 %v709, 0.0
      %v718 = vmax.f32 %v710, 0.0
      %v719 = vmax.f32 %v711, 0.0
      %v720 = vmax.f32 %v712, 0.0
      %v721 = vmax.f32 %v713, 0.0
      %v722 = vmax.f32 %v714, 0.0
      %v723 = vsel %vm609, %v715, -inf
      %v724 = vsel %vm609, %v716, -inf
      %v725 = vsel %vm609, %v717, -inf
      %v726 = vsel %vm609, %v718, -inf
      %v727 = vsel %vm609, %v719, -inf
      %v728 = vmax.f32 %v723, %v727
      %v729 = vsel %vm609, %v720, -inf
      %v730 = vmax.f32 %v724, %v729
      %v731 = vsel %vm609, %v721, -inf
      %v732 = vmax.f32 %v725, %v731
      %v733 = vsel %vm609, %v722, -inf
      %v734 = vmax.f32 %v726, %v733
      %v735 = vmax.f32 %v728, %v730
      %v736 = vmax.f32 %v732, %v734
      %v737 = vmax.f32 %v735, %v736
      %v738 = vrot.slane %v737, 4
      %v739 = vmax.f32 %v737, %v738
      %v740 = vrot.slane %v739, 2
      %v741 = vmax.f32 %v739, %v740
      %v742 = vrot.slane %v741, 1
      %v743 = vmax.f32 %v741, %v742
      %v744 = vsub.f32 %v743, %v573
      %v745 = vsub.f32 %v743, %v574
      %v746 = vsub.f32 %v743, %v575
      %v747 = vsub.f32 %v743, %v576
      %v748 = vsub.f32 %v743, %v577
      %v749 = vsub.f32 %v743, %v578
      %v750 = vsub.f32 %v743, %v579
      %v751 = vsub.f32 %v743, %v580
      %752 = vxpose.xlu0.b32.start [1/16] %v744, 128
      %753 = vxpose.xlu0.b32.cont [2/16] %v745, 128
      %754 = vxpose.xlu0.b32.cont [3/16] %v746, 128
      %755 = vxpose.xlu0.b32.cont [4/16] %v747, 128
      %756 = vxpose.xlu0.b32.cont [5/16] %v748, 128
      %757 = vxpose.xlu0.b32.cont [6/16] %v749, 128
      %758 = vxpose.xlu0.b32.cont [7/16] %v750, 128
      %759 = vxpose.xlu0.b32.cont [8/16] %v751, 128
      %760 = vxpose.xlu0.b32.cont [9/16] 0.0, 128
      %761 = vxpose.xlu0.b32.cont [10/16] 0.0, 128
      %762 = vxpose.xlu0.b32.cont [11/16] 0.0, 128
      %763 = vxpose.xlu0.b32.cont [12/16] 0.0, 128
      %764 = vxpose.xlu0.b32.cont [13/16] 0.0, 128
      %765 = vxpose.xlu0.b32.cont [14/16] 0.0, 128
      %766 = vxpose.xlu0.b32.cont [15/16] 0.0, 128
      %767 = vxpose.xlu0.b32.end [16/16] 0.0, 128
      %v768 = vpop.trf.xlu0
      %v769 = vpop.trf.xlu0
      %v770 = vpop.trf.xlu0
      %v771 = vpop.trf.xlu0
      %v772 = vpop.trf.xlu0
      %v773 = vpop.trf.xlu0
      %v774 = vpop.trf.xlu0
      %v775 = vpop.trf.xlu0
      %v776 = vpop.trf.xlu0
      %v777 = vpop.trf.xlu0
      %v778 = vpop.trf.xlu0
      %v779 = vpop.trf.xlu0
      %v780 = vpop.trf.xlu0
      %v781 = vpop.trf.xlu0
      %v782 = vpop.trf.xlu0
      %v783 = vpop.trf.xlu0
      %v784 = vpack.c.bf16 %v769, %v768
      %v785 = vpack.c.bf16 %v771, %v770
      %v786 = vld [vmem:[%s3] sm:$0xff]
      %v787 = vld [vmem:[%s3 + $0x8] sm:$0xff]
      %v788 = vld [vmem:[%s3 + $0x10] sm:$0xff]
      %v789 = vld [vmem:[%s3 + $0x18] sm:$0xff]
      %v790 = vld [vmem:[%s3 + $0x20] sm:$0xff]
      %v791 = vld [vmem:[%s3 + $0x28] sm:$0xff]
      %v792 = vld [vmem:[%s3 + $0x30] sm:$0xff]
      %v793 = vld [vmem:[%s3 + $0x38] sm:$0xff]
      %v795 = vlaneseq
      %v796 = vshrl.u32 %v795, 7
      %v797 = vsub.s32 0, %v796
      %v798 = vrot.slane %v564, %v797
      %v799 = vlaneseq
      %v800 = vshrl.u32 %v799, 7
      %v801 = vsub.s32 1, %v800
      %v802 = vrot.slane %v564, %v801
      %v813 = vunpack.c.l.b16 %v786
      %v814 = vunpack.c.h.b16 %v786
      %v815 = vunpack.c.l.b16 %v787
      %v816 = vunpack.c.h.b16 %v787
      %v817 = vunpack.c.l.b16 %v788
      %v818 = vunpack.c.h.b16 %v788
      %v819 = vunpack.c.l.b16 %v789
      %v820 = vunpack.c.h.b16 %v789
      %v821 = vunpack.c.l.b16 %v790
      %v822 = vunpack.c.h.b16 %v790
      %v823 = vunpack.c.l.b16 %v791
      %v824 = vunpack.c.h.b16 %v791
      %v825 = vunpack.c.l.b16 %v792
      %v826 = vunpack.c.h.b16 %v792
      %v827 = vunpack.c.l.b16 %v793
      %v828 = vunpack.c.h.b16 %v793
      %v829 = vpack.c.b16 %v815, %v813
      %v830 = vpack.c.b16 %v816, %v814
      %v831 = vpack.c.b16 %v819, %v817
      %v832 = vpack.c.b16 %v820, %v818
      %v833 = vpack.c.b16 %v823, %v821
      %v834 = vpack.c.b16 %v824, %v822
      %v835 = vpack.c.b16 %v827, %v825
      %v836 = vpack.c.b16 %v828, %v826
      %vm845 = vcmask 523264
      %v847 = vsel %vm845, %v784, 0
      %v850 = vsel %vm845, %v785, 0
      %852 = vmatprep.subr.bf16.mxu0 %v830
      %853 = vmatpush1.bf16.msra.mxu0 %v829
      %854 = vmatprep.subr.bf16.mxu0 %v832
      %855 = vmatpush1.bf16.msra.mxu0 %v831
      %856 = vmatprep.subr.bf16.mxu0 %v834
      %857 = vmatpush1.bf16.msra.mxu0 %v833
      %858 = vmatprep.subr.bf16.mxu0 %v836
      %859 = vmatpush1.bf16.msra.mxu0 %v835
      %860 = vmatprep.subr.bf16.mxu0 0
      %861 = vmatpush1.bf16.msra.mxu0 0
      %862 = vmatprep.subr.bf16.mxu0 0
      %863 = vmatpush1.bf16.msra.mxu0 0
      %864 = vmatprep.subr.bf16.mxu0 0
      %865 = vmatpush1.bf16.msra.mxu0 0
      %866 = vmatprep.subr.bf16.mxu0 0
      %867 = vmatpush1.bf16.msra.mxu0 0
      %868 = vmatprep.subr.bf16.mxu0 0
      %869 = vmatpush1.bf16.msra.mxu0 0
      %870 = vmatprep.subr.bf16.mxu0 0
      %871 = vmatpush1.bf16.msra.mxu0 0
      %872 = vmatprep.subr.bf16.mxu0 0
      %873 = vmatpush1.bf16.msra.mxu0 0
      %874 = vmatprep.subr.bf16.mxu0 0
      %875 = vmatpush1.bf16.msra.mxu0 0
      %876 = vmatprep.subr.bf16.mxu0 0
      %877 = vmatpush1.bf16.msra.mxu0 0
      %878 = vmatprep.subr.bf16.mxu0 0
      %879 = vmatpush1.bf16.msra.mxu0 0
      %880 = vmatprep.subr.bf16.mxu0 0
      %881 = vmatpush1.bf16.msra.mxu0 0
      %882 = vmatprep.subr.bf16.mxu0 0
      %883 = vmatpush1.bf16.msra.mxu0 0
      %884 = vmatprep.mubr.bf16.mxu0 0
      %885 = vmatmul.mubr.bf16.gmra.mrb[0].mxu0 %v847
      %v886 = vpop.f32.mrb[0].mxu0
      %v887 = vadd.f32 %v798, %v886
      %v888 = vpop.f32.mrb[0].mxu0
      %v889 = vadd.f32 %v802, %v888
      %v890 = vpop.f32.mrb[0].mxu0
      %v891 = vadd.f32 %v798, %v890
      %v892 = vpop.f32.mrb[0].mxu0
      %v893 = vadd.f32 %v802, %v892
      %894 = vmatprep.mubr.bf16.mxu0 0
      %895 = vmatmul.mubr.bf16.gmra.mrb[0].mxu0 %v850
      %v896 = vpop.f32.mrb[0].mxu0
      %v897 = vadd.f32 %v798, %v896
      %v898 = vpop.f32.mrb[0].mxu0
      %v899 = vadd.f32 %v802, %v898
      %v900 = vpop.f32.mrb[0].mxu0
      %v901 = vadd.f32 %v798, %v900
      %v902 = vpop.f32.mrb[0].mxu0
      %v903 = vadd.f32 %v802, %v902
      %904 = vdwg.mxu0
      %v905 = vmul.f32 %v887, 0.2
      %v906 = vmul.f32 %v889, 0.2
      %v907 = vmul.f32 %v891, 0.2
      %v908 = vmul.f32 %v893, 0.2
      %v909 = vmul.f32 %v897, 0.2
      %v910 = vmul.f32 %v899, 0.2
      %v911 = vmul.f32 %v901, 0.2
      %v912 = vmul.f32 %v903, 0.2
      %v913 = vmax.f32 %v887, %v905
      %v914 = vmax.f32 %v889, %v906
      %v915 = vmax.f32 %v891, %v907
      %v916 = vmax.f32 %v893, %v908
      %v917 = vmax.f32 %v897, %v909
      %v918 = vmax.f32 %v899, %v910
      %v919 = vmax.f32 %v901, %v911
      %v920 = vmax.f32 %v903, %v912
      %v921 = vpack.c.bf16 %v915, %v913
      %v922 = vpack.c.bf16 %v916, %v914
      %v923 = vpack.c.bf16 %v919, %v917
      %v924 = vpack.c.bf16 %v920, %v918
      %v925 = vld [vmem:[%s4] sm:$0xf]
      %v926 = vld [vmem:[%s4 + $0x4] sm:$0xf]
      %v927 = vld [vmem:[%s4 + $0x8] sm:$0xf]
      %v928 = vld [vmem:[%s4 + $0xc] sm:$0xf]
      %v929 = vld [vmem:[%s4 + $0x10] sm:$0xf]
      %v930 = vld [vmem:[%s4 + $0x14] sm:$0xf]
      %v931 = vld [vmem:[%s4 + $0x18] sm:$0xf]
      %v932 = vld [vmem:[%s4 + $0x1c] sm:$0xf]
      %v933 = vld [vmem:[%s4 + $0x20] sm:$0xf]
      %v934 = vld [vmem:[%s4 + $0x24] sm:$0xf]
      %v935 = vld [vmem:[%s4 + $0x28] sm:$0xf]
      %v936 = vld [vmem:[%s4 + $0x2c] sm:$0xf]
      %v937 = vld [vmem:[%s4 + $0x30] sm:$0xf]
      %v938 = vld [vmem:[%s4 + $0x34] sm:$0xf]
      %v939 = vld [vmem:[%s4 + $0x38] sm:$0xf]
      %v940 = vld [vmem:[%s4 + $0x3c] sm:$0xf]
      %v941 = vld [vmem:[%s4 + $0x40] sm:$0xf]
      %v942 = vld [vmem:[%s4 + $0x44] sm:$0xf]
      %v943 = vld [vmem:[%s4 + $0x48] sm:$0xf]
      %v944 = vld [vmem:[%s4 + $0x4c] sm:$0xf]
      %v945 = vld [vmem:[%s4 + $0x50] sm:$0xf]
      %v946 = vld [vmem:[%s4 + $0x54] sm:$0xf]
      %v947 = vld [vmem:[%s4 + $0x58] sm:$0xf]
      %v948 = vld [vmem:[%s4 + $0x5c] sm:$0xf]
      %v949 = vld [vmem:[%s4 + $0x60] sm:$0xf]
      %v950 = vld [vmem:[%s4 + $0x64] sm:$0xf]
      %v951 = vld [vmem:[%s4 + $0x68] sm:$0xf]
      %v952 = vld [vmem:[%s4 + $0x6c] sm:$0xf]
      %v953 = vld [vmem:[%s4 + $0x70] sm:$0xf]
      %v954 = vld [vmem:[%s4 + $0x74] sm:$0xf]
      %v955 = vld [vmem:[%s4 + $0x78] sm:$0xf]
      %v956 = vld [vmem:[%s4 + $0x7c] sm:$0xf]
      %v958 = vlaneseq
      %v959 = vshrl.u32 %v958, 7
      %v960 = vsub.s32 0, %v959
      %v961 = vrot.slane %v565, %v960
      %v995 = vunpack.c.l.b16 %v925
      %v996 = vunpack.c.l.b16 %v926
      %v997 = vunpack.c.l.b16 %v927
      %v998 = vunpack.c.l.b16 %v928
      %v999 = vunpack.c.l.b16 %v929
      %v1000 = vunpack.c.l.b16 %v930
      %v1001 = vunpack.c.l.b16 %v931
      %v1002 = vunpack.c.l.b16 %v932
      %v1003 = vunpack.c.l.b16 %v933
      %v1004 = vunpack.c.l.b16 %v934
      %v1005 = vunpack.c.l.b16 %v935
      %v1006 = vunpack.c.l.b16 %v936
      %v1007 = vunpack.c.l.b16 %v937
      %v1008 = vunpack.c.l.b16 %v938
      %v1009 = vunpack.c.l.b16 %v939
      %v1010 = vunpack.c.l.b16 %v940
      %v1011 = vunpack.c.l.b16 %v941
      %v1012 = vunpack.c.l.b16 %v942
      %v1013 = vunpack.c.l.b16 %v943
      %v1014 = vunpack.c.l.b16 %v944
      %v1015 = vunpack.c.l.b16 %v945
      %v1016 = vunpack.c.l.b16 %v946
      %v1017 = vunpack.c.l.b16 %v947
      %v1018 = vunpack.c.l.b16 %v948
      %v1019 = vunpack.c.l.b16 %v949
      %v1020 = vunpack.c.l.b16 %v950
      %v1021 = vunpack.c.l.b16 %v951
      %v1022 = vunpack.c.l.b16 %v952
      %v1023 = vunpack.c.l.b16 %v953
      %v1024 = vunpack.c.l.b16 %v954
      %v1025 = vunpack.c.l.b16 %v955
      %v1026 = vunpack.c.l.b16 %v956
      %v1027 = vpack.c.b16 %v996, %v995
      %v1028 = vpack.c.b16 %v998, %v997
      %v1029 = vpack.c.b16 %v1000, %v999
      %v1030 = vpack.c.b16 %v1002, %v1001
      %v1031 = vpack.c.b16 %v1004, %v1003
      %v1032 = vpack.c.b16 %v1006, %v1005
      %v1033 = vpack.c.b16 %v1008, %v1007
      %v1034 = vpack.c.b16 %v1010, %v1009
      %v1035 = vpack.c.b16 %v1012, %v1011
      %v1036 = vpack.c.b16 %v1014, %v1013
      %v1037 = vpack.c.b16 %v1016, %v1015
      %v1038 = vpack.c.b16 %v1018, %v1017
      %v1039 = vpack.c.b16 %v1020, %v1019
      %v1040 = vpack.c.b16 %v1022, %v1021
      %v1041 = vpack.c.b16 %v1024, %v1023
      %v1042 = vpack.c.b16 %v1026, %v1025
      %1059 = vmatprep.subr.bf16.mxu0 0
      %1060 = vmatpush1.bf16.msra.mxu0 %v1027
      %1061 = vmatprep.subr.bf16.mxu0 0
      %1062 = vmatpush1.bf16.msra.mxu0 %v1028
      %1063 = vmatprep.subr.bf16.mxu0 0
      %1064 = vmatpush1.bf16.msra.mxu0 %v1029
      %1065 = vmatprep.subr.bf16.mxu0 0
      %1066 = vmatpush1.bf16.msra.mxu0 %v1030
      %1067 = vmatprep.subr.bf16.mxu0 0
      %1068 = vmatpush1.bf16.msra.mxu0 %v1031
      %1069 = vmatprep.subr.bf16.mxu0 0
      %1070 = vmatpush1.bf16.msra.mxu0 %v1032
      %1071 = vmatprep.subr.bf16.mxu0 0
      %1072 = vmatpush1.bf16.msra.mxu0 %v1033
      %1073 = vmatprep.subr.bf16.mxu0 0
      %1074 = vmatpush1.bf16.msra.mxu0 %v1034
      %1075 = vmatprep.subr.bf16.mxu0 0
      %1076 = vmatpush1.bf16.msra.mxu0 %v1035
      %1077 = vmatprep.subr.bf16.mxu0 0
      %1078 = vmatpush1.bf16.msra.mxu0 %v1036
      %1079 = vmatprep.subr.bf16.mxu0 0
      %1080 = vmatpush1.bf16.msra.mxu0 %v1037
      %1081 = vmatprep.subr.bf16.mxu0 0
      %1082 = vmatpush1.bf16.msra.mxu0 %v1038
      %1083 = vmatprep.subr.bf16.mxu0 0
      %1084 = vmatpush1.bf16.msra.mxu0 %v1039
      %1085 = vmatprep.subr.bf16.mxu0 0
      %1086 = vmatpush1.bf16.msra.mxu0 %v1040
      %1087 = vmatprep.subr.bf16.mxu0 0
      %1088 = vmatpush1.bf16.msra.mxu0 %v1041
      %1089 = vmatprep.subr.bf16.mxu0 0
      %1090 = vmatpush1.bf16.msra.mxu0 %v1042
      %1091 = vmatprep.mubr.bf16.mxu0 %v922
      %1092 = vmatmul.mubr.bf16.gmra.mrb[0].mxu0 %v921
      %v1093 = vpop.f32.mrb[0].mxu0
      %v1094 = vadd.f32 %v961, %v1093
      %v1095 = vpop.f32.mrb[0].mxu0
      %v1096 = vpop.f32.mrb[0].mxu0
      %v1097 = vadd.f32 %v961, %v1096
      %v1098 = vpop.f32.mrb[0].mxu0
      %1099 = vmatprep.mubr.bf16.mxu0 %v924
      %1100 = vmatmul.mubr.bf16.gmra.mrb[0].mxu0 %v923
      %v1101 = vpop.f32.mrb[0].mxu0
      %v1102 = vadd.f32 %v961, %v1101
      %v1103 = vpop.f32.mrb[0].mxu0
      %v1104 = vpop.f32.mrb[0].mxu0
      %v1105 = vadd.f32 %v961, %v1104
      %v1106 = vpop.f32.mrb[0].mxu0
      %1107 = vdwg.mxu0
      %v1108 = vmul.f32 %v1094, 0.2
      %v1109 = vmul.f32 %v1097, 0.2
      %v1110 = vmul.f32 %v1102, 0.2
      %v1111 = vmul.f32 %v1105, 0.2
      %v1112 = vmax.f32 %v1094, %v1108
      %v1113 = vmax.f32 %v1097, %v1109
      %v1114 = vmax.f32 %v1102, %v1110
      %v1115 = vmax.f32 %v1105, %v1111
      %v1116 = vpack.c.bf16 %v1113, %v1112
      %v1117 = vpack.c.bf16 %v1115, %v1114
      %v1118 = vld [vmem:[%s5] sm:$0xf]
      %v1119 = vld [vmem:[%s5 + $0x4] sm:$0xf]
      %v1120 = vld [vmem:[%s5 + $0x8] sm:$0xf]
      %v1121 = vld [vmem:[%s5 + $0xc] sm:$0xf]
      %v1122 = vld [vmem:[%s5 + $0x10] sm:$0xf]
      %v1123 = vld [vmem:[%s5 + $0x14] sm:$0xf]
      %v1124 = vld [vmem:[%s5 + $0x18] sm:$0xf]
      %v1125 = vld [vmem:[%s5 + $0x1c] sm:$0xf]
      %v1127 = vlaneseq
      %v1128 = vshrl.u32 %v1127, 7
      %v1129 = vsub.s32 0, %v1128
      %v1130 = vrot.slane %v566, %v1129
      %v1140 = vunpack.c.l.b16 %v1118
      %v1141 = vunpack.c.l.b16 %v1119
      %v1142 = vunpack.c.l.b16 %v1120
      %v1143 = vunpack.c.l.b16 %v1121
      %v1144 = vunpack.c.l.b16 %v1122
      %v1145 = vunpack.c.l.b16 %v1123
      %v1146 = vunpack.c.l.b16 %v1124
      %v1147 = vunpack.c.l.b16 %v1125
      %v1148 = vpack.c.b16 %v1141, %v1140
      %v1149 = vpack.c.b16 %v1143, %v1142
      %v1150 = vpack.c.b16 %v1145, %v1144
      %v1151 = vpack.c.b16 %v1147, %v1146
      %v1157 = vsel %vm845, %v1116, 0
      %v1160 = vsel %vm845, %v1117, 0
      %1162 = vmatprep.subr.bf16.mxu0 0
      %1163 = vmatpush1.bf16.msra.mxu0 %v1148
      %1164 = vmatprep.subr.bf16.mxu0 0
      %1165 = vmatpush1.bf16.msra.mxu0 %v1149
      %1166 = vmatprep.subr.bf16.mxu0 0
      %1167 = vmatpush1.bf16.msra.mxu0 %v1150
      %1168 = vmatprep.subr.bf16.mxu0 0
      %1169 = vmatpush1.bf16.msra.mxu0 %v1151
      %1170 = vmatprep.subr.bf16.mxu0 0
      %1171 = vmatpush1.bf16.msra.mxu0 0
      %1172 = vmatprep.subr.bf16.mxu0 0
      %1173 = vmatpush1.bf16.msra.mxu0 0
      %1174 = vmatprep.subr.bf16.mxu0 0
      %1175 = vmatpush1.bf16.msra.mxu0 0
      %1176 = vmatprep.subr.bf16.mxu0 0
      %1177 = vmatpush1.bf16.msra.mxu0 0
      %1178 = vmatprep.subr.bf16.mxu0 0
      %1179 = vmatpush1.bf16.msra.mxu0 0
      %1180 = vmatprep.subr.bf16.mxu0 0
      %1181 = vmatpush1.bf16.msra.mxu0 0
      %1182 = vmatprep.subr.bf16.mxu0 0
      %1183 = vmatpush1.bf16.msra.mxu0 0
      %1184 = vmatprep.subr.bf16.mxu0 0
      %1185 = vmatpush1.bf16.msra.mxu0 0
      %1186 = vmatprep.subr.bf16.mxu0 0
      %1187 = vmatpush1.bf16.msra.mxu0 0
      %1188 = vmatprep.subr.bf16.mxu0 0
      %1189 = vmatpush1.bf16.msra.mxu0 0
      %1190 = vmatprep.subr.bf16.mxu0 0
      %1191 = vmatpush1.bf16.msra.mxu0 0
      %1192 = vmatprep.subr.bf16.mxu0 0
      %1193 = vmatpush1.bf16.msra.mxu0 0
      %1194 = vmatprep.mubr.bf16.mxu0 0
      %1195 = vmatmul.mubr.bf16.gmra.mrb[0].mxu0 %v1157
      %v1196 = vpop.f32.mrb[0].mxu0
      %v1197 = vadd.f32 %v1130, %v1196
      %v1198 = vpop.f32.mrb[0].mxu0
      %v1199 = vpop.f32.mrb[0].mxu0
      %v1200 = vadd.f32 %v1130, %v1199
      %v1201 = vpop.f32.mrb[0].mxu0
      %1202 = vmatprep.mubr.bf16.mxu0 0
      %1203 = vmatmul.mubr.bf16.gmra.mrb[0].mxu0 %v1160
      %v1204 = vpop.f32.mrb[0].mxu0
      %v1205 = vadd.f32 %v1130, %v1204
      %v1206 = vpop.f32.mrb[0].mxu0
      %v1207 = vpop.f32.mrb[0].mxu0
      %v1208 = vadd.f32 %v1130, %v1207
      %v1209 = vpop.f32.mrb[0].mxu0
      %1210 = vdwg.mxu0
      %1211 = vxpose.xlu0.b32.start [1/16] %v1197, 128
      %1212 = vxpose.xlu0.b32.cont [2/16] %v1200, 128
      %1213 = vxpose.xlu0.b32.cont [3/16] %v1205, 128
      %1214 = vxpose.xlu0.b32.cont [4/16] %v1208, 128
      %1215 = vxpose.xlu0.b32.cont [5/16] 0.0, 128
      %1216 = vxpose.xlu0.b32.cont [6/16] 0.0, 128
      %1217 = vxpose.xlu0.b32.cont [7/16] 0.0, 128
      %1218 = vxpose.xlu0.b32.cont [8/16] 0.0, 128
      %1219 = vxpose.xlu0.b32.cont [9/16] 0.0, 128
      %1220 = vxpose.xlu0.b32.cont [10/16] 0.0, 128
      %1221 = vxpose.xlu0.b32.cont [11/16] 0.0, 128
      %1222 = vxpose.xlu0.b32.cont [12/16] 0.0, 128
      %1223 = vxpose.xlu0.b32.cont [13/16] 0.0, 128
      %1224 = vxpose.xlu0.b32.cont [14/16] 0.0, 128
      %1225 = vxpose.xlu0.b32.cont [15/16] 0.0, 128
      %1226 = vxpose.xlu0.b32.end [16/16] 0.0, 128
      %v1227 = vpop.trf.xlu0
      %v1228 = vpop.trf.xlu0
      %v1229 = vpop.trf.xlu0
      %v1230 = vpop.trf.xlu0
      %v1231 = vpop.trf.xlu0
      %v1232 = vpop.trf.xlu0
      %v1233 = vpop.trf.xlu0
      %v1234 = vpop.trf.xlu0
      %v1235 = vpop.trf.xlu0
      %v1236 = vpop.trf.xlu0
      %v1237 = vpop.trf.xlu0
      %v1238 = vpop.trf.xlu0
      %v1239 = vpop.trf.xlu0
      %v1240 = vpop.trf.xlu0
      %v1241 = vpop.trf.xlu0
      %v1242 = vpop.trf.xlu0
      %v1243 = vmul.f32 %v1227, 0.17677669
      %v1244 = vmul.f32 %v1228, 0.17677669
      %v1245 = vpack.c.bf16 %v1244, %v1243
      %v1247 = vsel %vm609, %v1245, 0
      %1249 = vmatprep.subr.bf16.mxu0 0
      %1250 = vmatpush1.bf16.xpose.msra.mxu0 %v611
      %1251 = vmatprep.subr.bf16.mxu0 0
      %1252 = vmatpush1.bf16.xpose.msra.mxu0 %v614
      %1253 = vmatprep.subr.bf16.mxu0 0
      %1254 = vmatpush1.bf16.xpose.msra.mxu0 %v617
      %1255 = vmatprep.subr.bf16.mxu0 0
      %1256 = vmatpush1.bf16.xpose.msra.mxu0 %v620
      %1257 = vmatprep.subr.bf16.mxu0 0
      %1258 = vmatpush1.bf16.xpose.msra.mxu0 0
      %1259 = vmatprep.subr.bf16.mxu0 0
      %1260 = vmatpush1.bf16.xpose.msra.mxu0 0
      %1261 = vmatprep.subr.bf16.mxu0 0
      %1262 = vmatpush1.bf16.xpose.msra.mxu0 0
      %1263 = vmatprep.subr.bf16.mxu0 0
      %1264 = vmatpush1.bf16.xpose.msra.mxu0 0
      %1265 = vmatprep.subr.bf16.mxu0 0
      %1266 = vmatpush1.bf16.xpose.msra.mxu0 0
      %1267 = vmatprep.subr.bf16.mxu0 0
      %1268 = vmatpush1.bf16.xpose.msra.mxu0 0
      %1269 = vmatprep.subr.bf16.mxu0 0
      %1270 = vmatpush1.bf16.xpose.msra.mxu0 0
      %1271 = vmatprep.subr.bf16.mxu0 0
      %1272 = vmatpush1.bf16.xpose.msra.mxu0 0
      %1273 = vmatprep.subr.bf16.mxu0 0
      %1274 = vmatpush1.bf16.xpose.msra.mxu0 0
      %1275 = vmatprep.subr.bf16.mxu0 0
      %1276 = vmatpush1.bf16.xpose.msra.mxu0 0
      %1277 = vmatprep.subr.bf16.mxu0 0
      %1278 = vmatpush1.bf16.xpose.msra.mxu0 0
      %1279 = vmatprep.subr.bf16.mxu0 0
      %1280 = vmatpush1.bf16.xpose.msra.mxu0 0
      %1281 = vmatprep.mubr.bf16.mxu0 0
      %1282 = vmatmul.mubr.bf16.gmra.mrb[0].mxu0 %v1247
      %v1283 = vpop.f32.mrb[0].mxu0
      %v1284 = vadd.f32 0.0, %v1283
      %v1285 = vpop.f32.mrb[0].mxu0
      %v1286 = vpop.f32.mrb[0].mxu0
      %v1287 = vadd.f32 0.0, %v1286
      %v1288 = vpop.f32.mrb[0].mxu0
      %1289 = vdwg.mxu0
      %v1290 = vsel %vm845, %v1284, -inf
      %1291 = vmax.xlane.f32.xlu0 %v1290
      %v1292 = vpop.xlane.xlu0 %1291
      %v1293 = vsel %vm845, %v1287, -inf
      %1294 = vmax.xlane.f32.xlu0 %v1293
      %v1295 = vpop.xlane.xlu0 %1294
      %v1296 = vsub.f32 %v1284, %v1292
      %v1297 = vsub.f32 %v1287, %v1295
      %v1298 = vmul.f32 %v1296, 1.442695
      %v1299 = vpow.pop %v1298
      %v1300 = vmul.f32 %v1297, 1.442695
      %v1301 = vpow.pop %v1300
      %v1302 = vsel %vm845, %v1299, 0.0
      %1303 = vadd.xlane.f32.xlu0 %v1302
      %v1304 = vpop.xlane.xlu0 %1303
      %v1305 = vsel %vm845, %v1301, 0.0
      %1306 = vadd.xlane.f32.xlu0 %v1305
      %v1307 = vpop.xlane.xlu0 %1306
      %v1308 = vrcp.pop %v1304
      %v1309 = vrcp.pop %v1307
      %v1310 = vmul.f32 %v1299, %v1308
      %v1311 = vmul.f32 %v1301, %v1309
      %v1312 = vpack.c.bf16 %v1311, %v1310
      %v1313 = vpack.c.bf16 %v582, %v581
      %v1314 = vpack.c.bf16 %v584, %v583
      %v1315 = vpack.c.bf16 %v586, %v585
      %v1316 = vpack.c.bf16 %v588, %v587
      %v1318 = vsel %vm845, %v1312, 0
      %1320 = vmatprep.subr.bf16.mxu0 0
      %1321 = vmatpush1.bf16.msra.mxu0 %v1313
      %1322 = vmatprep.subr.bf16.mxu0 0
      %1323 = vmatpush1.bf16.msra.mxu0 %v1314
      %1324 = vmatprep.subr.bf16.mxu0 0
      %1325 = vmatpush1.bf16.msra.mxu0 %v1315
      %1326 = vmatprep.subr.bf16.mxu0 0
      %1327 = vmatpush1.bf16.msra.mxu0 %v1316
      %1328 = vmatprep.subr.bf16.mxu0 0
      %1329 = vmatpush1.bf16.msra.mxu0 0
      %1330 = vmatprep.subr.bf16.mxu0 0
      %1331 = vmatpush1.bf16.msra.mxu0 0
      %1332 = vmatprep.subr.bf16.mxu0 0
      %1333 = vmatpush1.bf16.msra.mxu0 0
      %1334 = vmatprep.subr.bf16.mxu0 0
      %1335 = vmatpush1.bf16.msra.mxu0 0
      %1336 = vmatprep.subr.bf16.mxu0 0
      %1337 = vmatpush1.bf16.msra.mxu0 0
      %1338 = vmatprep.subr.bf16.mxu0 0
      %1339 = vmatpush1.bf16.msra.mxu0 0
      %1340 = vmatprep.subr.bf16.mxu0 0
      %1341 = vmatpush1.bf16.msra.mxu0 0
      %1342 = vmatprep.subr.bf16.mxu0 0
      %1343 = vmatpush1.bf16.msra.mxu0 0
      %1344 = vmatprep.subr.bf16.mxu0 0
      %1345 = vmatpush1.bf16.msra.mxu0 0
      %1346 = vmatprep.subr.bf16.mxu0 0
      %1347 = vmatpush1.bf16.msra.mxu0 0
      %1348 = vmatprep.subr.bf16.mxu0 0
      %1349 = vmatpush1.bf16.msra.mxu0 0
      %1350 = vmatprep.subr.bf16.mxu0 0
      %1351 = vmatpush1.bf16.msra.mxu0 0
      %1352 = vmatprep.mubr.bf16.mxu0 0
      %1353 = vmatmul.mubr.bf16.gmra.mrb[0].mxu0 %v1318
      %v1354 = vpop.f32.mrb[0].mxu0
      %v1355 = vadd.f32 0.0, %v1354
      %v1356 = vpop.f32.mrb[0].mxu0
      %v1357 = vpop.f32.mrb[0].mxu0
      %v1358 = vadd.f32 0.0, %v1357
      %v1359 = vpop.f32.mrb[0].mxu0
      %1360 = vdwg.mxu0
      %v1361 = vpack.c.bf16 %v743, %v743
      %v1362 = vld [vmem:[%s7] sm:$0xf]
      %v1363 = vld [vmem:[%s7 + $0x4] sm:$0xf]
      %v1364 = vld [vmem:[%s7 + $0x8] sm:$0xf]
      %v1365 = vld [vmem:[%s7 + $0xc] sm:$0xf]
      %v1370 = vunpack.c.l.b16 %v1362
      %v1371 = vunpack.c.l.b16 %v1363
      %v1372 = vunpack.c.l.b16 %v1364
      %v1373 = vunpack.c.l.b16 %v1365
      %v1374 = vpack.c.b16 %v1371, %v1370
      %v1375 = vpack.c.b16 %v1373, %v1372
      %v1379 = vsel %vm609, %v1361, 0
      %1381 = vmatprep.subr.bf16.mxu0 0
      %1382 = vmatpush1.bf16.msra.mxu0 %v1374
      %1383 = vmatprep.subr.bf16.mxu0 0
      %1384 = vmatpush1.bf16.msra.mxu0 %v1375
      %1385 = vmatprep.subr.bf16.mxu0 0
      %1386 = vmatpush1.bf16.msra.mxu0 0
      %1387 = vmatprep.subr.bf16.mxu0 0
      %1388 = vmatpush1.bf16.msra.mxu0 0
      %1389 = vmatprep.subr.bf16.mxu0 0
      %1390 = vmatpush1.bf16.msra.mxu0 0
      %1391 = vmatprep.subr.bf16.mxu0 0
      %1392 = vmatpush1.bf16.msra.mxu0 0
      %1393 = vmatprep.subr.bf16.mxu0 0
      %1394 = vmatpush1.bf16.msra.mxu0 0
      %1395 = vmatprep.subr.bf16.mxu0 0
      %1396 = vmatpush1.bf16.msra.mxu0 0
      %1397 = vmatprep.subr.bf16.mxu0 0
      %1398 = vmatpush1.bf16.msra.mxu0 0
      %1399 = vmatprep.subr.bf16.mxu0 0
      %1400 = vmatpush1.bf16.msra.mxu0 0
      %1401 = vmatprep.subr.bf16.mxu0 0
      %1402 = vmatpush1.bf16.msra.mxu0 0
      %1403 = vmatprep.subr.bf16.mxu0 0
      %1404 = vmatpush1.bf16.msra.mxu0 0
      %1405 = vmatprep.subr.bf16.mxu0 0
      %1406 = vmatpush1.bf16.msra.mxu0 0
      %1407 = vmatprep.subr.bf16.mxu0 0
      %1408 = vmatpush1.bf16.msra.mxu0 0
      %1409 = vmatprep.subr.bf16.mxu0 0
      %1410 = vmatpush1.bf16.msra.mxu0 0
      %1411 = vmatprep.subr.bf16.mxu0 0
      %1412 = vmatpush1.bf16.msra.mxu0 0
      %1413 = vmatprep.mubr.bf16.mxu0 0
      %1414 = vmatmul.mubr.bf16.gmra.mrb[0].mxu0 %v1379
      %v1415 = vpop.f32.mrb[0].mxu0
      %v1416 = vadd.f32 0.0, %v1415
      %v1417 = vpop.f32.mrb[0].mxu0
      %v1418 = vpop.f32.mrb[0].mxu0
      %v1419 = vpop.f32.mrb[0].mxu0
      %1420 = vdwg.mxu0
      %v1421 = vpack.c.bf16 %v1358, %v1355
      %v1422 = vld [vmem:[%s6] sm:$0x3]
      %v1423 = vlaneseq
      %v1424 = vshrl.u32 %v1423, 7
      %v1425 = vsub.s32 0, %v1424
      %v1426 = vrot.slane %v1416, %v1425
      %vm1427 = vcmask 23552
      %v1429 = vsel %vm1427, %v1421, 0
      %vm1431 = vcmask 1040384
      %vm1432 = vcmask 1041408
      %v1433 = vsel %vm1431, 4294967295, 65535
      %v1434 = vsel %vm1432, %v1433, 0
      %v1436 = vand.u32 %v1422, %v1434
      %1438 = vmatprep.subr.bf16.mxu0 0
      %1439 = vmatpush1.bf16.msra.mxu0 %v1436
      %1440 = vmatprep.subr.bf16.mxu0 0
      %1441 = vmatpush1.bf16.msra.mxu0 0
      %1442 = vmatprep.subr.bf16.mxu0 0
      %1443 = vmatpush1.bf16.msra.mxu0 0
      %1444 = vmatprep.subr.bf16.mxu0 0
      %1445 = vmatpush1.bf16.msra.mxu0 0
      %1446 = vmatprep.subr.bf16.mxu0 0
      %1447 = vmatpush1.bf16.msra.mxu0 0
      %1448 = vmatprep.subr.bf16.mxu0 0
      %1449 = vmatpush1.bf16.msra.mxu0 0
      %1450 = vmatprep.subr.bf16.mxu0 0
      %1451 = vmatpush1.bf16.msra.mxu0 0
      %1452 = vmatprep.subr.bf16.mxu0 0
      %1453 = vmatpush1.bf16.msra.mxu0 0
      %1454 = vmatprep.subr.bf16.mxu0 0
      %1455 = vmatpush1.bf16.msra.mxu0 0
      %1456 = vmatprep.subr.bf16.mxu0 0
      %1457 = vmatpush1.bf16.msra.mxu0 0
      %1458 = vmatprep.subr.bf16.mxu0 0
      %1459 = vmatpush1.bf16.msra.mxu0 0
      %1460 = vmatprep.subr.bf16.mxu0 0
      %1461 = vmatpush1.bf16.msra.mxu0 0
      %1462 = vmatprep.subr.bf16.mxu0 0
      %1463 = vmatpush1.bf16.msra.mxu0 0
      %1464 = vmatprep.subr.bf16.mxu0 0
      %1465 = vmatpush1.bf16.msra.mxu0 0
      %1466 = vmatprep.subr.bf16.mxu0 0
      %1467 = vmatpush1.bf16.msra.mxu0 0
      %1468 = vmatprep.subr.bf16.mxu0 0
      %1469 = vmatpush1.bf16.msra.mxu0 0
      %1470 = vmatprep.mubr.bf16.mxu0 0
      %1471 = vmatmul.mubr.bf16.gmra.mrb[0].mxu0 %v1429
      %v1472 = vpop.f32.mrb[0].mxu0
      %v1473 = vadd.f32 %v1426, %v1472
      %v1474 = vpop.f32.mrb[0].mxu0
      %v1475 = vpop.f32.mrb[0].mxu0
      %v1476 = vadd.f32 %v1426, %v1475
      %v1477 = vpop.f32.mrb[0].mxu0
      %1478 = vdwg.mxu0
      %v1480 = vlaneseq
      %v1481 = vshrl.u32 %v1480, 7
      %v1482 = vsub.s32 0, %v1481
      %v1483 = vrot.slane %v567, %v1482
      %v1485 = vadd.f32 %v1473, %v1483
      %v1486 = vadd.f32 %v1476, %v1483
      %v1487 = vmax.f32 %v1485, 0.0
      %v1488 = vmax.f32 %v1486, 0.0
      %v1489 = vpack.c.bf16 %v1488, %v1487
      %v1490 = vld [vmem:[%s8] sm:$0xf]
      %v1491 = vld [vmem:[%s8 + $0x4] sm:$0xf]
      %v1493 = vlaneseq
      %v1494 = vshrl.u32 %v1493, 7
      %v1495 = vsub.s32 0, %v1494
      %v1496 = vrot.slane %v568, %v1495
      %v1500 = vunpack.c.l.b16 %v1490
      %v1501 = vunpack.c.l.b16 %v1491
      %v1502 = vpack.c.b16 %v1501, %v1500
      %vm1504 = vcmask 130048
      %v1506 = vsel %vm1504, %v1489, 0
      %1508 = vmatprep.subr.bf16.mxu0 0
      %1509 = vmatpush1.bf16.msra.mxu0 %v1502
      %1510 = vmatprep.subr.bf16.mxu0 0
      %1511 = vmatpush1.bf16.msra.mxu0 0
      %1512 = vmatprep.subr.bf16.mxu0 0
      %1513 = vmatpush1.bf16.msra.mxu0 0
      %1514 = vmatprep.subr.bf16.mxu0 0
      %1515 = vmatpush1.bf16.msra.mxu0 0
      %1516 = vmatprep.subr.bf16.mxu0 0
      %1517 = vmatpush1.bf16.msra.mxu0 0
      %1518 = vmatprep.subr.bf16.mxu0 0
      %1519 = vmatpush1.bf16.msra.mxu0 0
      %1520 = vmatprep.subr.bf16.mxu0 0
      %1521 = vmatpush1.bf16.msra.mxu0 0
      %1522 = vmatprep.subr.bf16.mxu0 0
      %1523 = vmatpush1.bf16.msra.mxu0 0
      %1524 = vmatprep.subr.bf16.mxu0 0
      %1525 = vmatpush1.bf16.msra.mxu0 0
      %1526 = vmatprep.subr.bf16.mxu0 0
      %1527 = vmatpush1.bf16.msra.mxu0 0
      %1528 = vmatprep.subr.bf16.mxu0 0
      %1529 = vmatpush1.bf16.msra.mxu0 0
      %1530 = vmatprep.subr.bf16.mxu0 0
      %1531 = vmatpush1.bf16.msra.mxu0 0
      %1532 = vmatprep.subr.bf16.mxu0 0
      %1533 = vmatpush1.bf16.msra.mxu0 0
      %1534 = vmatprep.subr.bf16.mxu0 0
      %1535 = vmatpush1.bf16.msra.mxu0 0
      %1536 = vmatprep.subr.bf16.mxu0 0
      %1537 = vmatpush1.bf16.msra.mxu0 0
      %1538 = vmatprep.subr.bf16.mxu0 0
      %1539 = vmatpush1.bf16.msra.mxu0 0
      %1540 = vmatprep.mubr.bf16.mxu0 0
      %1541 = vmatmul.mubr.bf16.gmra.mrb[0].mxu0 %v1506
      %v1542 = vpop.f32.mrb[0].mxu0
      %v1543 = vadd.f32 %v1496, %v1542
      %v1544 = vpop.f32.mrb[0].mxu0
      %v1545 = vpop.f32.mrb[0].mxu0
      %v1546 = vadd.f32 %v1496, %v1545
      %v1547 = vpop.f32.mrb[0].mxu0
      %1548 = vdwg.mxu0
      %v1549 = vmax.f32 %v1543, 0.0
      %v1550 = vmax.f32 %v1546, 0.0
      %v1551 = vpack.c.bf16 %v1550, %v1549
      %v1552 = vld [vmem:[%s9] sm:$0xf]
      %v1554 = vlaneseq
      %v1555 = vshrl.u32 %v1554, 7
      %v1556 = vsub.s32 0, %v1555
      %v1557 = vrot.slane %v569, %v1556
      %vm1559 = vcmask 64512
      %v1561 = vsel %vm1559, %v1551, 0
      %vm1563 = vcmask 1043456
      %v1565 = vsel %vm1563, %v1552, 0
      %1567 = vmatprep.subr.bf16.mxu0 0
      %1568 = vmatpush1.bf16.msra.mxu0 %v1565
      %1569 = vmatprep.subr.bf16.mxu0 0
      %1570 = vmatpush1.bf16.msra.mxu0 0
      %1571 = vmatprep.subr.bf16.mxu0 0
      %1572 = vmatpush1.bf16.msra.mxu0 0
      %1573 = vmatprep.subr.bf16.mxu0 0
      %1574 = vmatpush1.bf16.msra.mxu0 0
      %1575 = vmatprep.subr.bf16.mxu0 0
      %1576 = vmatpush1.bf16.msra.mxu0 0
      %1577 = vmatprep.subr.bf16.mxu0 0
      %1578 = vmatpush1.bf16.msra.mxu0 0
      %1579 = vmatprep.subr.bf16.mxu0 0
      %1580 = vmatpush1.bf16.msra.mxu0 0
      %1581 = vmatprep.subr.bf16.mxu0 0
      %1582 = vmatpush1.bf16.msra.mxu0 0
      %1583 = vmatprep.subr.bf16.mxu0 0
      %1584 = vmatpush1.bf16.msra.mxu0 0
      %1585 = vmatprep.subr.bf16.mxu0 0
      %1586 = vmatpush1.bf16.msra.mxu0 0
      %1587 = vmatprep.subr.bf16.mxu0 0
      %1588 = vmatpush1.bf16.msra.mxu0 0
      %1589 = vmatprep.subr.bf16.mxu0 0
      %1590 = vmatpush1.bf16.msra.mxu0 0
      %1591 = vmatprep.subr.bf16.mxu0 0
      %1592 = vmatpush1.bf16.msra.mxu0 0
      %1593 = vmatprep.subr.bf16.mxu0 0
      %1594 = vmatpush1.bf16.msra.mxu0 0
      %1595 = vmatprep.subr.bf16.mxu0 0
      %1596 = vmatpush1.bf16.msra.mxu0 0
      %1597 = vmatprep.subr.bf16.mxu0 0
      %1598 = vmatpush1.bf16.msra.mxu0 0
      %1599 = vmatprep.mubr.bf16.mxu0 0
      %1600 = vmatmul.mubr.bf16.gmra.mrb[0].mxu0 %v1561
      %v1601 = vpop.f32.mrb[0].mxu0
      %v1602 = vadd.f32 %v1557, %v1601
      %v1603 = vpop.f32.mrb[0].mxu0
      %v1604 = vpop.f32.mrb[0].mxu0
      %v1605 = vadd.f32 %v1557, %v1604
      %v1606 = vpop.f32.mrb[0].mxu0
      %1607 = vdwg.mxu0
      %v1608 = vld [vmem:[%s11] sm:$0xf]
      %v1609 = vld [vmem:[%s11 + $0x4] sm:$0xf]
      %v1610 = vld [vmem:[%s11 + $0x8] sm:$0xf]
      %v1611 = vld [vmem:[%s11 + $0xc] sm:$0xf]
      %v1616 = vunpack.c.l.b16 %v1608
      %v1617 = vunpack.c.l.b16 %v1609
      %v1618 = vunpack.c.l.b16 %v1610
      %v1619 = vunpack.c.l.b16 %v1611
      %v1620 = vpack.c.b16 %v1617, %v1616
      %v1621 = vpack.c.b16 %v1619, %v1618
      %1624 = vmatprep.subr.bf16.mxu0 0
      %1625 = vmatpush1.bf16.msra.mxu0 %v1620
      %1626 = vmatprep.subr.bf16.mxu0 0
      %1627 = vmatpush1.bf16.msra.mxu0 %v1621
      %1628 = vmatprep.subr.bf16.mxu0 0
      %1629 = vmatpush1.bf16.msra.mxu0 0
      %1630 = vmatprep.subr.bf16.mxu0 0
      %1631 = vmatpush1.bf16.msra.mxu0 0
      %1632 = vmatprep.subr.bf16.mxu0 0
      %1633 = vmatpush1.bf16.msra.mxu0 0
      %1634 = vmatprep.subr.bf16.mxu0 0
      %1635 = vmatpush1.bf16.msra.mxu0 0
      %1636 = vmatprep.subr.bf16.mxu0 0
      %1637 = vmatpush1.bf16.msra.mxu0 0
      %1638 = vmatprep.subr.bf16.mxu0 0
      %1639 = vmatpush1.bf16.msra.mxu0 0
      %1640 = vmatprep.subr.bf16.mxu0 0
      %1641 = vmatpush1.bf16.msra.mxu0 0
      %1642 = vmatprep.subr.bf16.mxu0 0
      %1643 = vmatpush1.bf16.msra.mxu0 0
      %1644 = vmatprep.subr.bf16.mxu0 0
      %1645 = vmatpush1.bf16.msra.mxu0 0
      %1646 = vmatprep.subr.bf16.mxu0 0
      %1647 = vmatpush1.bf16.msra.mxu0 0
      %1648 = vmatprep.subr.bf16.mxu0 0
      %1649 = vmatpush1.bf16.msra.mxu0 0
      %1650 = vmatprep.subr.bf16.mxu0 0
      %1651 = vmatpush1.bf16.msra.mxu0 0
      %1652 = vmatprep.subr.bf16.mxu0 0
      %1653 = vmatpush1.bf16.msra.mxu0 0
      %1654 = vmatprep.subr.bf16.mxu0 0
      %1655 = vmatpush1.bf16.msra.mxu0 0
      %1656 = vmatprep.mubr.bf16.mxu0 0
      %1657 = vmatmul.mubr.bf16.gmra.mrb[0].mxu0 %v1379
      %v1658 = vpop.f32.mrb[0].mxu0
      %v1659 = vadd.f32 0.0, %v1658
      %v1660 = vpop.f32.mrb[0].mxu0
      %v1661 = vpop.f32.mrb[0].mxu0
      %v1662 = vpop.f32.mrb[0].mxu0
      %1663 = vdwg.mxu0
      %v1664 = vpack.c.bf16 %v1605, %v1602
      %v1665 = vld [vmem:[%s10] sm:$0x3]
      %v1666 = vlaneseq
      %v1667 = vshrl.u32 %v1666, 7
      %v1668 = vsub.s32 0, %v1667
      %v1669 = vrot.slane %v1659, %v1668
      %v1671 = vsel %vm1427, %v1664, 0
      %v1674 = vand.u32 %v1665, %v1434
      %1676 = vmatprep.subr.bf16.mxu0 0
      %1677 = vmatpush1.bf16.msra.mxu0 %v1674
      %1678 = vmatprep.subr.bf16.mxu0 0
      %1679 = vmatpush1.bf16.msra.mxu0 0
      %1680 = vmatprep.subr.bf16.mxu0 0
      %1681 = vmatpush1.bf16.msra.mxu0 0
      %1682 = vmatprep.subr.bf16.mxu0 0
      %1683 = vmatpush1.bf16.msra.mxu0 0
      %1684 = vmatprep.subr.bf16.mxu0 0
      %1685 = vmatpush1.bf16.msra.mxu0 0
      %1686 = vmatprep.subr.bf16.mxu0 0
      %1687 = vmatpush1.bf16.msra.mxu0 0
      %1688 = vmatprep.subr.bf16.mxu0 0
      %1689 = vmatpush1.bf16.msra.mxu0 0
      %1690 = vmatprep.subr.bf16.mxu0 0
      %1691 = vmatpush1.bf16.msra.mxu0 0
      %1692 = vmatprep.subr.bf16.mxu0 0
      %1693 = vmatpush1.bf16.msra.mxu0 0
      %1694 = vmatprep.subr.bf16.mxu0 0
      %1695 = vmatpush1.bf16.msra.mxu0 0
      %1696 = vmatprep.subr.bf16.mxu0 0
      %1697 = vmatpush1.bf16.msra.mxu0 0
      %1698 = vmatprep.subr.bf16.mxu0 0
      %1699 = vmatpush1.bf16.msra.mxu0 0
      %1700 = vmatprep.subr.bf16.mxu0 0
      %1701 = vmatpush1.bf16.msra.mxu0 0
      %1702 = vmatprep.subr.bf16.mxu0 0
      %1703 = vmatpush1.bf16.msra.mxu0 0
      %1704 = vmatprep.subr.bf16.mxu0 0
      %1705 = vmatpush1.bf16.msra.mxu0 0
      %1706 = vmatprep.subr.bf16.mxu0 0
      %1707 = vmatpush1.bf16.msra.mxu0 0
      %1708 = vmatprep.mubr.bf16.mxu0 0
      %1709 = vmatmul.mubr.bf16.gmra.mrb[0].mxu0 %v1671
      %v1710 = vpop.f32.mrb[0].mxu0
      %v1711 = vadd.f32 %v1669, %v1710
      %v1712 = vpop.f32.mrb[0].mxu0
      %v1713 = vpop.f32.mrb[0].mxu0
      %v1714 = vadd.f32 %v1669, %v1713
      %v1715 = vpop.f32.mrb[0].mxu0
      %1716 = vdwg.mxu0
      %v1718 = vlaneseq
      %v1719 = vshrl.u32 %v1718, 7
      %v1720 = vsub.s32 0, %v1719
      %v1721 = vrot.slane %v570, %v1720
      %v1723 = vadd.f32 %v1711, %v1721
      %v1724 = vadd.f32 %v1714, %v1721
      %v1725 = vmax.f32 %v1723, 0.0
      %v1726 = vmax.f32 %v1724, 0.0
      %v1727 = vpack.c.bf16 %v1726, %v1725
      %v1728 = vld [vmem:[%s12] sm:$0xf]
      %v1729 = vld [vmem:[%s12 + $0x4] sm:$0xf]
      %v1731 = vlaneseq
      %v1732 = vshrl.u32 %v1731, 7
      %v1733 = vsub.s32 0, %v1732
      %v1734 = vrot.slane %v571, %v1733
      %v1738 = vunpack.c.l.b16 %v1728
      %v1739 = vunpack.c.l.b16 %v1729
      %v1740 = vpack.c.b16 %v1739, %v1738
      %v1743 = vsel %vm1504, %v1727, 0
      %1745 = vmatprep.subr.bf16.mxu0 0
      %1746 = vmatpush1.bf16.msra.mxu0 %v1740
      %1747 = vmatprep.subr.bf16.mxu0 0
      %1748 = vmatpush1.bf16.msra.mxu0 0
      %1749 = vmatprep.subr.bf16.mxu0 0
      %1750 = vmatpush1.bf16.msra.mxu0 0
      %1751 = vmatprep.subr.bf16.mxu0 0
      %1752 = vmatpush1.bf16.msra.mxu0 0
      %1753 = vmatprep.subr.bf16.mxu0 0
      %1754 = vmatpush1.bf16.msra.mxu0 0
      %1755 = vmatprep.subr.bf16.mxu0 0
      %1756 = vmatpush1.bf16.msra.mxu0 0
      %1757 = vmatprep.subr.bf16.mxu0 0
      %1758 = vmatpush1.bf16.msra.mxu0 0
      %1759 = vmatprep.subr.bf16.mxu0 0
      %1760 = vmatpush1.bf16.msra.mxu0 0
      %1761 = vmatprep.subr.bf16.mxu0 0
      %1762 = vmatpush1.bf16.msra.mxu0 0
      %1763 = vmatprep.subr.bf16.mxu0 0
      %1764 = vmatpush1.bf16.msra.mxu0 0
      %1765 = vmatprep.subr.bf16.mxu0 0
      %1766 = vmatpush1.bf16.msra.mxu0 0
      %1767 = vmatprep.subr.bf16.mxu0 0
      %1768 = vmatpush1.bf16.msra.mxu0 0
      %1769 = vmatprep.subr.bf16.mxu0 0
      %1770 = vmatpush1.bf16.msra.mxu0 0
      %1771 = vmatprep.subr.bf16.mxu0 0
      %1772 = vmatpush1.bf16.msra.mxu0 0
      %1773 = vmatprep.subr.bf16.mxu0 0
      %1774 = vmatpush1.bf16.msra.mxu0 0
      %1775 = vmatprep.subr.bf16.mxu0 0
      %1776 = vmatpush1.bf16.msra.mxu0 0
      %1777 = vmatprep.mubr.bf16.mxu0 0
      %1778 = vmatmul.mubr.bf16.gmra.mrb[0].mxu0 %v1743
      %v1779 = vpop.f32.mrb[0].mxu0
      %v1780 = vadd.f32 %v1734, %v1779
      %v1781 = vpop.f32.mrb[0].mxu0
      %v1782 = vpop.f32.mrb[0].mxu0
      %v1783 = vadd.f32 %v1734, %v1782
      %v1784 = vpop.f32.mrb[0].mxu0
      %1785 = vdwg.mxu0
      %v1786 = vmax.f32 %v1780, 0.0
      %v1787 = vmax.f32 %v1783, 0.0
      %v1788 = vpack.c.bf16 %v1787, %v1786
      %v1789 = vld [vmem:[%s13] sm:$0xf]
      %v1791 = vlaneseq
      %v1792 = vshrl.u32 %v1791, 7
      %v1793 = vsub.s32 0, %v1792
      %v1794 = vrot.slane %v572, %v1793
      %v1797 = vsel %vm1559, %v1788, 0
      %v1800 = vsel %vm1563, %v1789, 0
      %1802 = vmatprep.subr.bf16.mxu0 0
      %1803 = vmatpush1.bf16.msra.mxu0 %v1800
      %1804 = vmatprep.subr.bf16.mxu0 0
      %1805 = vmatpush1.bf16.msra.mxu0 0
      %1806 = vmatprep.subr.bf16.mxu0 0
      %1807 = vmatpush1.bf16.msra.mxu0 0
      %1808 = vmatprep.subr.bf16.mxu0 0
      %1809 = vmatpush1.bf16.msra.mxu0 0
      %1810 = vmatprep.subr.bf16.mxu0 0
      %1811 = vmatpush1.bf16.msra.mxu0 0
      %1812 = vmatprep.subr.bf16.mxu0 0
      %1813 = vmatpush1.bf16.msra.mxu0 0
      %1814 = vmatprep.subr.bf16.mxu0 0
      %1815 = vmatpush1.bf16.msra.mxu0 0
      %1816 = vmatprep.subr.bf16.mxu0 0
      %1817 = vmatpush1.bf16.msra.mxu0 0
      %1818 = vmatprep.subr.bf16.mxu0 0
      %1819 = vmatpush1.bf16.msra.mxu0 0
      %1820 = vmatprep.subr.bf16.mxu0 0
      %1821 = vmatpush1.bf16.msra.mxu0 0
      %1822 = vmatprep.subr.bf16.mxu0 0
      %1823 = vmatpush1.bf16.msra.mxu0 0
      %1824 = vmatprep.subr.bf16.mxu0 0
      %1825 = vmatpush1.bf16.msra.mxu0 0
      %1826 = vmatprep.subr.bf16.mxu0 0
      %1827 = vmatpush1.bf16.msra.mxu0 0
      %1828 = vmatprep.subr.bf16.mxu0 0
      %1829 = vmatpush1.bf16.msra.mxu0 0
      %1830 = vmatprep.subr.bf16.mxu0 0
      %1831 = vmatpush1.bf16.msra.mxu0 0
      %1832 = vmatprep.subr.bf16.mxu0 0
      %1833 = vmatpush1.bf16.msra.mxu0 0
      %1834 = vmatprep.mubr.bf16.mxu0 0
      %1835 = vmatmul.mubr.bf16.gmra.mrb[0].mxu0 %v1797
      %v1836 = vpop.f32.mrb[0].mxu0
      %v1837 = vadd.f32 %v1794, %v1836
      %v1838 = vpop.f32.mrb[0].mxu0
      %v1839 = vpop.f32.mrb[0].mxu0
      %v1840 = vadd.f32 %v1794, %v1839
      %v1841 = vpop.f32.mrb[0].mxu0
      %1842 = vdwg.mxu0
      %1843 = vst.msk [vmem:[%s559] sm:$0xff] %vm609, %v573
      %1844 = vst.msk [vmem:[%s559 + $0x8] sm:$0xff] %vm609, %v574
      %1845 = vst.msk [vmem:[%s559 + $0x10] sm:$0xff] %vm609, %v575
      %1846 = vst.msk [vmem:[%s559 + $0x18] sm:$0xff] %vm609, %v576
      %1847 = vst.msk [vmem:[%s559 + $0x20] sm:$0xff] %vm609, %v577
      %1848 = vst.msk [vmem:[%s559 + $0x28] sm:$0xff] %vm609, %v578
      %1849 = vst.msk [vmem:[%s559 + $0x30] sm:$0xff] %vm609, %v579
      %1850 = vst.msk [vmem:[%s559 + $0x38] sm:$0xff] %vm609, %v580
      %1851 = vst.msk [vmem:[%s559 + $0x40] sm:$0xff] %vm609, %v715
      %1852 = vst.msk [vmem:[%s559 + $0x48] sm:$0xff] %vm609, %v716
      %1853 = vst.msk [vmem:[%s559 + $0x50] sm:$0xff] %vm609, %v717
      %1854 = vst.msk [vmem:[%s559 + $0x58] sm:$0xff] %vm609, %v718
      %1855 = vst.msk [vmem:[%s559 + $0x60] sm:$0xff] %vm609, %v719
      %1856 = vst.msk [vmem:[%s559 + $0x68] sm:$0xff] %vm609, %v720
      %1857 = vst.msk [vmem:[%s559 + $0x70] sm:$0xff] %vm609, %v721
      %1858 = vst.msk [vmem:[%s559 + $0x78] sm:$0xff] %vm609, %v722
      %1859 = vst.msk [vmem:[%s559 + $0x80] sm:$0xff] %vm609, %v1227
      %1860 = vst.msk [vmem:[%s559 + $0x88] sm:$0xff] %vm609, %v1228
      %1861 = vst.msk [vmem:[%s553] sm:$0xff] %vm1427, %v581
      %1862 = vst.msk [vmem:[%s553 + $0x8] sm:$0xff] %vm1427, %v582
      %1863 = vst.msk [vmem:[%s553 + $0x10] sm:$0xff] %vm1427, %v583
      %1864 = vst.msk [vmem:[%s553 + $0x18] sm:$0xff] %vm1427, %v584
      %1865 = vst.msk [vmem:[%s553 + $0x20] sm:$0xff] %vm1427, %v585
      %1866 = vst.msk [vmem:[%s553 + $0x28] sm:$0xff] %vm1427, %v586
      %1867 = vst.msk [vmem:[%s553 + $0x30] sm:$0xff] %vm1427, %v587
      %1868 = vst.msk [vmem:[%s553 + $0x38] sm:$0xff] %vm1427, %v588
      %1869 = vst.msk [vmem:[%s553 + $0x40] sm:$0xff] %vm1427, %v581
      %1870 = vst.msk [vmem:[%s553 + $0x48] sm:$0xff] %vm1427, %v582
      %1871 = vst.msk [vmem:[%s553 + $0x50] sm:$0xff] %vm1427, %v583
      %1872 = vst.msk [vmem:[%s553 + $0x58] sm:$0xff] %vm1427, %v584
      %1873 = vst.msk [vmem:[%s553 + $0x60] sm:$0xff] %vm1427, %v585
      %1874 = vst.msk [vmem:[%s553 + $0x68] sm:$0xff] %vm1427, %v586
      %1875 = vst.msk [vmem:[%s553 + $0x70] sm:$0xff] %vm1427, %v587
      %1876 = vst.msk [vmem:[%s553 + $0x78] sm:$0xff] %vm1427, %v588
      %1877 = vst.msk [vmem:[%s553 + $0x80] sm:$0xff] %vm1427, %v1837
      %1878 = vst.msk [vmem:[%s553 + $0x88] sm:$0xff] %vm1427, %v1840
      %s1879 = smul.u32 18, %s28
      %p1880 = scmp.lt.s32.totalorder %s1879, 35
      %s1881 = scalar_select %p1880, %s1879, 35
      %s1882 = smul.addr %s1881, 8
      %s1883 = scalar_lea.vmem %s15, %s1882
      %s1884 = smul.u32 18, %s28
      %p1885 = scmp.lt.s32.totalorder %s1884, 35
      %s1886 = scalar_select %p1885, %s1884, 35
      %s1887 = smul.addr %s1886, 8
      %s1888 = scalar_lea.vmem %s16, %s1887
      // Predicated region
      $region81: #{cgb_generate_centroids.1} parent=79 // pred_check
        %p1889 = pneg %p371
      $region82: #{cgb_generate_centroids.1} parent=79 // pred_check_branch
        %1891 = sbr.rel (%p1889) target = $region84
      $region83: #{cgb_generate_centroids.1} parent=79 // pred_region
        %s1892 = smul.u32 18, %s28
      $region84: #{cgb_generate_centroids.1} parent=79 // pred_fallthru
        _
      // Predicated region
      $region85: #{cgb_generate_centroids.1} parent=79 // pred_check
        %p1893 = pneg %p397
      $region86: #{cgb_generate_centroids.1} parent=79 // pred_check_branch
        %1895 = sbr.rel (%p1893) target = $region88
      $region87: #{cgb_generate_centroids.1} parent=79 // pred_region
        %s1896 = smul.u32 18, %s28
      $region88: #{cgb_generate_centroids.1} parent=79 // pred_fallthru
        _
    $region80: #{cgb_generate_centroids.1} parent=5 // pred_fallthru
      _
    %p1897 = scmp.le.s32.totalorder 2, %s23
    // Predicated region
    $region89: #{cgb_generate_centroids.1} parent=5 // pred_check
      %p1898 = pneg %p1897
    $region90: #{cgb_generate_centroids.1} parent=5 // pred_check_branch
      %1900 = sbr.rel (%p1898) target = $region92
    $region91: #{cgb_generate_centroids.1} parent=5 // pred_region
      %s1901 = ssub.s32 %s23, 2
      // Predicated region
      $region93: #{cgb_generate_centroids.1} parent=91 // pred_check
        %p1902 = pneg %p377
      $region94: #{cgb_generate_centroids.1} parent=91 // pred_check_branch
        %1904 = sbr.rel (%p1902) target = $region96
      $region95: #{cgb_generate_centroids.1} parent=91 // pred_region
        %s1905 = smul.u32 18, %s29
        %p1906 = scmp.lt.s32.totalorder %s1905, 35
        %s1907 = scalar_select %p1906, %s1905, 35
        %s1908 = smul.addr %s1907, 8
        %s1909 = scalar_lea.vmem %s15, %s1908
      $region96: #{cgb_generate_centroids.1} parent=91 // pred_fallthru
        _
      // Predicated region
      $region97: #{cgb_generate_centroids.1} parent=91 // pred_check
        %p1910 = pneg %p403
      $region98: #{cgb_generate_centroids.1} parent=91 // pred_check_branch
        %1912 = sbr.rel (%p1910) target = $region100
      $region99: #{cgb_generate_centroids.1} parent=91 // pred_region
        %s1913 = smul.u32 18, %s29
        %p1914 = scmp.lt.s32.totalorder %s1913, 35
        %s1915 = scalar_select %p1914, %s1913, 35
        %s1916 = smul.addr %s1915, 8
        %s1917 = scalar_lea.vmem %s16, %s1916
      $region100: #{cgb_generate_centroids.1} parent=91 // pred_fallthru
        _
    $region92: #{cgb_generate_centroids.1} parent=5 // pred_fallthru
      _
  $region6: #{cgb_generate_centroids.1} parent=0 // loop_footer
    %s27 = sadd.s32 1, %s23
  $region7: #{cgb_generate_centroids.1} parent=0 // loop_footer_branch
    %22 = sbr.rel target = $region3
  $region8: #{cgb_generate_centroids.1} parent=0 // loop_exit
    _

// kernel: custom-call
$region0: #{custom-call}
  %s0 = inlined_call_operand.vmem [shape: f32[1536], index: 0, kind: output, shape index: {}]

// kernel: cgb_generate_centroids.1
$region0: #{cgb_generate_centroids.1}
  #allocation0 [shape = 'u32[]', space=smem, size = 0x4, offset = 0x4, fixed_abs, tag = 'smem constant byte address 0x4 - core index']
  #allocation1 [shape = 'u32[144,128]{1,0:T(1,128)}', space=vmem, size = 0x12000, scoped, tag = 'internal scratch']
  %s0 = inlined_call_operand.vmem [shape: f32[128,3], index: 0, kind: input, shape index: {}]
  %s1 = inlined_call_operand.vmem [shape: f32[128,32], index: 1, kind: input, shape index: {}]
  %s2 = inlined_call_operand.vmem [shape: bf16[32,32], index: 2, kind: input, shape index: {}]
  %s3 = inlined_call_operand.vmem [shape: bf16[64,256], index: 3, kind: input, shape index: {}]
  %s4 = inlined_call_operand.vmem [shape: bf16[256,64], index: 4, kind: input, shape index: {}]
  %s5 = inlined_call_operand.vmem [shape: bf16[64,16], index: 5, kind: input, shape index: {}]
  %s6 = inlined_call_operand.vmem [shape: bf16[3,16], index: 6, kind: input, shape index: {}]
  %s7 = inlined_call_operand.vmem [shape: bf16[32,16], index: 7, kind: input, shape index: {}]
  %s8 = inlined_call_operand.vmem [shape: bf16[16,8], index: 8, kind: input, shape index: {}]
  %s9 = inlined_call_operand.vmem [shape: bf16[8,3], index: 9, kind: input, shape index: {}]
  %s10 = inlined_call_operand.vmem [shape: bf16[3,16], index: 10, kind: input, shape index: {}]
  %s11 = inlined_call_operand.vmem [shape: bf16[32,16], index: 11, kind: input, shape index: {}]
  %s12 = inlined_call_operand.vmem [shape: bf16[16,8], index: 12, kind: input, shape index: {}]
  %s13 = inlined_call_operand.vmem [shape: bf16[8,3], index: 13, kind: input, shape index: {}]
  %s14 = inlined_call_operand.vmem [shape: f32[1,1536], index: 14, kind: input, shape index: {}]
  %s15 = inlined_call_operand.vmem [shape: f32[288,3], index: 15, kind: output, shape index: {0}]
  %s16 = inlined_call_operand.vmem [shape: f32[288,32], index: 16, kind: output, shape index: {1}]
  %17 = xla_tuple %s15, %s16
  %s18 = sld [smem:[#allocation0]]
  $region101: #{cgb_generate_centroids.1} parent=0
    _
  %s20 = ssub.s32 1, %s18
  %s21 = scalar_select 0, %s20, %s18
  loop: start=0, step=1, limit=4
  $region2: #{cgb_generate_centroids.1} parent=0 // loop_pre_header
    _
  $region3: #{cgb_generate_centroids.1} parent=0 // loop_header
    %s23 = sphi 0, %s27
    %p24 = scmp.ge.s32.totalorder %s23, 4
    %s33 = sphi 0, %s35
    %s36 = sphi 0, %s33
    %s37 = sphi 0, %s36
    %s53 = sphi 0, %s37
    %s59 = sphi 0, %s61
    %s62 = sphi 0, %s59
    %s63 = sphi 0, %s62
    %s79 = sphi 0, %s63
    %s83 = sphi 0, %s83
    %s85 = sphi 0, %s83
    %s86 = sphi 0, %s85
    %s100 = sphi 0, %s86
    %s104 = sphi 0, %s104
    %s106 = sphi 0, %s104
    %s107 = sphi 0, %s106
    %s121 = sphi 0, %s107
    %s125 = sphi 0, %s125
    %s127 = sphi 0, %s125
    %s128 = sphi 0, %s127
    %s142 = sphi 0, %s128
    %s146 = sphi 0, %s146
    %s148 = sphi 0, %s146
    %s149 = sphi 0, %s148
    %s163 = sphi 0, %s149
    %s167 = sphi 0, %s167
    %s169 = sphi 0, %s167
    %s170 = sphi 0, %s169
    %s184 = sphi 0, %s170
    %s188 = sphi 0, %s188
    %s190 = sphi 0, %s188
    %s191 = sphi 0, %s190
    %s205 = sphi 0, %s191
    %s209 = sphi 0, %s209
    %s211 = sphi 0, %s209
    %s212 = sphi 0, %s211
    %s226 = sphi 0, %s212
    %s230 = sphi 0, %s230
    %s232 = sphi 0, %s230
    %s233 = sphi 0, %s232
    %s247 = sphi 0, %s233
    %s251 = sphi 0, %s251
    %s253 = sphi 0, %s251
    %s254 = sphi 0, %s253
    %s268 = sphi 0, %s254
    %s272 = sphi 0, %s272
    %s274 = sphi 0, %s272
    %s275 = sphi 0, %s274
    %s289 = sphi 0, %s275
    %s293 = sphi 0, %s293
    %s295 = sphi 0, %s293
    %s296 = sphi 0, %s295
    %s310 = sphi 0, %s296
    %s314 = sphi 0, %s314
    %s316 = sphi 0, %s314
    %s317 = sphi 0, %s316
    %s331 = sphi 0, %s317
    %s335 = sphi 0, %s335
    %s337 = sphi 0, %s335
    %s338 = sphi 0, %s337
    %s352 = sphi 0, %s338
    %s358 = sphi 0, %s360
    %s361 = sphi 0, %s358
    %s362 = sphi 0, %s361
    %s378 = sphi 0, %s362
    %s384 = sphi 0, %s386
    %s387 = sphi 0, %s384
    %s388 = sphi 0, %s387
    %s404 = sphi 0, %s388
  $region4: #{cgb_generate_centroids.1} parent=0 // loop_header_branch
    %26 = sbr.rel (%p24) target = $region8
  $region5: #{cgb_generate_centroids.1} parent=0 // loop_body
    %s28 = ssub.s32 %s23, 1
    %s29 = ssub.s32 %s23, 2
    %s30 = sadd.s32 %s23, 1
    %s31 = ssub.s32 %s23, %s30
    %p32 = scmp.eq.s32.totalorder %s31, 0
    %s34 = sadd.s32 %s33, 1
    %s35 = scalar_select %p32, %s33, %s34
    %p38 = pneg %p32
    %p39 = scmp.eq.s32.totalorder %s23, 1
    %p40 = por %p38, %p39
    %p41 = scmp.ne.s32.totalorder %s33, %s36
    %p42 = scmp.eq.s32.totalorder %s23, 0
    %p43 = por %p41, %p42
    %p44 = scmp.ne.s32.totalorder %s33, %s36
    %p45 = scmp.eq.s32.totalorder %s28, 1
    %p46 = por %p44, %p45
    %p47 = scmp.ne.s32.totalorder %s36, %s37
    %p48 = scmp.eq.s32.totalorder %s28, 0
    %p49 = por %p47, %p48
    %p50 = scmp.ne.s32.totalorder %s36, %s37
    %p51 = scmp.eq.s32.totalorder %s29, 1
    %p52 = por %p50, %p51
    %p54 = scmp.ne.s32.totalorder %s37, %s53
    %p55 = scmp.eq.s32.totalorder %s29, 0
    %p56 = por %p54, %p55
    %s57 = ssub.s32 %s23, %s30
    %p58 = scmp.eq.s32.totalorder %s57, 0
    %s60 = sadd.s32 %s59, 1
    %s61 = scalar_select %p58, %s59, %s60
    %p64 = pneg %p58
    %p65 = scmp.eq.s32.totalorder %s23, 1
    %p66 = por %p64, %p65
    %p67 = scmp.ne.s32.totalorder %s59, %s62
    %p68 = scmp.eq.s32.totalorder %s23, 0
    %p69 = por %p67, %p68
    %p70 = scmp.ne.s32.totalorder %s59, %s62
    %p71 = scmp.eq.s32.totalorder %s28, 1
    %p72 = por %p70, %p71
    %p73 = scmp.ne.s32.totalorder %s62, %s63
    %p74 = scmp.eq.s32.totalorder %s28, 0
    %p75 = por %p73, %p74
    %p76 = scmp.ne.s32.totalorder %s62, %s63
    %p77 = scmp.eq.s32.totalorder %s29, 1
    %p78 = por %p76, %p77
    %p80 = scmp.ne.s32.totalorder %s63, %s79
    %p81 = scmp.eq.s32.totalorder %s29, 0
    %p82 = por %p80, %p81
    %s84 = sadd.s32 %s83, 1
    %p87 = scmp.eq.s32.totalorder %s23, 1
    %p88 = scmp.ne.s32.totalorder %s83, %s85
    %p89 = scmp.eq.s32.totalorder %s23, 0
    %p90 = por %p88, %p89
    %p91 = scmp.ne.s32.totalorder %s83, %s85
    %p92 = scmp.eq.s32.totalorder %s28, 1
    %p93 = por %p91, %p92
    %p94 = scmp.ne.s32.totalorder %s85, %s86
    %p95 = scmp.eq.s32.totalorder %s28, 0
    %p96 = por %p94, %p95
    %p97 = scmp.ne.s32.totalorder %s85, %s86
    %p98 = scmp.eq.s32.totalorder %s29, 1
    %p99 = por %p97, %p98
    %p101 = scmp.ne.s32.totalorder %s86, %s100
    %p102 = scmp.eq.s32.totalorder %s29, 0
    %p103 = por %p101, %p102
    %s105 = sadd.s32 %s104, 1
    %p108 = scmp.eq.s32.totalorder %s23, 1
    %p109 = scmp.ne.s32.totalorder %s104, %s106
    %p110 = scmp.eq.s32.totalorder %s23, 0
    %p111 = por %p109, %p110
    %p112 = scmp.ne.s32.totalorder %s104, %s106
    %p113 = scmp.eq.s32.totalorder %s28, 1
    %p114 = por %p112, %p113
    %p115 = scmp.ne.s32.totalorder %s106, %s107
    %p116 = scmp.eq.s32.totalorder %s28, 0
    %p117 = por %p115, %p116
    %p118 = scmp.ne.s32.totalorder %s106, %s107
    %p119 = scmp.eq.s32.totalorder %s29, 1
    %p120 = por %p118, %p119
    %p122 = scmp.ne.s32.totalorder %s107, %s121
    %p123 = scmp.eq.s32.totalorder %s29, 0
    %p124 = por %p122, %p123
    %s126 = sadd.s32 %s125, 1
    %p129 = scmp.eq.s32.totalorder %s23, 1
    %p130 = scmp.ne.s32.totalorder %s125, %s127
    %p131 = scmp.eq.s32.totalorder %s23, 0
    %p132 = por %p130, %p131
    %p133 = scmp.ne.s32.totalorder %s125, %s127
    %p134 = scmp.eq.s32.totalorder %s28, 1
    %p135 = por %p133, %p134
    %p136 = scmp.ne.s32.totalorder %s127, %s128
    %p137 = scmp.eq.s32.totalorder %s28, 0
    %p138 = por %p136, %p137
    %p139 = scmp.ne.s32.totalorder %s127, %s128
    %p140 = scmp.eq.s32.totalorder %s29, 1
    %p141 = por %p139, %p140
    %p143 = scmp.ne.s32.totalorder %s128, %s142
    %p144 = scmp.eq.s32.totalorder %s29, 0
    %p145 = por %p143, %p144
    %s147 = sadd.s32 %s146, 1
    %p150 = scmp.eq.s32.totalorder %s23, 1
    %p151 = scmp.ne.s32.totalorder %s146, %s148
    %p152 = scmp.eq.s32.totalorder %s23, 0
    %p153 = por %p151, %p152
    %p154 = scmp.ne.s32.totalorder %s146, %s148
    %p155 = scmp.eq.s32.totalorder %s28, 1
    %p156 = por %p154, %p155
    %p157 = scmp.ne.s32.totalorder %s148, %s149
    %p158 = scmp.eq.s32.totalorder %s28, 0
    %p159 = por %p157, %p158
    %p160 = scmp.ne.s32.totalorder %s148, %s149
    %p161 = scmp.eq.s32.totalorder %s29, 1
    %p162 = por %p160, %p161
    %p164 = scmp.ne.s32.totalorder %s149, %s163
    %p165 = scmp.eq.s32.totalorder %s29, 0
    %p166 = por %p164, %p165
    %s168 = sadd.s32 %s167, 1
    %p171 = scmp.eq.s32.totalorder %s23, 1
    %p172 = scmp.ne.s32.totalorder %s167, %s169
    %p173 = scmp.eq.s32.totalorder %s23, 0
    %p174 = por %p172, %p173
    %p175 = scmp.ne.s32.totalorder %s167, %s169
    %p176 = scmp.eq.s32.totalorder %s28, 1
    %p177 = por %p175, %p176
    %p178 = scmp.ne.s32.totalorder %s169, %s170
    %p179 = scmp.eq.s32.totalorder %s28, 0
    %p180 = por %p178, %p179
    %p181 = scmp.ne.s32.totalorder %s169, %s170
    %p182 = scmp.eq.s32.totalorder %s29, 1
    %p183 = por %p181, %p182
    %p185 = scmp.ne.s32.totalorder %s170, %s184
    %p186 = scmp.eq.s32.totalorder %s29, 0
    %p187 = por %p185, %p186
    %s189 = sadd.s32 %s188, 1
    %p192 = scmp.eq.s32.totalorder %s23, 1
    %p193 = scmp.ne.s32.totalorder %s188, %s190
    %p194 = scmp.eq.s32.totalorder %s23, 0
    %p195 = por %p193, %p194
    %p196 = scmp.ne.s32.totalorder %s188, %s190
    %p197 = scmp.eq.s32.totalorder %s28, 1
    %p198 = por %p196, %p197
    %p199 = scmp.ne.s32.totalorder %s190, %s191
    %p200 = scmp.eq.s32.totalorder %s28, 0
    %p201 = por %p199, %p200
    %p202 = scmp.ne.s32.totalorder %s190, %s191
    %p203 = scmp.eq.s32.totalorder %s29, 1
    %p204 = por %p202, %p203
    %p206 = scmp.ne.s32.totalorder %s191, %s205
    %p207 = scmp.eq.s32.totalorder %s29, 0
    %p208 = por %p206, %p207
    %s210 = sadd.s32 %s209, 1
    %p213 = scmp.eq.s32.totalorder %s23, 1
    %p214 = scmp.ne.s32.totalorder %s209, %s211
    %p215 = scmp.eq.s32.totalorder %s23, 0
    %p216 = por %p214, %p215
    %p217 = scmp.ne.s32.totalorder %s209, %s211
    %p218 = scmp.eq.s32.totalorder %s28, 1
    %p219 = por %p217, %p218
    %p220 = scmp.ne.s32.totalorder %s211, %s212
    %p221 = scmp.eq.s32.totalorder %s28, 0
    %p222 = por %p220, %p221
    %p223 = scmp.ne.s32.totalorder %s211, %s212
    %p224 = scmp.eq.s32.totalorder %s29, 1
    %p225 = por %p223, %p224
    %p227 = scmp.ne.s32.totalorder %s212, %s226
    %p228 = scmp.eq.s32.totalorder %s29, 0
    %p229 = por %p227, %p228
    %s231 = sadd.s32 %s230, 1
    %p234 = scmp.eq.s32.totalorder %s23, 1
    %p235 = scmp.ne.s32.totalorder %s230, %s232
    %p236 = scmp.eq.s32.totalorder %s23, 0
    %p237 = por %p235, %p236
    %p238 = scmp.ne.s32.totalorder %s230, %s232
    %p239 = scmp.eq.s32.totalorder %s28, 1
    %p240 = por %p238, %p239
    %p241 = scmp.ne.s32.totalorder %s232, %s233
    %p242 = scmp.eq.s32.totalorder %s28, 0
    %p243 = por %p241, %p242
    %p244 = scmp.ne.s32.totalorder %s232, %s233
    %p245 = scmp.eq.s32.totalorder %s29, 1
    %p246 = por %p244, %p245
    %p248 = scmp.ne.s32.totalorder %s233, %s247
    %p249 = scmp.eq.s32.totalorder %s29, 0
    %p250 = por %p248, %p249
    %s252 = sadd.s32 %s251, 1
    %p255 = scmp.eq.s32.totalorder %s23, 1
    %p256 = scmp.ne.s32.totalorder %s251, %s253
    %p257 = scmp.eq.s32.totalorder %s23, 0
    %p258 = por %p256, %p257
    %p259 = scmp.ne.s32.totalorder %s251, %s253
    %p260 = scmp.eq.s32.totalorder %s28, 1
    %p261 = por %p259, %p260
    %p262 = scmp.ne.s32.totalorder %s253, %s254
    %p263 = scmp.eq.s32.totalorder %s28, 0
    %p264 = por %p262, %p263
    %p265 = scmp.ne.s32.totalorder %s253, %s254
    %p266 = scmp.eq.s32.totalorder %s29, 1
    %p267 = por %p265, %p266
    %p269 = scmp.ne.s32.totalorder %s254, %s268
    %p270 = scmp.eq.s32.totalorder %s29, 0
    %p271 = por %p269, %p270
    %s273 = sadd.s32 %s272, 1
    %p276 = scmp.eq.s32.totalorder %s23, 1
    %p277 = scmp.ne.s32.totalorder %s272, %s274
    %p278 = scmp.eq.s32.totalorder %s23, 0
    %p279 = por %p277, %p278
    %p280 = scmp.ne.s32.totalorder %s272, %s274
    %p281 = scmp.eq.s32.totalorder %s28, 1
    %p282 = por %p280, %p281
    %p283 = scmp.ne.s32.totalorder %s274, %s275
    %p284 = scmp.eq.s32.totalorder %s28, 0
    %p285 = por %p283, %p284
    %p286 = scmp.ne.s32.totalorder %s274, %s275
    %p287 = scmp.eq.s32.totalorder %s29, 1
    %p288 = por %p286, %p287
    %p290 = scmp.ne.s32.totalorder %s275, %s289
    %p291 = scmp.eq.s32.totalorder %s29, 0
    %p292 = por %p290, %p291
    %s294 = sadd.s32 %s293, 1
    %p297 = scmp.eq.s32.totalorder %s23, 1
    %p298 = scmp.ne.s32.totalorder %s293, %s295
    %p299 = scmp.eq.s32.totalorder %s23, 0
    %p300 = por %p298, %p299
    %p301 = scmp.ne.s32.totalorder %s293, %s295
    %p302 = scmp.eq.s32.totalorder %s28, 1
    %p303 = por %p301, %p302
    %p304 = scmp.ne.s32.totalorder %s295, %s296
    %p305 = scmp.eq.s32.totalorder %s28, 0
    %p306 = por %p304, %p305
    %p307 = scmp.ne.s32.totalorder %s295, %s296
    %p308 = scmp.eq.s32.totalorder %s29, 1
    %p309 = por %p307, %p308
    %p311 = scmp.ne.s32.totalorder %s296, %s310
    %p312 = scmp.eq.s32.totalorder %s29, 0
    %p313 = por %p311, %p312
    %s315 = sadd.s32 %s314, 1
    %p318 = scmp.eq.s32.totalorder %s23, 1
    %p319 = scmp.ne.s32.totalorder %s314, %s316
    %p320 = scmp.eq.s32.totalorder %s23, 0
    %p321 = por %p319, %p320
    %p322 = scmp.ne.s32.totalorder %s314, %s316
    %p323 = scmp.eq.s32.totalorder %s28, 1
    %p324 = por %p322, %p323
    %p325 = scmp.ne.s32.totalorder %s316, %s317
    %p326 = scmp.eq.s32.totalorder %s28, 0
    %p327 = por %p325, %p326
    %p328 = scmp.ne.s32.totalorder %s316, %s317
    %p329 = scmp.eq.s32.totalorder %s29, 1
    %p330 = por %p328, %p329
    %p332 = scmp.ne.s32.totalorder %s317, %s331
    %p333 = scmp.eq.s32.totalorder %s29, 0
    %p334 = por %p332, %p333
    %s336 = sadd.s32 %s335, 1
    %p339 = scmp.eq.s32.totalorder %s23, 1
    %p340 = scmp.ne.s32.totalorder %s335, %s337
    %p341 = scmp.eq.s32.totalorder %s23, 0
    %p342 = por %p340, %p341
    %p343 = scmp.ne.s32.totalorder %s335, %s337
    %p344 = scmp.eq.s32.totalorder %s28, 1
    %p345 = por %p343, %p344
    %p346 = scmp.ne.s32.totalorder %s337, %s338
    %p347 = scmp.eq.s32.totalorder %s28, 0
    %p348 = por %p346, %p347
    %p349 = scmp.ne.s32.totalorder %s337, %s338
    %p350 = scmp.eq.s32.totalorder %s29, 1
    %p351 = por %p349, %p350
    %p353 = scmp.ne.s32.totalorder %s338, %s352
    %p354 = scmp.eq.s32.totalorder %s29, 0
    %p355 = por %p353, %p354
    %s356 = ssub.s32 %s23, %s30
    %p357 = scmp.eq.s32.totalorder %s356, 0
    %s359 = sadd.s32 %s358, 1
    %s360 = scalar_select %p357, %s358, %s359
    %p363 = pneg %p357
    %p364 = scmp.eq.s32.totalorder %s23, 1
    %p365 = por %p363, %p364
    %p366 = scmp.ne.s32.totalorder %s358, %s361
    %p367 = scmp.eq.s32.totalorder %s23, 0
    %p368 = por %p366, %p367
    %p369 = scmp.ne.s32.totalorder %s358, %s361
    %p370 = scmp.eq.s32.totalorder %s28, 1
    %p371 = por %p369, %p370
    %p372 = scmp.ne.s32.totalorder %s361, %s362
    %p373 = scmp.eq.s32.totalorder %s28, 0
    %p374 = por %p372, %p373
    %p375 = scmp.ne.s32.totalorder %s361, %s362
    %p376 = scmp.eq.s32.totalorder %s29, 1
    %p377 = por %p375, %p376
    %p379 = scmp.ne.s32.totalorder %s362, %s378
    %p380 = scmp.eq.s32.totalorder %s29, 0
    %p381 = por %p379, %p380
    %s382 = ssub.s32 %s23, %s30
    %p383 = scmp.eq.s32.totalorder %s382, 0
    %s385 = sadd.s32 %s384, 1
    %s386 = scalar_select %p383, %s384, %s385
    %p389 = pneg %p383
    %p390 = scmp.eq.s32.totalorder %s23, 1
    %p391 = por %p389, %p390
    %p392 = scmp.ne.s32.totalorder %s384, %s387
    %p393 = scmp.eq.s32.totalorder %s23, 0
    %p394 = por %p392, %p393
    %p395 = scmp.ne.s32.totalorder %s384, %s387
    %p396 = scmp.eq.s32.totalorder %s28, 1
    %p397 = por %p395, %p396
    %p398 = scmp.ne.s32.totalorder %s387, %s388
    %p399 = scmp.eq.s32.totalorder %s28, 0
    %p400 = por %p398, %p399
    %p401 = scmp.ne.s32.totalorder %s387, %s388
    %p402 = scmp.eq.s32.totalorder %s29, 1
    %p403 = por %p401, %p402
    %p405 = scmp.ne.s32.totalorder %s388, %s404
    %p406 = scmp.eq.s32.totalorder %s29, 0
    %p407 = por %p405, %p406
    %p408 = scmp.le.s32.totalorder 1, %s23
    %p409 = scmp.lt.s32.totalorder %s23, 3
    %p410 = pnand %p408, %p409
    %p411 = pneg %p410
    // Predicated region
    $region9: #{cgb_generate_centroids.1} parent=5 // pred_check
      _
    $region10: #{cgb_generate_centroids.1} parent=5 // pred_check_branch
      %413 = sbr.rel (%p410) target = $region12
    $region11: #{cgb_generate_centroids.1} parent=5 // pred_region
      %s414 = ssub.s32 %s23, 1
      // Predicated region
      $region13: #{cgb_generate_centroids.1} parent=11 // pred_check
        %p415 = pneg %p96
      $region14: #{cgb_generate_centroids.1} parent=11 // pred_check_branch
        %417 = sbr.rel (%p415) target = $region16
      $region15: #{cgb_generate_centroids.1} parent=11 // pred_region
        _
      $region16: #{cgb_generate_centroids.1} parent=11 // pred_fallthru
        _
      // Predicated region
      $region17: #{cgb_generate_centroids.1} parent=11 // pred_check
        %p418 = pneg %p117
      $region18: #{cgb_generate_centroids.1} parent=11 // pred_check_branch
        %420 = sbr.rel (%p418) target = $region20
      $region19: #{cgb_generate_centroids.1} parent=11 // pred_region
        _
      $region20: #{cgb_generate_centroids.1} parent=11 // pred_fallthru
        _
      // Predicated region
      $region21: #{cgb_generate_centroids.1} parent=11 // pred_check
        %p421 = pneg %p138
      $region22: #{cgb_generate_centroids.1} parent=11 // pred_check_branch
        %423 = sbr.rel (%p421) target = $region24
      $region23: #{cgb_generate_centroids.1} parent=11 // pred_region
        _
      $region24: #{cgb_generate_centroids.1} parent=11 // pred_fallthru
        _
      // Predicated region
      $region25: #{cgb_generate_centroids.1} parent=11 // pred_check
        %p424 = pneg %p159
      $region26: #{cgb_generate_centroids.1} parent=11 // pred_check_branch
        %426 = sbr.rel (%p424) target = $region28
      $region27: #{cgb_generate_centroids.1} parent=11 // pred_region
        _
      $region28: #{cgb_generate_centroids.1} parent=11 // pred_fallthru
        _
      // Predicated region
      $region29: #{cgb_generate_centroids.1} parent=11 // pred_check
        %p427 = pneg %p180
      $region30: #{cgb_generate_centroids.1} parent=11 // pred_check_branch
        %429 = sbr.rel (%p427) target = $region32
      $region31: #{cgb_generate_centroids.1} parent=11 // pred_region
        _
      $region32: #{cgb_generate_centroids.1} parent=11 // pred_fallthru
        _
      // Predicated region
      $region33: #{cgb_generate_centroids.1} parent=11 // pred_check
        %p430 = pneg %p201
      $region34: #{cgb_generate_centroids.1} parent=11 // pred_check_branch
        %432 = sbr.rel (%p430) target = $region36
      $region35: #{cgb_generate_centroids.1} parent=11 // pred_region
        _
      $region36: #{cgb_generate_centroids.1} parent=11 // pred_fallthru
        _
      // Predicated region
      $region37: #{cgb_generate_centroids.1} parent=11 // pred_check
        %p433 = pneg %p222
      $region38: #{cgb_generate_centroids.1} parent=11 // pred_check_branch
        %435 = sbr.rel (%p433) target = $region40
      $region39: #{cgb_generate_centroids.1} parent=11 // pred_region
        _
      $region40: #{cgb_generate_centroids.1} parent=11 // pred_fallthru
        _
      // Predicated region
      $region41: #{cgb_generate_centroids.1} parent=11 // pred_check
        %p436 = pneg %p243
      $region42: #{cgb_generate_centroids.1} parent=11 // pred_check_branch
        %438 = sbr.rel (%p436) target = $region44
      $region43: #{cgb_generate_centroids.1} parent=11 // pred_region
        _
      $region44: #{cgb_generate_centroids.1} parent=11 // pred_fallthru
        _
      // Predicated region
      $region45: #{cgb_generate_centroids.1} parent=11 // pred_check
        %p439 = pneg %p264
      $region46: #{cgb_generate_centroids.1} parent=11 // pred_check_branch
        %441 = sbr.rel (%p439) target = $region48
      $region47: #{cgb_generate_centroids.1} parent=11 // pred_region
        _
      $region48: #{cgb_generate_centroids.1} parent=11 // pred_fallthru
        _
      // Predicated region
      $region49: #{cgb_generate_centroids.1} parent=11 // pred_check
        %p442 = pneg %p285
      $region50: #{cgb_generate_centroids.1} parent=11 // pred_check_branch
        %444 = sbr.rel (%p442) target = $region52
      $region51: #{cgb_generate_centroids.1} parent=11 // pred_region
        _
      $region52: #{cgb_generate_centroids.1} parent=11 // pred_fallthru
        _
      // Predicated region
      $region53: #{cgb_generate_centroids.1} parent=11 // pred_check
        %p445 = pneg %p306
      $region54: #{cgb_generate_centroids.1} parent=11 // pred_check_branch
        %447 = sbr.rel (%p445) target = $region56
      $region55: #{cgb_generate_centroids.1} parent=11 // pred_region
        _
      $region56: #{cgb_generate_centroids.1} parent=11 // pred_fallthru
        _
      // Predicated region
      $region57: #{cgb_generate_centroids.1} parent=11 // pred_check
        %p448 = pneg %p327
      $region58: #{cgb_generate_centroids.1} parent=11 // pred_check_branch
        %450 = sbr.rel (%p448) target = $region60
      $region59: #{cgb_generate_centroids.1} parent=11 // pred_region
        _
      $region60: #{cgb_generate_centroids.1} parent=11 // pred_fallthru
        _
      // Predicated region
      $region61: #{cgb_generate_centroids.1} parent=11 // pred_check
        %p451 = pneg %p348
      $region62: #{cgb_generate_centroids.1} parent=11 // pred_check_branch
        %453 = sbr.rel (%p451) target = $region64
      $region63: #{cgb_generate_centroids.1} parent=11 // pred_region
        _
      $region64: #{cgb_generate_centroids.1} parent=11 // pred_fallthru
        _
    $region12: #{cgb_generate_centroids.1} parent=5 // pred_fallthru
      _
    %p454 = scmp.lt.s32.totalorder %s23, 2
    // Predicated region
    $region65: #{cgb_generate_centroids.1} parent=5 // pred_check
      %p455 = pneg %p454
    $region66: #{cgb_generate_centroids.1} parent=5 // pred_check_branch
      %457 = sbr.rel (%p455) target = $region68
    $region67: #{cgb_generate_centroids.1} parent=5 // pred_region
      // Predicated region
      $region69: #{cgb_generate_centroids.1} parent=67 // pred_check
        %p458 = pneg %p43
      $region70: #{cgb_generate_centroids.1} parent=67 // pred_check_branch
        %460 = sbr.rel (%p458) target = $region72
      $region71: #{cgb_generate_centroids.1} parent=67 // pred_region
        %s461 = smul.u32 8, %s23
        %p462 = scmp.lt.s32.totalorder %s461, 15
        %s463 = scalar_select %p462, %s461, 15
        %s464 = smul.addr %s463, 8
        %s465 = scalar_lea.vmem %s0, %s464
        %s466 = smul.u32 8, %s23
      $region72: #{cgb_generate_centroids.1} parent=67 // pred_fallthru
        _
      // Predicated region
      $region73: #{cgb_generate_centroids.1} parent=67 // pred_check
        %p467 = pneg %p69
      $region74: #{cgb_generate_centroids.1} parent=67 // pred_check_branch
        %469 = sbr.rel (%p467) target = $region76
      $region75: #{cgb_generate_centroids.1} parent=67 // pred_region
        %s470 = smul.u32 8, %s23
        %p471 = scmp.lt.s32.totalorder %s470, 15
        %s472 = scalar_select %p471, %s470, 15
        %s473 = smul.addr %s472, 8
        %s474 = scalar_lea.vmem %s1, %s473
        %s475 = smul.u32 8, %s23
      $region76: #{cgb_generate_centroids.1} parent=67 // pred_fallthru
        _
    $region68: #{cgb_generate_centroids.1} parent=5 // pred_fallthru
      _
    %p476 = scmp.le.s32.totalorder 1, %s23
    %p477 = scmp.lt.s32.totalorder %s23, 3
    %p478 = pnand %p476, %p477
    %p479 = pneg %p478
    // Predicated region
    $region77: #{cgb_generate_centroids.1} parent=5 // pred_check
      _
    $region78: #{cgb_generate_centroids.1} parent=5 // pred_check_branch
      %481 = sbr.rel (%p478) target = $region80
    $region79: #{cgb_generate_centroids.1} parent=5 // pred_region
      %s482 = ssub.s32 %s23, 1
      %s483 = smul.u32 8, %s28
      %p484 = scmp.lt.s32.totalorder %s483, 15
      %s485 = scalar_select %p484, %s483, 15
      %s486 = smul.addr %s485, 8
      %s487 = scalar_lea.vmem %s0, %s486
      %p488 = pneg %p49
      %p489 = pneg %p46
      %s490 = smul.u32 8, %s28
      %p491 = scmp.lt.s32.totalorder %s490, 15
      %s492 = scalar_select %p491, %s490, 15
      %s493 = smul.addr %s492, 8
      %s494 = scalar_lea.vmem %s1, %s493
      %p495 = pneg %p75
      %p496 = pneg %p72
      %p497 = pneg %p96
      %p498 = pneg %p93
      %p499 = pneg %p117
      %p500 = pneg %p114
      %p501 = pneg %p138
      %p502 = pneg %p135
      %p503 = pneg %p159
      %p504 = pneg %p156
      %p505 = pneg %p180
      %p506 = pneg %p177
      %p507 = pneg %p201
      %p508 = pneg %p198
      %p509 = pneg %p222
      %p510 = pneg %p219
      %p511 = pneg %p243
      %p512 = pneg %p240
      %p513 = pneg %p264
      %p514 = pneg %p261
      %p515 = pneg %p285
      %p516 = pneg %p282
      %p517 = pneg %p306
      %p518 = pneg %p303
      %p519 = pneg %p327
      %p520 = pneg %p324
      %p521 = pneg %p348
      %p522 = pneg %p345
      %p523 = pneg %p374
      %p524 = pneg %p371
      %s525 = smul.u32 18, %s28
      %p526 = scmp.lt.s32.totalorder %s525, 35
      %s527 = scalar_select %p526, %s525, 35
      %s528 = smul.addr %s527, 8
      %s529 = scalar_lea.vmem %s15, %s528
      %p530 = pneg %p400
      %p531 = pneg %p397
      %s532 = smul.u32 18, %s28
      %p533 = scmp.lt.s32.totalorder %s532, 35
      %s534 = scalar_select %p533, %s532, 35
      %s535 = smul.addr %s534, 8
      %s536 = scalar_lea.vmem %s16, %s535
      %s537 = smul.u32 8, %s28
      %p538 = scmp.lt.s32.totalorder %s537, 15
      %s539 = scalar_select %p538, %s537, 15
      %s540 = smul.addr %s539, 8
      %s541 = scalar_lea.vmem %s0, %s540
      %s542 = smul.u32 8, %s28
      %s543 = smul.u32 8, %s28
      %p544 = scmp.lt.s32.totalorder %s543, 15
      %s545 = scalar_select %p544, %s543, 15
      %s546 = smul.addr %s545, 8
      %s547 = scalar_lea.vmem %s1, %s546
      %s548 = smul.u32 8, %s28
      %s549 = smul.u32 18, %s28
      %p550 = scmp.lt.s32.totalorder %s549, 35
      %s551 = scalar_select %p550, %s549, 35
      %s552 = smul.addr %s551, 8
      %s553 = scalar_lea.vmem %s15, %s552
      %s554 = smul.u32 18, %s28
      %s555 = smul.u32 18, %s28
      %p556 = scmp.lt.s32.totalorder %s555, 35
      %s557 = scalar_select %p556, %s555, 35
      %s558 = smul.addr %s557, 8
      %s559 = scalar_lea.vmem %s16, %s558
      %s560 = smul.u32 18, %s28
      %v562 = vld [vmem:[%s14] sm:$0x1]
      %v563 = vld [vmem:[%s14 + $0x1] sm:$0x1]
      %v564 = vld [vmem:[%s14 + $0x2] sm:$0x3]
      %v565 = vld [vmem:[%s14 + $0x4] sm:$0x1]
      %v566 = vld [vmem:[%s14 + $0x5] sm:$0x1]
      %v567 = vld [vmem:[%s14 + $0x6] sm:$0x1]
      %v568 = vld [vmem:[%s14 + $0x7] sm:$0x1]
      %v569 = vld [vmem:[%s14 + $0x8] sm:$0x1]
      %v570 = vld [vmem:[%s14 + $0x9] sm:$0x1]
      %v571 = vld [vmem:[%s14 + $0xa] sm:$0x1]
      %v572 = vld [vmem:[%s14 + $0xb] sm:$0x1]
      %v573 = vld [vmem:[%s547] sm:$0xff]
      %v574 = vld [vmem:[%s547 + $0x8] sm:$0xff]
      %v575 = vld [vmem:[%s547 + $0x10] sm:$0xff]
      %v576 = vld [vmem:[%s547 + $0x18] sm:$0xff]
      %v577 = vld [vmem:[%s547 + $0x20] sm:$0xff]
      %v578 = vld [vmem:[%s547 + $0x28] sm:$0xff]
      %v579 = vld [vmem:[%s547 + $0x30] sm:$0xff]
      %v580 = vld [vmem:[%s547 + $0x38] sm:$0xff]
      %v581 = vld [vmem:[%s541] sm:$0xff]
      %v582 = vld [vmem:[%s541 + $0x8] sm:$0xff]
      %v583 = vld [vmem:[%s541 + $0x10] sm:$0xff]
      %v584 = vld [vmem:[%s541 + $0x18] sm:$0xff]
      %v585 = vld [vmem:[%s541 + $0x20] sm:$0xff]
      %v586 = vld [vmem:[%s541 + $0x28] sm:$0xff]
      %v587 = vld [vmem:[%s541 + $0x30] sm:$0xff]
      %v588 = vld [vmem:[%s541 + $0x38] sm:$0xff]
      %v589 = vpack.c.bf16 %v574, %v573
      %v590 = vpack.c.bf16 %v576, %v575
      %v591 = vpack.c.bf16 %v578, %v577
      %v592 = vpack.c.bf16 %v580, %v579
      %v593 = vld [vmem:[%s2] sm:$0xf]
      %v594 = vld [vmem:[%s2 + $0x4] sm:$0xf]
      %v595 = vld [vmem:[%s2 + $0x8] sm:$0xf]
      %v596 = vld [vmem:[%s2 + $0xc] sm:$0xf]
      %v601 = vunpack.c.l.b16 %v593
      %v602 = vunpack.c.l.b16 %v594
      %v603 = vunpack.c.l.b16 %v595
      %v604 = vunpack.c.l.b16 %v596
      %v605 = vpack.c.b16 %v602, %v601
      %v606 = vpack.c.b16 %v604, %v603
      %vm609 = vcmask 261120
      %v611 = vsel %vm609, %v589, 0
      %v614 = vsel %vm609, %v590, 0
      %v617 = vsel %vm609, %v591, 0
      %v620 = vsel %vm609, %v592, 0
      %622 = vmatprep.subr.bf16.mxu0 0
      %623 = vmatpush1.bf16.msra.mxu0 %v605
      %624 = vmatprep.subr.bf16.mxu0 0
      %625 = vmatpush1.bf16.msra.mxu0 %v606
      %626 = vmatprep.subr.bf16.mxu0 0
      %627 = vmatpush1.bf16.msra.mxu0 0
      %628 = vmatprep.subr.bf16.mxu0 0
      %629 = vmatpush1.bf16.msra.mxu0 0
      %630 = vmatprep.subr.bf16.mxu0 0
      %631 = vmatpush1.bf16.msra.mxu0 0
      %632 = vmatprep.subr.bf16.mxu0 0
      %633 = vmatpush1.bf16.msra.mxu0 0
      %634 = vmatprep.subr.bf16.mxu0 0
      %635 = vmatpush1.bf16.msra.mxu0 0
      %636 = vmatprep.subr.bf16.mxu0 0
      %637 = vmatpush1.bf16.msra.mxu0 0
      %638 = vmatprep.subr.bf16.mxu0 0
      %639 = vmatpush1.bf16.msra.mxu0 0
      %640 = vmatprep.subr.bf16.mxu0 0
      %641 = vmatpush1.bf16.msra.mxu0 0
      %642 = vmatprep.subr.bf16.mxu0 0
      %643 = vmatpush1.bf16.msra.mxu0 0
      %644 = vmatprep.subr.bf16.mxu0 0
      %645 = vmatpush1.bf16.msra.mxu0 0
      %646 = vmatprep.subr.bf16.mxu0 0
      %647 = vmatpush1.bf16.msra.mxu0 0
      %648 = vmatprep.subr.bf16.mxu0 0
      %649 = vmatpush1.bf16.msra.mxu0 0
      %650 = vmatprep.subr.bf16.mxu0 0
      %651 = vmatpush1.bf16.msra.mxu0 0
      %652 = vmatprep.subr.bf16.mxu0 0
      %653 = vmatpush1.bf16.msra.mxu0 0
      %654 = vmatprep.mubr.bf16.mxu0 0
      %655 = vmatmul.mubr.bf16.gmra.mrb[0].mxu0 %v611
      %v656 = vpop.f32.mrb[0].mxu0
      %v657 = vadd.f32 0.0, %v656
      %v658 = vpop.f32.mrb[0].mxu0
      %v659 = vpop.f32.mrb[0].mxu0
      %v660 = vadd.f32 0.0, %v659
      %v661 = vpop.f32.mrb[0].mxu0
      %662 = vmatprep.mubr.bf16.mxu0 0
      %663 = vmatmul.mubr.bf16.gmra.mrb[0].mxu0 %v614
      %v664 = vpop.f32.mrb[0].mxu0
      %v665 = vadd.f32 0.0, %v664
      %v666 = vpop.f32.mrb[0].mxu0
      %v667 = vpop.f32.mrb[0].mxu0
      %v668 = vadd.f32 0.0, %v667
      %v669 = vpop.f32.mrb[0].mxu0
      %670 = vmatprep.mubr.bf16.mxu0 0
      %671 = vmatmul.mubr.bf16.gmra.mrb[0].mxu0 %v617
      %v672 = vpop.f32.mrb[0].mxu0
      %v673 = vadd.f32 0.0, %v672
      %v674 = vpop.f32.mrb[0].mxu0
      %v675 = vpop.f32.mrb[0].mxu0
      %v676 = vadd.f32 0.0, %v675
      %v677 = vpop.f32.mrb[0].mxu0
      %678 = vmatprep.mubr.bf16.mxu0 0
      %679 = vmatmul.mubr.bf16.gmra.mrb[0].mxu0 %v620
      %v680 = vpop.f32.mrb[0].mxu0
      %v681 = vadd.f32 0.0, %v680
      %v682 = vpop.f32.mrb[0].mxu0
      %v683 = vpop.f32.mrb[0].mxu0
      %v684 = vadd.f32 0.0, %v683
      %v685 = vpop.f32.mrb[0].mxu0
      %686 = vdwg.mxu0
      %v688 = vlaneseq
      %v689 = vshrl.u32 %v688, 7
      %v690 = vsub.s32 0, %v689
      %v691 = vrot.slane %v562, %v690
      %v693 = vmul.f32 %v657, %v691
      %v694 = vmul.f32 %v660, %v691
      %v695 = vmul.f32 %v665, %v691
      %v696 = vmul.f32 %v668, %v691
      %v697 = vmul.f32 %v673, %v691
      %v698 = vmul.f32 %v676, %v691
      %v699 = vmul.f32 %v681, %v691
      %v700 = vmul.f32 %v684, %v691
      %v702 = vlaneseq
      %v703 = vshrl.u32 %v702, 7
      %v704 = vsub.s32 0, %v703
      %v705 = vrot.slane %v563, %v704
      %v707 = vadd.f32 %v693, %v705
      %v708 = vadd.f32 %v694, %v705
      %v709 = vadd.f32 %v695, %v705
      %v710 = vadd.f32 %v696, %v705
      %v711 = vadd.f32 %v697, %v705
      %v712 = vadd.f32 %v698, %v705
      %v713 = vadd.f32 %v699, %v705
      %v714 = vadd.f32 %v700, %v705
      %v715 = vmax.f32 %v707, 0.0
      %v716 = vmax.f32 %v708, 0.0
      %v717 = vmax.f32 %v709, 0.0
      %v718 = vmax.f32 %v710, 0.0
      %v719 = vmax.f32 %v711, 0.0
      %v720 = vmax.f32 %v712, 0.0
      %v721 = vmax.f32 %v713, 0.0
      %v722 = vmax.f32 %v714, 0.0
      %v723 = vsel %vm609, %v715, -inf
      %v724 = vsel %vm609, %v716, -inf
      %v725 = vsel %vm609, %v717, -inf
      %v726 = vsel %vm609, %v718, -inf
      %v727 = vsel %vm609, %v719, -inf
      %v728 = vmax.f32 %v723, %v727
      %v729 = vsel %vm609, %v720, -inf
      %v730 = vmax.f32 %v724, %v729
      %v731 = vsel %vm609, %v721, -inf
      %v732 = vmax.f32 %v725, %v731
      %v733 = vsel %vm609, %v722, -inf
      %v734 = vmax.f32 %v726, %v733
      %v735 = vmax.f32 %v728, %v730
      %v736 = vmax.f32 %v732, %v734
      %v737 = vmax.f32 %v735, %v736
      %v738 = vrot.slane %v737, 4
      %v739 = vmax.f32 %v737, %v738
      %v740 = vrot.slane %v739, 2
      %v741 = vmax.f32 %v739, %v740
      %v742 = vrot.slane %v741, 1
      %v743 = vmax.f32 %v741, %v742
      %v744 = vsub.f32 %v743, %v573
      %v745 = vsub.f32 %v743, %v574
      %v746 = vsub.f32 %v743, %v575
      %v747 = vsub.f32 %v743, %v576
      %v748 = vsub.f32 %v743, %v577
      %v749 = vsub.f32 %v743, %v578
      %v750 = vsub.f32 %v743, %v579
      %v751 = vsub.f32 %v743, %v580
      %752 = vxpose.xlu0.b32.start [1/16] %v744, 128
      %753 = vxpose.xlu0.b32.cont [2/16] %v745, 128
      %754 = vxpose.xlu0.b32.cont [3/16] %v746, 128
      %755 = vxpose.xlu0.b32.cont [4/16] %v747, 128
      %756 = vxpose.xlu0.b32.cont [5/16] %v748, 128
      %757 = vxpose.xlu0.b32.cont [6/16] %v749, 128
      %758 = vxpose.xlu0.b32.cont [7/16] %v750, 128
      %759 = vxpose.xlu0.b32.cont [8/16] %v751, 128
      %760 = vxpose.xlu0.b32.cont [9/16] 0.0, 128
      %761 = vxpose.xlu0.b32.cont [10/16] 0.0, 128
      %762 = vxpose.xlu0.b32.cont [11/16] 0.0, 128
      %763 = vxpose.xlu0.b32.cont [12/16] 0.0, 128
      %764 = vxpose.xlu0.b32.cont [13/16] 0.0, 128
      %765 = vxpose.xlu0.b32.cont [14/16] 0.0, 128
      %766 = vxpose.xlu0.b32.cont [15/16] 0.0, 128
      %767 = vxpose.xlu0.b32.end [16/16] 0.0, 128
      %v768 = vpop.trf.xlu0
      %v769 = vpop.trf.xlu0
      %v770 = vpop.trf.xlu0
      %v771 = vpop.trf.xlu0
      %v772 = vpop.trf.xlu0
      %v773 = vpop.trf.xlu0
      %v774 = vpop.trf.xlu0
      %v775 = vpop.trf.xlu0
      %v776 = vpop.trf.xlu0
      %v777 = vpop.trf.xlu0
      %v778 = vpop.trf.xlu0
      %v779 = vpop.trf.xlu0
      %v780 = vpop.trf.xlu0
      %v781 = vpop.trf.xlu0
      %v782 = vpop.trf.xlu0
      %v783 = vpop.trf.xlu0
      %v784 = vpack.c.bf16 %v769, %v768
      %v785 = vpack.c.bf16 %v771, %v770
      %v786 = vld [vmem:[%s3] sm:$0xff]
      %v787 = vld [vmem:[%s3 + $0x8] sm:$0xff]
      %v788 = vld [vmem:[%s3 + $0x10] sm:$0xff]
      %v789 = vld [vmem:[%s3 + $0x18] sm:$0xff]
      %v790 = vld [vmem:[%s3 + $0x20] sm:$0xff]
      %v791 = vld [vmem:[%s3 + $0x28] sm:$0xff]
      %v792 = vld [vmem:[%s3 + $0x30] sm:$0xff]
      %v793 = vld [vmem:[%s3 + $0x38] sm:$0xff]
      %v795 = vlaneseq
      %v796 = vshrl.u32 %v795, 7
      %v797 = vsub.s32 0, %v796
      %v798 = vrot.slane %v564, %v797
      %v799 = vlaneseq
      %v800 = vshrl.u32 %v799, 7
      %v801 = vsub.s32 1, %v800
      %v802 = vrot.slane %v564, %v801
      %v813 = vunpack.c.l.b16 %v786
      %v814 = vunpack.c.h.b16 %v786
      %v815 = vunpack.c.l.b16 %v787
      %v816 = vunpack.c.h.b16 %v787
      %v817 = vunpack.c.l.b16 %v788
      %v818 = vunpack.c.h.b16 %v788
      %v819 = vunpack.c.l.b16 %v789
      %v820 = vunpack.c.h.b16 %v789
      %v821 = vunpack.c.l.b16 %v790
      %v822 = vunpack.c.h.b16 %v790
      %v823 = vunpack.c.l.b16 %v791
      %v824 = vunpack.c.h.b16 %v791
      %v825 = vunpack.c.l.b16 %v792
      %v826 = vunpack.c.h.b16 %v792
      %v827 = vunpack.c.l.b16 %v793
      %v828 = vunpack.c.h.b16 %v793
      %v829 = vpack.c.b16 %v815, %v813
      %v830 = vpack.c.b16 %v816, %v814
      %v831 = vpack.c.b16 %v819, %v817
      %v832 = vpack.c.b16 %v820, %v818
      %v833 = vpack.c.b16 %v823, %v821
      %v834 = vpack.c.b16 %v824, %v822
      %v835 = vpack.c.b16 %v827, %v825
      %v836 = vpack.c.b16 %v828, %v826
      %vm845 = vcmask 523264
      %v847 = vsel %vm845, %v784, 0
      %v850 = vsel %vm845, %v785, 0
      %852 = vmatprep.subr.bf16.mxu0 %v830
      %853 = vmatpush1.bf16.msra.mxu0 %v829
      %854 = vmatprep.subr.bf16.mxu0 %v832
      %855 = vmatpush1.bf16.msra.mxu0 %v831
      %856 = vmatprep.subr.bf16.mxu0 %v834
      %857 = vmatpush1.bf16.msra.mxu0 %v833
      %858 = vmatprep.subr.bf16.mxu0 %v836
      %859 = vmatpush1.bf16.msra.mxu0 %v835
      %860 = vmatprep.subr.bf16.mxu0 0
      %861 = vmatpush1.bf16.msra.mxu0 0
      %862 = vmatprep.subr.bf16.mxu0 0
      %863 = vmatpush1.bf16.msra.mxu0 0
      %864 = vmatprep.subr.bf16.mxu0 0
      %865 = vmatpush1.bf16.msra.mxu0 0
      %866 = vmatprep.subr.bf16.mxu0 0
      %867 = vmatpush1.bf16.msra.mxu0 0
      %868 = vmatprep.subr.bf16.mxu0 0
      %869 = vmatpush1.bf16.msra.mxu0 0
      %870 = vmatprep.subr.bf16.mxu0 0
      %871 = vmatpush1.bf16.msra.mxu0 0
      %872 = vmatprep.subr.bf16.mxu0 0
      %873 = vmatpush1.bf16.msra.mxu0 0
      %874 = vmatprep.subr.bf16.mxu0 0
      %875 = vmatpush1.bf16.msra.mxu0 0
      %876 = vmatprep.subr.bf16.mxu0 0
      %877 = vmatpush1.bf16.msra.mxu0 0
      %878 = vmatprep.subr.bf16.mxu0 0
      %879 = vmatpush1.bf16.msra.mxu0 0
      %880 = vmatprep.subr.bf16.mxu0 0
      %881 = vmatpush1.bf16.msra.mxu0 0
      %882 = vmatprep.subr.bf16.mxu0 0
      %883 = vmatpush1.bf16.msra.mxu0 0
      %884 = vmatprep.mubr.bf16.mxu0 0
      %885 = vmatmul.mubr.bf16.gmra.mrb[0].mxu0 %v847
      %v886 = vpop.f32.mrb[0].mxu0
      %v887 = vadd.f32 %v798, %v886
      %v888 = vpop.f32.mrb[0].mxu0
      %v889 = vadd.f32 %v802, %v888
      %v890 = vpop.f32.mrb[0].mxu0
      %v891 = vadd.f32 %v798, %v890
      %v892 = vpop.f32.mrb[0].mxu0
      %v893 = vadd.f32 %v802, %v892
      %894 = vmatprep.mubr.bf16.mxu0 0
      %895 = vmatmul.mubr.bf16.gmra.mrb[0].mxu0 %v850
      %v896 = vpop.f32.mrb[0].mxu0
      %v897 = vadd.f32 %v798, %v896
      %v898 = vpop.f32.mrb[0].mxu0
      %v899 = vadd.f32 %v802, %v898
      %v900 = vpop.f32.mrb[0].mxu0
      %v901 = vadd.f32 %v798, %v900
      %v902 = vpop.f32.mrb[0].mxu0
      %v903 = vadd.f32 %v802, %v902
      %904 = vdwg.mxu0
      %v905 = vmul.f32 %v887, 0.2
      %v906 = vmul.f32 %v889, 0.2
      %v907 = vmul.f32 %v891, 0.2
      %v908 = vmul.f32 %v893, 0.2
      %v909 = vmul.f32 %v897, 0.2
      %v910 = vmul.f32 %v899, 0.2
      %v911 = vmul.f32 %v901, 0.2
      %v912 = vmul.f32 %v903, 0.2
      %v913 = vmax.f32 %v887, %v905
      %v914 = vmax.f32 %v889, %v906
      %v915 = vmax.f32 %v891, %v907
      %v916 = vmax.f32 %v893, %v908
      %v917 = vmax.f32 %v897, %v909
      %v918 = vmax.f32 %v899, %v910
      %v919 = vmax.f32 %v901, %v911
      %v920 = vmax.f32 %v903, %v912
      %v921 = vpack.c.bf16 %v915, %v913
      %v922 = vpack.c.bf16 %v916, %v914
      %v923 = vpack.c.bf16 %v919, %v917
      %v924 = vpack.c.bf16 %v920, %v918
      %v925 = vld [vmem:[%s4] sm:$0xf]
      %v926 = vld [vmem:[%s4 + $0x4] sm:$0xf]
      %v927 = vld [vmem:[%s4 + $0x8] sm:$0xf]
      %v928 = vld [vmem:[%s4 + $0xc] sm:$0xf]
      %v929 = vld [vmem:[%s4 + $0x10] sm:$0xf]
      %v930 = vld [vmem:[%s4 + $0x14] sm:$0xf]
      %v931 = vld [vmem:[%s4 + $0x18] sm:$0xf]
      %v932 = vld [vmem:[%s4 + $0x1c] sm:$0xf]
      %v933 = vld [vmem:[%s4 + $0x20] sm:$0xf]
      %v934 = vld [vmem:[%s4 + $0x24] sm:$0xf]
      %v935 = vld [vmem:[%s4 + $0x28] sm:$0xf]
      %v936 = vld [vmem:[%s4 + $0x2c] sm:$0xf]
      %v937 = vld [vmem:[%s4 + $0x30] sm:$0xf]
      %v938 = vld [vmem:[%s4 + $0x34] sm:$0xf]
      %v939 = vld [vmem:[%s4 + $0x38] sm:$0xf]
      %v940 = vld [vmem:[%s4 + $0x3c] sm:$0xf]
      %v941 = vld [vmem:[%s4 + $0x40] sm:$0xf]
      %v942 = vld [vmem:[%s4 + $0x44] sm:$0xf]
      %v943 = vld [vmem:[%s4 + $0x48] sm:$0xf]
      %v944 = vld [vmem:[%s4 + $0x4c] sm:$0xf]
      %v945 = vld [vmem:[%s4 + $0x50] sm:$0xf]
      %v946 = vld [vmem:[%s4 + $0x54] sm:$0xf]
      %v947 = vld [vmem:[%s4 + $0x58] sm:$0xf]
      %v948 = vld [vmem:[%s4 + $0x5c] sm:$0xf]
      %v949 = vld [vmem:[%s4 + $0x60] sm:$0xf]
      %v950 = vld [vmem:[%s4 + $0x64] sm:$0xf]
      %v951 = vld [vmem:[%s4 + $0x68] sm:$0xf]
      %v952 = vld [vmem:[%s4 + $0x6c] sm:$0xf]
      %v953 = vld [vmem:[%s4 + $0x70] sm:$0xf]
      %v954 = vld [vmem:[%s4 + $0x74] sm:$0xf]
      %v955 = vld [vmem:[%s4 + $0x78] sm:$0xf]
      %v956 = vld [vmem:[%s4 + $0x7c] sm:$0xf]
      %v958 = vlaneseq
      %v959 = vshrl.u32 %v958, 7
      %v960 = vsub.s32 0, %v959
      %v961 = vrot.slane %v565, %v960
      %v995 = vunpack.c.l.b16 %v925
      %v996 = vunpack.c.l.b16 %v926
      %v997 = vunpack.c.l.b16 %v927
      %v998 = vunpack.c.l.b16 %v928
      %v999 = vunpack.c.l.b16 %v929
      %v1000 = vunpack.c.l.b16 %v930
      %v1001 = vunpack.c.l.b16 %v931
      %v1002 = vunpack.c.l.b16 %v932
      %v1003 = vunpack.c.l.b16 %v933
      %v1004 = vunpack.c.l.b16 %v934
      %v1005 = vunpack.c.l.b16 %v935
      %v1006 = vunpack.c.l.b16 %v936
      %v1007 = vunpack.c.l.b16 %v937
      %v1008 = vunpack.c.l.b16 %v938
      %v1009 = vunpack.c.l.b16 %v939
      %v1010 = vunpack.c.l.b16 %v940
      %v1011 = vunpack.c.l.b16 %v941
      %v1012 = vunpack.c.l.b16 %v942
      %v1013 = vunpack.c.l.b16 %v943
      %v1014 = vunpack.c.l.b16 %v944
      %v1015 = vunpack.c.l.b16 %v945
      %v1016 = vunpack.c.l.b16 %v946
      %v1017 = vunpack.c.l.b16 %v947
      %v1018 = vunpack.c.l.b16 %v948
      %v1019 = vunpack.c.l.b16 %v949
      %v1020 = vunpack.c.l.b16 %v950
      %v1021 = vunpack.c.l.b16 %v951
      %v1022 = vunpack.c.l.b16 %v952
      %v1023 = vunpack.c.l.b16 %v953
      %v1024 = vunpack.c.l.b16 %v954
      %v1025 = vunpack.c.l.b16 %v955
      %v1026 = vunpack.c.l.b16 %v956
      %v1027 = vpack.c.b16 %v996, %v995
      %v1028 = vpack.c.b16 %v998, %v997
      %v1029 = vpack.c.b16 %v1000, %v999
      %v1030 = vpack.c.b16 %v1002, %v1001
      %v1031 = vpack.c.b16 %v1004, %v1003
      %v1032 = vpack.c.b16 %v1006, %v1005
      %v1033 = vpack.c.b16 %v1008, %v1007
      %v1034 = vpack.c.b16 %v1010, %v1009
      %v1035 = vpack.c.b16 %v1012, %v1011
      %v1036 = vpack.c.b16 %v1014, %v1013
      %v1037 = vpack.c.b16 %v1016, %v1015
      %v1038 = vpack.c.b16 %v1018, %v1017
      %v1039 = vpack.c.b16 %v1020, %v1019
      %v1040 = vpack.c.b16 %v1022, %v1021
      %v1041 = vpack.c.b16 %v1024, %v1023
      %v1042 = vpack.c.b16 %v1026, %v1025
      %1059 = vmatprep.subr.bf16.mxu0 0
      %1060 = vmatpush1.bf16.msra.mxu0 %v1027
      %1061 = vmatprep.subr.bf16.mxu0 0
      %1062 = vmatpush1.bf16.msra.mxu0 %v1028
      %1063 = vmatprep.subr.bf16.mxu0 0
      %1064 = vmatpush1.bf16.msra.mxu0 %v1029
      %1065 = vmatprep.subr.bf16.mxu0 0
      %1066 = vmatpush1.bf16.msra.mxu0 %v1030
      %1067 = vmatprep.subr.bf16.mxu0 0
      %1068 = vmatpush1.bf16.msra.mxu0 %v1031
      %1069 = vmatprep.subr.bf16.mxu0 0
      %1070 = vmatpush1.bf16.msra.mxu0 %v1032
      %1071 = vmatprep.subr.bf16.mxu0 0
      %1072 = vmatpush1.bf16.msra.mxu0 %v1033
      %1073 = vmatprep.subr.bf16.mxu0 0
      %1074 = vmatpush1.bf16.msra.mxu0 %v1034
      %1075 = vmatprep.subr.bf16.mxu0 0
      %1076 = vmatpush1.bf16.msra.mxu0 %v1035
      %1077 = vmatprep.subr.bf16.mxu0 0
      %1078 = vmatpush1.bf16.msra.mxu0 %v1036
      %1079 = vmatprep.subr.bf16.mxu0 0
      %1080 = vmatpush1.bf16.msra.mxu0 %v1037
      %1081 = vmatprep.subr.bf16.mxu0 0
      %1082 = vmatpush1.bf16.msra.mxu0 %v1038
      %1083 = vmatprep.subr.bf16.mxu0 0
      %1084 = vmatpush1.bf16.msra.mxu0 %v1039
      %1085 = vmatprep.subr.bf16.mxu0 0
      %1086 = vmatpush1.bf16.msra.mxu0 %v1040
      %1087 = vmatprep.subr.bf16.mxu0 0
      %1088 = vmatpush1.bf16.msra.mxu0 %v1041
      %1089 = vmatprep.subr.bf16.mxu0 0
      %1090 = vmatpush1.bf16.msra.mxu0 %v1042
      %1091 = vmatprep.mubr.bf16.mxu0 %v922
      %1092 = vmatmul.mubr.bf16.gmra.mrb[0].mxu0 %v921
      %v1093 = vpop.f32.mrb[0].mxu0
      %v1094 = vadd.f32 %v961, %v1093
      %v1095 = vpop.f32.mrb[0].mxu0
      %v1096 = vpop.f32.mrb[0].mxu0
      %v1097 = vadd.f32 %v961, %v1096
      %v1098 = vpop.f32.mrb[0].mxu0
      %1099 = vmatprep.mubr.bf16.mxu0 %v924
      %1100 = vmatmul.mubr.bf16.gmra.mrb[0].mxu0 %v923
      %v1101 = vpop.f32.mrb[0].mxu0
      %v1102 = vadd.f32 %v961, %v1101
      %v1103 = vpop.f32.mrb[0].mxu0
      %v1104 = vpop.f32.mrb[0].mxu0
      %v1105 = vadd.f32 %v961, %v1104
      %v1106 = vpop.f32.mrb[0].mxu0
      %1107 = vdwg.mxu0
      %v1108 = vmul.f32 %v1094, 0.2
      %v1109 = vmul.f32 %v1097, 0.2
      %v1110 = vmul.f32 %v1102, 0.2
      %v1111 = vmul.f32 %v1105, 0.2
      %v1112 = vmax.f32 %v1094, %v1108
      %v1113 = vmax.f32 %v1097, %v1109
      %v1114 = vmax.f32 %v1102, %v1110
      %v1115 = vmax.f32 %v1105, %v1111
      %v1116 = vpack.c.bf16 %v1113, %v1112
      %v1117 = vpack.c.bf16 %v1115, %v1114
      %v1118 = vld [vmem:[%s5] sm:$0xf]
      %v1119 = vld [vmem:[%s5 + $0x4] sm:$0xf]
      %v1120 = vld [vmem:[%s5 + $0x8] sm:$0xf]
      %v1121 = vld [vmem:[%s5 + $0xc] sm:$0xf]
      %v1122 = vld [vmem:[%s5 + $0x10] sm:$0xf]
      %v1123 = vld [vmem:[%s5 + $0x14] sm:$0xf]
      %v1124 = vld [vmem:[%s5 + $0x18] sm:$0xf]
      %v1125 = vld [vmem:[%s5 + $0x1c] sm:$0xf]
      %v1127 = vlaneseq
      %v1128 = vshrl.u32 %v1127, 7
      %v1129 = vsub.s32 0, %v1128
      %v1130 = vrot.slane %v566, %v1129
      %v1140 = vunpack.c.l.b16 %v1118
      %v1141 = vunpack.c.l.b16 %v1119
      %v1142 = vunpack.c.l.b16 %v1120
      %v1143 = vunpack.c.l.b16 %v1121
      %v1144 = vunpack.c.l.b16 %v1122
      %v1145 = vunpack.c.l.b16 %v1123
      %v1146 = vunpack.c.l.b16 %v1124
      %v1147 = vunpack.c.l.b16 %v1125
      %v1148 = vpack.c.b16 %v1141, %v1140
      %v1149 = vpack.c.b16 %v1143, %v1142
      %v1150 = vpack.c.b16 %v1145, %v1144
      %v1151 = vpack.c.b16 %v1147, %v1146
      %v1157 = vsel %vm845, %v1116, 0
      %v1160 = vsel %vm845, %v1117, 0
      %1162 = vmatprep.subr.bf16.mxu0 0
      %1163 = vmatpush1.bf16.msra.mxu0 %v1148
      %1164 = vmatprep.subr.bf16.mxu0 0
      %1165 = vmatpush1.bf16.msra.mxu0 %v1149
      %1166 = vmatprep.subr.bf16.mxu0 0
      %1167 = vmatpush1.bf16.msra.mxu0 %v1150
      %1168 = vmatprep.subr.bf16.mxu0 0
      %1169 = vmatpush1.bf16.msra.mxu0 %v1151
      %1170 = vmatprep.subr.bf16.mxu0 0
      %1171 = vmatpush1.bf16.msra.mxu0 0
      %1172 = vmatprep.subr.bf16.mxu0 0
      %1173 = vmatpush1.bf16.msra.mxu0 0
      %1174 = vmatprep.subr.bf16.mxu0 0
      %1175 = vmatpush1.bf16.msra.mxu0 0
      %1176 = vmatprep.subr.bf16.mxu0 0
      %1177 = vmatpush1.bf16.msra.mxu0 0
      %1178 = vmatprep.subr.bf16.mxu0 0
      %1179 = vmatpush1.bf16.msra.mxu0 0
      %1180 = vmatprep.subr.bf16.mxu0 0
      %1181 = vmatpush1.bf16.msra.mxu0 0
      %1182 = vmatprep.subr.bf16.mxu0 0
      %1183 = vmatpush1.bf16.msra.mxu0 0
      %1184 = vmatprep.subr.bf16.mxu0 0
      %1185 = vmatpush1.bf16.msra.mxu0 0
      %1186 = vmatprep.subr.bf16.mxu0 0
      %1187 = vmatpush1.bf16.msra.mxu0 0
      %1188 = vmatprep.subr.bf16.mxu0 0
      %1189 = vmatpush1.bf16.msra.mxu0 0
      %1190 = vmatprep.subr.bf16.mxu0 0
      %1191 = vmatpush1.bf16.msra.mxu0 0
      %1192 = vmatprep.subr.bf16.mxu0 0
      %1193 = vmatpush1.bf16.msra.mxu0 0
      %1194 = vmatprep.mubr.bf16.mxu0 0
      %1195 = vmatmul.mubr.bf16.gmra.mrb[0].mxu0 %v1157
      %v1196 = vpop.f32.mrb[0].mxu0
      %v1197 = vadd.f32 %v1130, %v1196
      %v1198 = vpop.f32.mrb[0].mxu0
      %v1199 = vpop.f32.mrb[0].mxu0
      %v1200 = vadd.f32 %v1130, %v1199
      %v1201 = vpop.f32.mrb[0].mxu0
      %1202 = vmatprep.mubr.bf16.mxu0 0
      %1203 = vmatmul.mubr.bf16.gmra.mrb[0].mxu0 %v1160
      %v1204 = vpop.f32.mrb[0].mxu0
      %v1205 = vadd.f32 %v1130, %v1204
      %v1206 = vpop.f32.mrb[0].mxu0
      %v1207 = vpop.f32.mrb[0].mxu0
      %v1208 = vadd.f32 %v1130, %v1207
      %v1209 = vpop.f32.mrb[0].mxu0
      %1210 = vdwg.mxu0
      %1211 = vxpose.xlu0.b32.start [1/16] %v1197, 128
      %1212 = vxpose.xlu0.b32.cont [2/16] %v1200, 128
      %1213 = vxpose.xlu0.b32.cont [3/16] %v1205, 128
      %1214 = vxpose.xlu0.b32.cont [4/16] %v1208, 128
      %1215 = vxpose.xlu0.b32.cont [5/16] 0.0, 128
      %1216 = vxpose.xlu0.b32.cont [6/16] 0.0, 128
      %1217 = vxpose.xlu0.b32.cont [7/16] 0.0, 128
      %1218 = vxpose.xlu0.b32.cont [8/16] 0.0, 128
      %1219 = vxpose.xlu0.b32.cont [9/16] 0.0, 128
      %1220 = vxpose.xlu0.b32.cont [10/16] 0.0, 128
      %1221 = vxpose.xlu0.b32.cont [11/16] 0.0, 128
      %1222 = vxpose.xlu0.b32.cont [12/16] 0.0, 128
      %1223 = vxpose.xlu0.b32.cont [13/16] 0.0, 128
      %1224 = vxpose.xlu0.b32.cont [14/16] 0.0, 128
      %1225 = vxpose.xlu0.b32.cont [15/16] 0.0, 128
      %1226 = vxpose.xlu0.b32.end [16/16] 0.0, 128
      %v1227 = vpop.trf.xlu0
      %v1228 = vpop.trf.xlu0
      %v1229 = vpop.trf.xlu0
      %v1230 = vpop.trf.xlu0
      %v1231 = vpop.trf.xlu0
      %v1232 = vpop.trf.xlu0
      %v1233 = vpop.trf.xlu0
      %v1234 = vpop.trf.xlu0
      %v1235 = vpop.trf.xlu0
      %v1236 = vpop.trf.xlu0
      %v1237 = vpop.trf.xlu0
      %v1238 = vpop.trf.xlu0
      %v1239 = vpop.trf.xlu0
      %v1240 = vpop.trf.xlu0
      %v1241 = vpop.trf.xlu0
      %v1242 = vpop.trf.xlu0
      %v1243 = vmul.f32 %v1227, 0.17677669
      %v1244 = vmul.f32 %v1228, 0.17677669
      %v1245 = vpack.c.bf16 %v1244, %v1243
      %v1247 = vsel %vm609, %v1245, 0
      %1249 = vmatprep.subr.bf16.mxu0 0
      %1250 = vmatpush1.bf16.xpose.msra.mxu0 %v611
      %1251 = vmatprep.subr.bf16.mxu0 0
      %1252 = vmatpush1.bf16.xpose.msra.mxu0 %v614
      %1253 = vmatprep.subr.bf16.mxu0 0
      %1254 = vmatpush1.bf16.xpose.msra.mxu0 %v617
      %1255 = vmatprep.subr.bf16.mxu0 0
      %1256 = vmatpush1.bf16.xpose.msra.mxu0 %v620
      %1257 = vmatprep.subr.bf16.mxu0 0
      %1258 = vmatpush1.bf16.xpose.msra.mxu0 0
      %1259 = vmatprep.subr.bf16.mxu0 0
      %1260 = vmatpush1.bf16.xpose.msra.mxu0 0
      %1261 = vmatprep.subr.bf16.mxu0 0
      %1262 = vmatpush1.bf16.xpose.msra.mxu0 0
      %1263 = vmatprep.subr.bf16.mxu0 0
      %1264 = vmatpush1.bf16.xpose.msra.mxu0 0
      %1265 = vmatprep.subr.bf16.mxu0 0
      %1266 = vmatpush1.bf16.xpose.msra.mxu0 0
      %1267 = vmatprep.subr.bf16.mxu0 0
      %1268 = vmatpush1.bf16.xpose.msra.mxu0 0
      %1269 = vmatprep.subr.bf16.mxu0 0
      %1270 = vmatpush1.bf16.xpose.msra.mxu0 0
      %1271 = vmatprep.subr.bf16.mxu0 0
      %1272 = vmatpush1.bf16.xpose.msra.mxu0 0
      %1273 = vmatprep.subr.bf16.mxu0 0
      %1274 = vmatpush1.bf16.xpose.msra.mxu0 0
      %1275 = vmatprep.subr.bf16.mxu0 0
      %1276 = vmatpush1.bf16.xpose.msra.mxu0 0
      %1277 = vmatprep.subr.bf16.mxu0 0
      %1278 = vmatpush1.bf16.xpose.msra.mxu0 0
      %1279 = vmatprep.subr.bf16.mxu0 0
      %1280 = vmatpush1.bf16.xpose.msra.mxu0 0
      %1281 = vmatprep.mubr.bf16.mxu0 0
      %1282 = vmatmul.mubr.bf16.gmra.mrb[0].mxu0 %v1247
      %v1283 = vpop.f32.mrb[0].mxu0
      %v1284 = vadd.f32 0.0, %v1283
      %v1285 = vpop.f32.mrb[0].mxu0
      %v1286 = vpop.f32.mrb[0].mxu0
      %v1287 = vadd.f32 0.0, %v1286
      %v1288 = vpop.f32.mrb[0].mxu0
      %1289 = vdwg.mxu0
      %v1290 = vsel %vm845, %v1284, -inf
      %1291 = vmax.xlane.f32.xlu0 %v1290
      %v1292 = vpop.xlane.xlu0 %1291
      %v1293 = vsel %vm845, %v1287, -inf
      %1294 = vmax.xlane.f32.xlu0 %v1293
      %v1295 = vpop.xlane.xlu0 %1294
      %v1296 = vsub.f32 %v1284, %v1292
      %v1297 = vsub.f32 %v1287, %v1295
      %v1298 = vmul.f32 %v1296, 1.442695
      %v1299 = vpow.pop %v1298
      %v1300 = vmul.f32 %v1297, 1.442695
      %v1301 = vpow.pop %v1300
      %v1302 = vsel %vm845, %v1299, 0.0
      %1303 = vadd.xlane.f32.xlu0 %v1302
      %v1304 = vpop.xlane.xlu0 %1303
      %v1305 = vsel %vm845, %v1301, 0.0
      %1306 = vadd.xlane.f32.xlu0 %v1305
      %v1307 = vpop.xlane.xlu0 %1306
      %v1308 = vrcp.pop %v1304
      %v1309 = vrcp.pop %v1307
      %v1310 = vmul.f32 %v1299, %v1308
      %v1311 = vmul.f32 %v1301, %v1309
      %v1312 = vpack.c.bf16 %v1311, %v1310
      %v1313 = vpack.c.bf16 %v582, %v581
      %v1314 = vpack.c.bf16 %v584, %v583
      %v1315 = vpack.c.bf16 %v586, %v585
      %v1316 = vpack.c.bf16 %v588, %v587
      %v1318 = vsel %vm845, %v1312, 0
      %1320 = vmatprep.subr.bf16.mxu0 0
      %1321 = vmatpush1.bf16.msra.mxu0 %v1313
      %1322 = vmatprep.subr.bf16.mxu0 0
      %1323 = vmatpush1.bf16.msra.mxu0 %v1314
      %1324 = vmatprep.subr.bf16.mxu0 0
      %1325 = vmatpush1.bf16.msra.mxu0 %v1315
      %1326 = vmatprep.subr.bf16.mxu0 0
      %1327 = vmatpush1.bf16.msra.mxu0 %v1316
      %1328 = vmatprep.subr.bf16.mxu0 0
      %1329 = vmatpush1.bf16.msra.mxu0 0
      %1330 = vmatprep.subr.bf16.mxu0 0
      %1331 = vmatpush1.bf16.msra.mxu0 0
      %1332 = vmatprep.subr.bf16.mxu0 0
      %1333 = vmatpush1.bf16.msra.mxu0 0
      %1334 = vmatprep.subr.bf16.mxu0 0
      %1335 = vmatpush1.bf16.msra.mxu0 0
      %1336 = vmatprep.subr.bf16.mxu0 0
      %1337 = vmatpush1.bf16.msra.mxu0 0
      %1338 = vmatprep.subr.bf16.mxu0 0
      %1339 = vmatpush1.bf16.msra.mxu0 0
      %1340 = vmatprep.subr.bf16.mxu0 0
      %1341 = vmatpush1.bf16.msra.mxu0 0
      %1342 = vmatprep.subr.bf16.mxu0 0
      %1343 = vmatpush1.bf16.msra.mxu0 0
      %1344 = vmatprep.subr.bf16.mxu0 0
      %1345 = vmatpush1.bf16.msra.mxu0 0
      %1346 = vmatprep.subr.bf16.mxu0 0
      %1347 = vmatpush1.bf16.msra.mxu0 0
      %1348 = vmatprep.subr.bf16.mxu0 0
      %1349 = vmatpush1.bf16.msra.mxu0 0
      %1350 = vmatprep.subr.bf16.mxu0 0
      %1351 = vmatpush1.bf16.msra.mxu0 0
      %1352 = vmatprep.mubr.bf16.mxu0 0
      %1353 = vmatmul.mubr.bf16.gmra.mrb[0].mxu0 %v1318
      %v1354 = vpop.f32.mrb[0].mxu0
      %v1355 = vadd.f32 0.0, %v1354
      %v1356 = vpop.f32.mrb[0].mxu0
      %v1357 = vpop.f32.mrb[0].mxu0
      %v1358 = vadd.f32 0.0, %v1357
      %v1359 = vpop.f32.mrb[0].mxu0
      %1360 = vdwg.mxu0
      %v1361 = vpack.c.bf16 %v743, %v743
      %v1362 = vld [vmem:[%s7] sm:$0xf]
      %v1363 = vld [vmem:[%s7 + $0x4] sm:$0xf]
      %v1364 = vld [vmem:[%s7 + $0x8] sm:$0xf]
      %v1365 = vld [vmem:[%s7 + $0xc] sm:$0xf]
      %v1370 = vunpack.c.l.b16 %v1362
      %v1371 = vunpack.c.l.b16 %v1363
      %v1372 = vunpack.c.l.b16 %v1364
      %v1373 = vunpack.c.l.b16 %v1365
      %v1374 = vpack.c.b16 %v1371, %v1370
      %v1375 = vpack.c.b16 %v1373, %v1372
      %v1379 = vsel %vm609, %v1361, 0
      %1381 = vmatprep.subr.bf16.mxu0 0
      %1382 = vmatpush1.bf16.msra.mxu0 %v1374
      %1383 = vmatprep.subr.bf16.mxu0 0
      %1384 = vmatpush1.bf16.msra.mxu0 %v1375
      %1385 = vmatprep.subr.bf16.mxu0 0
      %1386 = vmatpush1.bf16.msra.mxu0 0
      %1387 = vmatprep.subr.bf16.mxu0 0
      %1388 = vmatpush1.bf16.msra.mxu0 0
      %1389 = vmatprep.subr.bf16.mxu0 0
      %1390 = vmatpush1.bf16.msra.mxu0 0
      %1391 = vmatprep.subr.bf16.mxu0 0
      %1392 = vmatpush1.bf16.msra.mxu0 0
      %1393 = vmatprep.subr.bf16.mxu0 0
      %1394 = vmatpush1.bf16.msra.mxu0 0
      %1395 = vmatprep.subr.bf16.mxu0 0
      %1396 = vmatpush1.bf16.msra.mxu0 0
      %1397 = vmatprep.subr.bf16.mxu0 0
      %1398 = vmatpush1.bf16.msra.mxu0 0
      %1399 = vmatprep.subr.bf16.mxu0 0
      %1400 = vmatpush1.bf16.msra.mxu0 0
      %1401 = vmatprep.subr.bf16.mxu0 0
      %1402 = vmatpush1.bf16.msra.mxu0 0
      %1403 = vmatprep.subr.bf16.mxu0 0
      %1404 = vmatpush1.bf16.msra.mxu0 0
      %1405 = vmatprep.subr.bf16.mxu0 0
      %1406 = vmatpush1.bf16.msra.mxu0 0
      %1407 = vmatprep.subr.bf16.mxu0 0
      %1408 = vmatpush1.bf16.msra.mxu0 0
      %1409 = vmatprep.subr.bf16.mxu0 0
      %1410 = vmatpush1.bf16.msra.mxu0 0
      %1411 = vmatprep.subr.bf16.mxu0 0
      %1412 = vmatpush1.bf16.msra.mxu0 0
      %1413 = vmatprep.mubr.bf16.mxu0 0
      %1414 = vmatmul.mubr.bf16.gmra.mrb[0].mxu0 %v1379
      %v1415 = vpop.f32.mrb[0].mxu0
      %v1416 = vadd.f32 0.0, %v1415
      %v1417 = vpop.f32.mrb[0].mxu0
      %v1418 = vpop.f32.mrb[0].mxu0
      %v1419 = vpop.f32.mrb[0].mxu0
      %1420 = vdwg.mxu0
      %v1421 = vpack.c.bf16 %v1358, %v1355
      %v1422 = vld [vmem:[%s6] sm:$0x3]
      %v1423 = vlaneseq
      %v1424 = vshrl.u32 %v1423, 7
      %v1425 = vsub.s32 0, %v1424
      %v1426 = vrot.slane %v1416, %v1425
      %vm1427 = vcmask 23552
      %v1429 = vsel %vm1427, %v1421, 0
      %vm1431 = vcmask 1040384
      %vm1432 = vcmask 1041408
      %v1433 = vsel %vm1431, 4294967295, 65535
      %v1434 = vsel %vm1432, %v1433, 0
      %v1436 = vand.u32 %v1422, %v1434
      %1438 = vmatprep.subr.bf16.mxu0 0
      %1439 = vmatpush1.bf16.msra.mxu0 %v1436
      %1440 = vmatprep.subr.bf16.mxu0 0
      %1441 = vmatpush1.bf16.msra.mxu0 0
      %1442 = vmatprep.subr.bf16.mxu0 0
      %1443 = vmatpush1.bf16.msra.mxu0 0
      %1444 = vmatprep.subr.bf16.mxu0 0
      %1445 = vmatpush1.bf16.msra.mxu0 0
      %1446 = vmatprep.subr.bf16.mxu0 0
      %1447 = vmatpush1.bf16.msra.mxu0 0
      %1448 = vmatprep.subr.bf16.mxu0 0
      %1449 = vmatpush1.bf16.msra.mxu0 0
      %1450 = vmatprep.subr.bf16.mxu0 0
      %1451 = vmatpush1.bf16.msra.mxu0 0
      %1452 = vmatprep.subr.bf16.mxu0 0
      %1453 = vmatpush1.bf16.msra.mxu0 0
      %1454 = vmatprep.subr.bf16.mxu0 0
      %1455 = vmatpush1.bf16.msra.mxu0 0
      %1456 = vmatprep.subr.bf16.mxu0 0
      %1457 = vmatpush1.bf16.msra.mxu0 0
      %1458 = vmatprep.subr.bf16.mxu0 0
      %1459 = vmatpush1.bf16.msra.mxu0 0
      %1460 = vmatprep.subr.bf16.mxu0 0
      %1461 = vmatpush1.bf16.msra.mxu0 0
      %1462 = vmatprep.subr.bf16.mxu0 0
      %1463 = vmatpush1.bf16.msra.mxu0 0
      %1464 = vmatprep.subr.bf16.mxu0 0
      %1465 = vmatpush1.bf16.msra.mxu0 0
      %1466 = vmatprep.subr.bf16.mxu0 0
      %1467 = vmatpush1.bf16.msra.mxu0 0
      %1468 = vmatprep.subr.bf16.mxu0 0
      %1469 = vmatpush1.bf16.msra.mxu0 0
      %1470 = vmatprep.mubr.bf16.mxu0 0
      %1471 = vmatmul.mubr.bf16.gmra.mrb[0].mxu0 %v1429
      %v1472 = vpop.f32.mrb[0].mxu0
      %v1473 = vadd.f32 %v1426, %v1472
      %v1474 = vpop.f32.mrb[0].mxu0
      %v1475 = vpop.f32.mrb[0].mxu0
      %v1476 = vadd.f32 %v1426, %v1475
      %v1477 = vpop.f32.mrb[0].mxu0
      %1478 = vdwg.mxu0
      %v1480 = vlaneseq
      %v1481 = vshrl.u32 %v1480, 7
      %v1482 = vsub.s32 0, %v1481
      %v1483 = vrot.slane %v567, %v1482
      %v1485 = vadd.f32 %v1473, %v1483
      %v1486 = vadd.f32 %v1476, %v1483
      %v1487 = vmax.f32 %v1485, 0.0
      %v1488 = vmax.f32 %v1486, 0.0
      %v1489 = vpack.c.bf16 %v1488, %v1487
      %v1490 = vld [vmem:[%s8] sm:$0xf]
      %v1491 = vld [vmem:[%s8 + $0x4] sm:$0xf]
      %v1493 = vlaneseq
      %v1494 = vshrl.u32 %v1493, 7
      %v1495 = vsub.s32 0, %v1494
      %v1496 = vrot.slane %v568, %v1495
      %v1500 = vunpack.c.l.b16 %v1490
      %v1501 = vunpack.c.l.b16 %v1491
      %v1502 = vpack.c.b16 %v1501, %v1500
      %vm1504 = vcmask 130048
      %v1506 = vsel %vm1504, %v1489, 0
      %1508 = vmatprep.subr.bf16.mxu0 0
      %1509 = vmatpush1.bf16.msra.mxu0 %v1502
      %1510 = vmatprep.subr.bf16.mxu0 0
      %1511 = vmatpush1.bf16.msra.mxu0 0
      %1512 = vmatprep.subr.bf16.mxu0 0
      %1513 = vmatpush1.bf16.msra.mxu0 0
      %1514 = vmatprep.subr.bf16.mxu0 0
      %1515 = vmatpush1.bf16.msra.mxu0 0
      %1516 = vmatprep.subr.bf16.mxu0 0
      %1517 = vmatpush1.bf16.msra.mxu0 0
      %1518 = vmatprep.subr.bf16.mxu0 0
      %1519 = vmatpush1.bf16.msra.mxu0 0
      %1520 = vmatprep.subr.bf16.mxu0 0
      %1521 = vmatpush1.bf16.msra.mxu0 0
      %1522 = vmatprep.subr.bf16.mxu0 0
      %1523 = vmatpush1.bf16.msra.mxu0 0
      %1524 = vmatprep.subr.bf16.mxu0 0
      %1525 = vmatpush1.bf16.msra.mxu0 0
      %1526 = vmatprep.subr.bf16.mxu0 0
      %1527 = vmatpush1.bf16.msra.mxu0 0
      %1528 = vmatprep.subr.bf16.mxu0 0
      %1529 = vmatpush1.bf16.msra.mxu0 0
      %1530 = vmatprep.subr.bf16.mxu0 0
      %1531 = vmatpush1.bf16.msra.mxu0 0
      %1532 = vmatprep.subr.bf16.mxu0 0
      %1533 = vmatpush1.bf16.msra.mxu0 0
      %1534 = vmatprep.subr.bf16.mxu0 0
      %1535 = vmatpush1.bf16.msra.mxu0 0
      %1536 = vmatprep.subr.bf16.mxu0 0
      %1537 = vmatpush1.bf16.msra.mxu0 0
      %1538 = vmatprep.subr.bf16.mxu0 0
      %1539 = vmatpush1.bf16.msra.mxu0 0
      %1540 = vmatprep.mubr.bf16.mxu0 0
      %1541 = vmatmul.mubr.bf16.gmra.mrb[0].mxu0 %v1506
      %v1542 = vpop.f32.mrb[0].mxu0
      %v1543 = vadd.f32 %v1496, %v1542
      %v1544 = vpop.f32.mrb[0].mxu0
      %v1545 = vpop.f32.mrb[0].mxu0
      %v1546 = vadd.f32 %v1496, %v1545
      %v1547 = vpop.f32.mrb[0].mxu0
      %1548 = vdwg.mxu0
      %v1549 = vmax.f32 %v1543, 0.0
      %v1550 = vmax.f32 %v1546, 0.0
      %v1551 = vpack.c.bf16 %v1550, %v1549
      %v1552 = vld [vmem:[%s9] sm:$0xf]
      %v1554 = vlaneseq
      %v1555 = vshrl.u32 %v1554, 7
      %v1556 = vsub.s32 0, %v1555
      %v1557 = vrot.slane %v569, %v1556
      %vm1559 = vcmask 64512
      %v1561 = vsel %vm1559, %v1551, 0
      %vm1563 = vcmask 1043456
      %v1565 = vsel %vm1563, %v1552, 0
      %1567 = vmatprep.subr.bf16.mxu0 0
      %1568 = vmatpush1.bf16.msra.mxu0 %v1565
      %1569 = vmatprep.subr.bf16.mxu0 0
      %1570 = vmatpush1.bf16.msra.mxu0 0
      %1571 = vmatprep.subr.bf16.mxu0 0
      %1572 = vmatpush1.bf16.msra.mxu0 0
      %1573 = vmatprep.subr.bf16.mxu0 0
      %1574 = vmatpush1.bf16.msra.mxu0 0
      %1575 = vmatprep.subr.bf16.mxu0 0
      %1576 = vmatpush1.bf16.msra.mxu0 0
      %1577 = vmatprep.subr.bf16.mxu0 0
      %1578 = vmatpush1.bf16.msra.mxu0 0
      %1579 = vmatprep.subr.bf16.mxu0 0
      %1580 = vmatpush1.bf16.msra.mxu0 0
      %1581 = vmatprep.subr.bf16.mxu0 0
      %1582 = vmatpush1.bf16.msra.mxu0 0
      %1583 = vmatprep.subr.bf16.mxu0 0
      %1584 = vmatpush1.bf16.msra.mxu0 0
      %1585 = vmatprep.subr.bf16.mxu0 0
      %1586 = vmatpush1.bf16.msra.mxu0 0
      %1587 = vmatprep.subr.bf16.mxu0 0
      %1588 = vmatpush1.bf16.msra.mxu0 0
      %1589 = vmatprep.subr.bf16.mxu0 0
      %1590 = vmatpush1.bf16.msra.mxu0 0
      %1591 = vmatprep.subr.bf16.mxu0 0
      %1592 = vmatpush1.bf16.msra.mxu0 0
      %1593 = vmatprep.subr.bf16.mxu0 0
      %1594 = vmatpush1.bf16.msra.mxu0 0
      %1595 = vmatprep.subr.bf16.mxu0 0
      %1596 = vmatpush1.bf16.msra.mxu0 0
      %1597 = vmatprep.subr.bf16.mxu0 0
      %1598 = vmatpush1.bf16.msra.mxu0 0
      %1599 = vmatprep.mubr.bf16.mxu0 0
      %1600 = vmatmul.mubr.bf16.gmra.mrb[0].mxu0 %v1561
      %v1601 = vpop.f32.mrb[0].mxu0
      %v1602 = vadd.f32 %v1557, %v1601
      %v1603 = vpop.f32.mrb[0].mxu0
      %v1604 = vpop.f32.mrb[0].mxu0
      %v1605 = vadd.f32 %v1557, %v1604
      %v1606 = vpop.f32.mrb[0].mxu0
      %1607 = vdwg.mxu0
      %v1608 = vld [vmem:[%s11] sm:$0xf]
      %v1609 = vld [vmem:[%s11 + $0x4] sm:$0xf]
      %v1610 = vld [vmem:[%s11 + $0x8] sm:$0xf]
      %v1611 = vld [vmem:[%s11 + $0xc] sm:$0xf]
      %v1616 = vunpack.c.l.b16 %v1608
      %v1617 = vunpack.c.l.b16 %v1609
      %v1618 = vunpack.c.l.b16 %v1610
      %v1619 = vunpack.c.l.b16 %v1611
      %v1620 = vpack.c.b16 %v1617, %v1616
      %v1621 = vpack.c.b16 %v1619, %v1618
      %1624 = vmatprep.subr.bf16.mxu0 0
      %1625 = vmatpush1.bf16.msra.mxu0 %v1620
      %1626 = vmatprep.subr.bf16.mxu0 0
      %1627 = vmatpush1.bf16.msra.mxu0 %v1621
      %1628 = vmatprep.subr.bf16.mxu0 0
      %1629 = vmatpush1.bf16.msra.mxu0 0
      %1630 = vmatprep.subr.bf16.mxu0 0
      %1631 = vmatpush1.bf16.msra.mxu0 0
      %1632 = vmatprep.subr.bf16.mxu0 0
      %1633 = vmatpush1.bf16.msra.mxu0 0
      %1634 = vmatprep.subr.bf16.mxu0 0
      %1635 = vmatpush1.bf16.msra.mxu0 0
      %1636 = vmatprep.subr.bf16.mxu0 0
      %1637 = vmatpush1.bf16.msra.mxu0 0
      %1638 = vmatprep.subr.bf16.mxu0 0
      %1639 = vmatpush1.bf16.msra.mxu0 0
      %1640 = vmatprep.subr.bf16.mxu0 0
      %1641 = vmatpush1.bf16.msra.mxu0 0
      %1642 = vmatprep.subr.bf16.mxu0 0
      %1643 = vmatpush1.bf16.msra.mxu0 0
      %1644 = vmatprep.subr.bf16.mxu0 0
      %1645 = vmatpush1.bf16.msra.mxu0 0
      %1646 = vmatprep.subr.bf16.mxu0 0
      %1647 = vmatpush1.bf16.msra.mxu0 0
      %1648 = vmatprep.subr.bf16.mxu0 0
      %1649 = vmatpush1.bf16.msra.mxu0 0
      %1650 = vmatprep.subr.bf16.mxu0 0
      %1651 = vmatpush1.bf16.msra.mxu0 0
      %1652 = vmatprep.subr.bf16.mxu0 0
      %1653 = vmatpush1.bf16.msra.mxu0 0
      %1654 = vmatprep.subr.bf16.mxu0 0
      %1655 = vmatpush1.bf16.msra.mxu0 0
      %1656 = vmatprep.mubr.bf16.mxu0 0
      %1657 = vmatmul.mubr.bf16.gmra.mrb[0].mxu0 %v1379
      %v1658 = vpop.f32.mrb[0].mxu0
      %v1659 = vadd.f32 0.0, %v1658
      %v1660 = vpop.f32.mrb[0].mxu0
      %v1661 = vpop.f32.mrb[0].mxu0
      %v1662 = vpop.f32.mrb[0].mxu0
      %1663 = vdwg.mxu0
      %v1664 = vpack.c.bf16 %v1605, %v1602
      %v1665 = vld [vmem:[%s10] sm:$0x3]
      %v1666 = vlaneseq
      %v1667 = vshrl.u32 %v1666, 7
      %v1668 = vsub.s32 0, %v1667
      %v1669 = vrot.slane %v1659, %v1668
      %v1671 = vsel %vm1427, %v1664, 0
      %v1674 = vand.u32 %v1665, %v1434
      %1676 = vmatprep.subr.bf16.mxu0 0
      %1677 = vmatpush1.bf16.msra.mxu0 %v1674
      %1678 = vmatprep.subr.bf16.mxu0 0
      %1679 = vmatpush1.bf16.msra.mxu0 0
      %1680 = vmatprep.subr.bf16.mxu0 0
      %1681 = vmatpush1.bf16.msra.mxu0 0
      %1682 = vmatprep.subr.bf16.mxu0 0
      %1683 = vmatpush1.bf16.msra.mxu0 0
      %1684 = vmatprep.subr.bf16.mxu0 0
      %1685 = vmatpush1.bf16.msra.mxu0 0
      %1686 = vmatprep.subr.bf16.mxu0 0
      %1687 = vmatpush1.bf16.msra.mxu0 0
      %1688 = vmatprep.subr.bf16.mxu0 0
      %1689 = vmatpush1.bf16.msra.mxu0 0
      %1690 = vmatprep.subr.bf16.mxu0 0
      %1691 = vmatpush1.bf16.msra.mxu0 0
      %1692 = vmatprep.subr.bf16.mxu0 0
      %1693 = vmatpush1.bf16.msra.mxu0 0
      %1694 = vmatprep.subr.bf16.mxu0 0
      %1695 = vmatpush1.bf16.msra.mxu0 0
      %1696 = vmatprep.subr.bf16.mxu0 0
      %1697 = vmatpush1.bf16.msra.mxu0 0
      %1698 = vmatprep.subr.bf16.mxu0 0
      %1699 = vmatpush1.bf16.msra.mxu0 0
      %1700 = vmatprep.subr.bf16.mxu0 0
      %1701 = vmatpush1.bf16.msra.mxu0 0
      %1702 = vmatprep.subr.bf16.mxu0 0
      %1703 = vmatpush1.bf16.msra.mxu0 0
      %1704 = vmatprep.subr.bf16.mxu0 0
      %1705 = vmatpush1.bf16.msra.mxu0 0
      %1706 = vmatprep.subr.bf16.mxu0 0
      %1707 = vmatpush1.bf16.msra.mxu0 0
      %1708 = vmatprep.mubr.bf16.mxu0 0
      %1709 = vmatmul.mubr.bf16.gmra.mrb[0].mxu0 %v1671
      %v1710 = vpop.f32.mrb[0].mxu0
      %v1711 = vadd.f32 %v1669, %v1710
      %v1712 = vpop.f32.mrb[0].mxu0
      %v1713 = vpop.f32.mrb[0].mxu0
      %v1714 = vadd.f32 %v1669, %v1713
      %v1715 = vpop.f32.mrb[0].mxu0
      %1716 = vdwg.mxu0
      %v1718 = vlaneseq
      %v1719 = vshrl.u32 %v1718, 7
      %v1720 = vsub.s32 0, %v1719
      %v1721 = vrot.slane %v570, %v1720
      %v1723 = vadd.f32 %v1711, %v1721
      %v1724 = vadd.f32 %v1714, %v1721
      %v1725 = vmax.f32 %v1723, 0.0
      %v1726 = vmax.f32 %v1724, 0.0
      %v1727 = vpack.c.bf16 %v1726, %v1725
      %v1728 = vld [vmem:[%s12] sm:$0xf]
      %v1729 = vld [vmem:[%s12 + $0x4] sm:$0xf]
      %v1731 = vlaneseq
      %v1732 = vshrl.u32 %v1731, 7
      %v1733 = vsub.s32 0, %v1732
      %v1734 = vrot.slane %v571, %v1733
      %v1738 = vunpack.c.l.b16 %v1728
      %v1739 = vunpack.c.l.b16 %v1729
      %v1740 = vpack.c.b16 %v1739, %v1738
      %v1743 = vsel %vm1504, %v1727, 0
      %1745 = vmatprep.subr.bf16.mxu0 0
      %1746 = vmatpush1.bf16.msra.mxu0 %v1740
      %1747 = vmatprep.subr.bf16.mxu0 0
      %1748 = vmatpush1.bf16.msra.mxu0 0
      %1749 = vmatprep.subr.bf16.mxu0 0
      %1750 = vmatpush1.bf16.msra.mxu0 0
      %1751 = vmatprep.subr.bf16.mxu0 0
      %1752 = vmatpush1.bf16.msra.mxu0 0
      %1753 = vmatprep.subr.bf16.mxu0 0
      %1754 = vmatpush1.bf16.msra.mxu0 0
      %1755 = vmatprep.subr.bf16.mxu0 0
      %1756 = vmatpush1.bf16.msra.mxu0 0
      %1757 = vmatprep.subr.bf16.mxu0 0
      %1758 = vmatpush1.bf16.msra.mxu0 0
      %1759 = vmatprep.subr.bf16.mxu0 0
      %1760 = vmatpush1.bf16.msra.mxu0 0
      %1761 = vmatprep.subr.bf16.mxu0 0
      %1762 = vmatpush1.bf16.msra.mxu0 0
      %1763 = vmatprep.subr.bf16.mxu0 0
      %1764 = vmatpush1.bf16.msra.mxu0 0
      %1765 = vmatprep.subr.bf16.mxu0 0
      %1766 = vmatpush1.bf16.msra.mxu0 0
      %1767 = vmatprep.subr.bf16.mxu0 0
      %1768 = vmatpush1.bf16.msra.mxu0 0
      %1769 = vmatprep.subr.bf16.mxu0 0
      %1770 = vmatpush1.bf16.msra.mxu0 0
      %1771 = vmatprep.subr.bf16.mxu0 0
      %1772 = vmatpush1.bf16.msra.mxu0 0
      %1773 = vmatprep.subr.bf16.mxu0 0
      %1774 = vmatpush1.bf16.msra.mxu0 0
      %1775 = vmatprep.subr.bf16.mxu0 0
      %1776 = vmatpush1.bf16.msra.mxu0 0
      %1777 = vmatprep.mubr.bf16.mxu0 0
      %1778 = vmatmul.mubr.bf16.gmra.mrb[0].mxu0 %v1743
      %v1779 = vpop.f32.mrb[0].mxu0
      %v1780 = vadd.f32 %v1734, %v1779
      %v1781 = vpop.f32.mrb[0].mxu0
      %v1782 = vpop.f32.mrb[0].mxu0
      %v1783 = vadd.f32 %v1734, %v1782
      %v1784 = vpop.f32.mrb[0].mxu0
      %1785 = vdwg.mxu0
      %v1786 = vmax.f32 %v1780, 0.0
      %v1787 = vmax.f32 %v1783, 0.0
      %v1788 = vpack.c.bf16 %v1787, %v1786
      %v1789 = vld [vmem:[%s13] sm:$0xf]
      %v1791 = vlaneseq
      %v1792 = vshrl.u32 %v1791, 7
      %v1793 = vsub.s32 0, %v1792
      %v1794 = vrot.slane %v572, %v1793
      %v1797 = vsel %vm1559, %v1788, 0
      %v1800 = vsel %vm1563, %v1789, 0
      %1802 = vmatprep.subr.bf16.mxu0 0
      %1803 = vmatpush1.bf16.msra.mxu0 %v1800
      %1804 = vmatprep.subr.bf16.mxu0 0
      %1805 = vmatpush1.bf16.msra.mxu0 0
      %1806 = vmatprep.subr.bf16.mxu0 0
      %1807 = vmatpush1.bf16.msra.mxu0 0
      %1808 = vmatprep.subr.bf16.mxu0 0
      %1809 = vmatpush1.bf16.msra.mxu0 0
      %1810 = vmatprep.subr.bf16.mxu0 0
      %1811 = vmatpush1.bf16.msra.mxu0 0
      %1812 = vmatprep.subr.bf16.mxu0 0
      %1813 = vmatpush1.bf16.msra.mxu0 0
      %1814 = vmatprep.subr.bf16.mxu0 0
      %1815 = vmatpush1.bf16.msra.mxu0 0
      %1816 = vmatprep.subr.bf16.mxu0 0
      %1817 = vmatpush1.bf16.msra.mxu0 0
      %1818 = vmatprep.subr.bf16.mxu0 0
      %1819 = vmatpush1.bf16.msra.mxu0 0
      %1820 = vmatprep.subr.bf16.mxu0 0
      %1821 = vmatpush1.bf16.msra.mxu0 0
      %1822 = vmatprep.subr.bf16.mxu0 0
      %1823 = vmatpush1.bf16.msra.mxu0 0
      %1824 = vmatprep.subr.bf16.mxu0 0
      %1825 = vmatpush1.bf16.msra.mxu0 0
      %1826 = vmatprep.subr.bf16.mxu0 0
      %1827 = vmatpush1.bf16.msra.mxu0 0
      %1828 = vmatprep.subr.bf16.mxu0 0
      %1829 = vmatpush1.bf16.msra.mxu0 0
      %1830 = vmatprep.subr.bf16.mxu0 0
      %1831 = vmatpush1.bf16.msra.mxu0 0
      %1832 = vmatprep.subr.bf16.mxu0 0
      %1833 = vmatpush1.bf16.msra.mxu0 0
      %1834 = vmatprep.mubr.bf16.mxu0 0
      %1835 = vmatmul.mubr.bf16.gmra.mrb[0].mxu0 %v1797
      %v1836 = vpop.f32.mrb[0].mxu0
      %v1837 = vadd.f32 %v1794, %v1836
      %v1838 = vpop.f32.mrb[0].mxu0
      %v1839 = vpop.f32.mrb[0].mxu0
      %v1840 = vadd.f32 %v1794, %v1839
      %v1841 = vpop.f32.mrb[0].mxu0
      %1842 = vdwg.mxu0
      %1843 = vst.msk [vmem:[%s559] sm:$0xff] %vm609, %v573
      %1844 = vst.msk [vmem:[%s559 + $0x8] sm:$0xff] %vm609, %v574
      %1845 = vst.msk [vmem:[%s559 + $0x10] sm:$0xff] %vm609, %v575
      %1846 = vst.msk [vmem:[%s559 + $0x18] sm:$0xff] %vm609, %v576
      %1847 = vst.msk [vmem:[%s559 + $0x20] sm:$0xff] %vm609, %v577
      %1848 = vst.msk [vmem:[%s559 + $0x28] sm:$0xff] %vm609, %v578
      %1849 = vst.msk [vmem:[%s559 + $0x30] sm:$0xff] %vm609, %v579
      %1850 = vst.msk [vmem:[%s559 + $0x38] sm:$0xff] %vm609, %v580
      %1851 = vst.msk [vmem:[%s559 + $0x40] sm:$0xff] %vm609, %v715
      %1852 = vst.msk [vmem:[%s559 + $0x48] sm:$0xff] %vm609, %v716
      %1853 = vst.msk [vmem:[%s559 + $0x50] sm:$0xff] %vm609, %v717
      %1854 = vst.msk [vmem:[%s559 + $0x58] sm:$0xff] %vm609, %v718
      %1855 = vst.msk [vmem:[%s559 + $0x60] sm:$0xff] %vm609, %v719
      %1856 = vst.msk [vmem:[%s559 + $0x68] sm:$0xff] %vm609, %v720
      %1857 = vst.msk [vmem:[%s559 + $0x70] sm:$0xff] %vm609, %v721
      %1858 = vst.msk [vmem:[%s559 + $0x78] sm:$0xff] %vm609, %v722
      %1859 = vst.msk [vmem:[%s559 + $0x80] sm:$0xff] %vm609, %v1227
      %1860 = vst.msk [vmem:[%s559 + $0x88] sm:$0xff] %vm609, %v1228
      %1861 = vst.msk [vmem:[%s553] sm:$0xff] %vm1427, %v581
      %1862 = vst.msk [vmem:[%s553 + $0x8] sm:$0xff] %vm1427, %v582
      %1863 = vst.msk [vmem:[%s553 + $0x10] sm:$0xff] %vm1427, %v583
      %1864 = vst.msk [vmem:[%s553 + $0x18] sm:$0xff] %vm1427, %v584
      %1865 = vst.msk [vmem:[%s553 + $0x20] sm:$0xff] %vm1427, %v585
      %1866 = vst.msk [vmem:[%s553 + $0x28] sm:$0xff] %vm1427, %v586
      %1867 = vst.msk [vmem:[%s553 + $0x30] sm:$0xff] %vm1427, %v587
      %1868 = vst.msk [vmem:[%s553 + $0x38] sm:$0xff] %vm1427, %v588
      %1869 = vst.msk [vmem:[%s553 + $0x40] sm:$0xff] %vm1427, %v581
      %1870 = vst.msk [vmem:[%s553 + $0x48] sm:$0xff] %vm1427, %v582
      %1871 = vst.msk [vmem:[%s553 + $0x50] sm:$0xff] %vm1427, %v583
      %1872 = vst.msk [vmem:[%s553 + $0x58] sm:$0xff] %vm1427, %v584
      %1873 = vst.msk [vmem:[%s553 + $0x60] sm:$0xff] %vm1427, %v585
      %1874 = vst.msk [vmem:[%s553 + $0x68] sm:$0xff] %vm1427, %v586
      %1875 = vst.msk [vmem:[%s553 + $0x70] sm:$0xff] %vm1427, %v587
      %1876 = vst.msk [vmem:[%s553 + $0x78] sm:$0xff] %vm1427, %v588
      %1877 = vst.msk [vmem:[%s553 + $0x80] sm:$0xff] %vm1427, %v1837
      %1878 = vst.msk [vmem:[%s553 + $0x88] sm:$0xff] %vm1427, %v1840
      %s1879 = smul.u32 18, %s28
      %p1880 = scmp.lt.s32.totalorder %s1879, 35
      %s1881 = scalar_select %p1880, %s1879, 35
      %s1882 = smul.addr %s1881, 8
      %s1883 = scalar_lea.vmem %s15, %s1882
      %s1884 = smul.u32 18, %s28
      %p1885 = scmp.lt.s32.totalorder %s1884, 35
      %s1886 = scalar_select %p1885, %s1884, 35
      %s1887 = smul.addr %s1886, 8
      %s1888 = scalar_lea.vmem %s16, %s1887
      // Predicated region
      $region81: #{cgb_generate_centroids.1} parent=79 // pred_check
        %p1889 = pneg %p371
      $region82: #{cgb_generate_centroids.1} parent=79 // pred_check_branch
        %1891 = sbr.rel (%p1889) target = $region84
      $region83: #{cgb_generate_centroids.1} parent=79 // pred_region
        %s1892 = smul.u32 18, %s28
      $region84: #{cgb_generate_centroids.1} parent=79 // pred_fallthru
        _
      // Predicated region
      $region85: #{cgb_generate_centroids.1} parent=79 // pred_check
        %p1893 = pneg %p397
      $region86: #{cgb_generate_centroids.1} parent=79 // pred_check_branch
        %1895 = sbr.rel (%p1893) target = $region88
      $region87: #{cgb_generate_centroids.1} parent=79 // pred_region
        %s1896 = smul.u32 18, %s28
      $region88: #{cgb_generate_centroids.1} parent=79 // pred_fallthru
        _
    $region80: #{cgb_generate_centroids.1} parent=5 // pred_fallthru
      _
    %p1897 = scmp.le.s32.totalorder 2, %s23
    // Predicated region
    $region89: #{cgb_generate_centroids.1} parent=5 // pred_check
      %p1898 = pneg %p1897
    $region90: #{cgb_generate_centroids.1} parent=5 // pred_check_branch
      %1900 = sbr.rel (%p1898) target = $region92
    $region91: #{cgb_generate_centroids.1} parent=5 // pred_region
      %s1901 = ssub.s32 %s23, 2
      // Predicated region
      $region93: #{cgb_generate_centroids.1} parent=91 // pred_check
        %p1902 = pneg %p377
      $region94: #{cgb_generate_centroids.1} parent=91 // pred_check_branch
        %1904 = sbr.rel (%p1902) target = $region96
      $region95: #{cgb_generate_centroids.1} parent=91 // pred_region
        %s1905 = smul.u32 18, %s29
        %p1906 = scmp.lt.s32.totalorder %s1905, 35
        %s1907 = scalar_select %p1906, %s1905, 35
        %s1908 = smul.addr %s1907, 8
        %s1909 = scalar_lea.vmem %s15, %s1908
      $region96: #{cgb_generate_centroids.1} parent=91 // pred_fallthru
        _
      // Predicated region
      $region97: #{cgb_generate_centroids.1} parent=91 // pred_check
        %p1910 = pneg %p403
      $region98: #{cgb_generate_centroids.1} parent=91 // pred_check_branch
        %1912 = sbr.rel (%p1910) target = $region100
      $region99: #{cgb_generate_centroids.1} parent=91 // pred_region
        %s1913 = smul.u32 18, %s29
        %p1914 = scmp.lt.s32.totalorder %s1913, 35
        %s1915 = scalar_select %p1914, %s1913, 35
        %s1916 = smul.addr %s1915, 8
        %s1917 = scalar_lea.vmem %s16, %s1916
      $region100: #{cgb_generate_centroids.1} parent=91 // pred_fallthru
        _
    $region92: #{cgb_generate_centroids.1} parent=5 // pred_fallthru
      _
  $region6: #{cgb_generate_centroids.1} parent=0 // loop_footer
    %s27 = sadd.s32 1, %s23
  $region7: #{cgb_generate_centroids.1} parent=0 // loop_footer_branch
    %22 = sbr.rel target = $region3
  $region8: #{cgb_generate_centroids.1} parent=0 // loop_exit
    _

</llo_original>
